<compile_context>
chip_gen: v5e
topology: v5e:2x2
jax: 0.10.0
libtpu: 0.0.40
codegen_flags: <defaults>
</compile_context>

<pallas_src>
import functools

import jax
import jax.numpy as jnp
import numpy as np
from jax import lax
from jax.experimental import pallas as pl
from jax.experimental.pallas import tpu as pltpu


# ---------------------------------------------------------------------------
# Fused kernel: expand -> depthwise -> project (+residual), one image per step
# ---------------------------------------------------------------------------
def _base_block_kernel(H, W, stride, shortcut, pad,
                       x_ref, w1_ref, s1_ref, b1_ref,
                       wd_ref, s2_ref, b2_ref,
                       w3_ref, s3_ref, b3_ref,
                       o_ref, h1p_ref):
    HW = H * W
    Ho = (H + 2 - 3) // stride + 1
    Wo = (W + 2 - 3) // stride + 1
    Cin = x_ref.shape[1]
    Cexp = w1_ref.shape[1]

    # ---- load the image once (lane-dense: H*W on the lane axis) -----------
    x = x_ref[0]                                   # (Cin, H*W)
    xT = jnp.transpose(x)                          # (H*W, Cin)

    # ---- expand 1x1 conv: K = Cin is tiny -> VPU broadcast-MACs -----------
    w1 = w1_ref[...]                               # (Cin, Cexp)
    h1 = xT[:, 0:1] * w1[0, :]
    for ci in range(1, Cin):
        h1 = h1 + xT[:, ci:ci + 1] * w1[ci, :]     # (H*W, Cexp)
    h1 = jnp.clip(h1 * s1_ref[0, :] + b1_ref[0, :], 0.0, 6.0)

    # ---- depthwise 3x3: flat zero-padded VMEM scratch + shifted reads -----
    # A shift of (dh, dw) in 2-D is a shift of dh*W + dw in the flattened
    # H*W axis; row-boundary wrap is killed by the zero pads (|off| <= W+1),
    # column wrap is killed by the two hoisted masks below.
    h1p_ref[...] = jnp.zeros_like(h1p_ref)
    h1p_ref[pad:pad + HW, :] = h1                  # aligned interior store

    wd = wd_ref[...]                               # (9, Cexp), hoisted
    col = lax.broadcasted_iota(jnp.int32, (HW, 1), 0) % W
    left_ok = col > 0                              # valid source for dw == -1
    right_ok = col < (W - 1)                       # valid source for dw == +1

    acc = jnp.zeros((HW, Cexp), jnp.float32)
    for dh in (-1, 0, 1):
        for dw in (-1, 0, 1):
            off = dh * W + dw
            k = (dh + 1) * 3 + (dw + 1)
            patch = h1p_ref[pad + off:pad + off + HW, :]   # (H*W, Cexp)
            if dw == -1:
                patch = jnp.where(left_ok, patch, 0.0)
            elif dw == 1:
                patch = jnp.where(right_ok, patch, 0.0)
            acc = acc + patch * wd[k, :]
    h2 = jnp.clip(acc * s2_ref[0, :] + b2_ref[0, :], 0.0, 6.0)   # (H*W, Cexp)

    if stride != 1:
        # Downsample path (not exercised in the demo): the depthwise output at
        # stride s equals the stride-1 output sampled at (s*ho, s*wo); gather
        # those rows with a one-hot selection matmul (no strided lane slices).
        HoWo = Ho * Wo
        j = lax.broadcasted_iota(jnp.int32, (HoWo, HW), 0)
        m = lax.broadcasted_iota(jnp.int32, (HoWo, HW), 1)
        sel = (m == (j // Wo) * (W * stride) + (j % Wo) * stride)
        h2 = jnp.dot(sel.astype(jnp.float32), h2,
                     preferred_element_type=jnp.float32)          # (Ho*Wo, Cexp)

    # ---- project 1x1 conv: single full-M MXU call + BN (+ residual) -------
    y = jnp.dot(h2, w3_ref[...], preferred_element_type=jnp.float32)
    y = y * s3_ref[0, :] + b3_ref[0, :]            # (Ho*Wo, Cout)
    yT = jnp.transpose(y)                          # (Cout, Ho*Wo) lane-dense
    if shortcut:
        yT = yT + x                                # reuse resident x tile
    o_ref[0] = yT.astype(o_ref.dtype)


def base_block_pallas(x_nchw, w1, s1, b1, wd9, s2, b2, w3, s3, b3,
                      *, stride, shortcut):
    N, Cin, H, W = x_nchw.shape
    Cexp = w1.shape[1]
    Cout = w3.shape[1]
    HW = H * W
    Ho = (H + 2 - 3) // stride + 1
    Wo = (W + 2 - 3) // stride + 1
    pad = ((W + 1) + 7) // 8 * 8                   # sublane-aligned halo pad

    x_flat = x_nchw.reshape(N, Cin, HW)            # free NCHW reshape

    kernel = functools.partial(_base_block_kernel, H, W, stride, shortcut, pad)

    out_flat = pl.pallas_call(
        kernel,
        out_shape=jax.ShapeDtypeStruct((N, Cout, Ho * Wo), jnp.float32),
        grid=(N,),
        in_specs=[
            pl.BlockSpec((1, Cin, HW), lambda n: (n, 0, 0)),
            pl.BlockSpec((Cin, Cexp), lambda n: (0, 0)),
            pl.BlockSpec((1, Cexp), lambda n: (0, 0)),
            pl.BlockSpec((1, Cexp), lambda n: (0, 0)),
            pl.BlockSpec((9, Cexp), lambda n: (0, 0)),
            pl.BlockSpec((1, Cexp), lambda n: (0, 0)),
            pl.BlockSpec((1, Cexp), lambda n: (0, 0)),
            pl.BlockSpec((Cexp, Cout), lambda n: (0, 0)),
            pl.BlockSpec((1, Cout), lambda n: (0, 0)),
            pl.BlockSpec((1, Cout), lambda n: (0, 0)),
        ],
        out_specs=pl.BlockSpec((1, Cout, Ho * Wo), lambda n: (n, 0, 0)),
        scratch_shapes=[pltpu.VMEM((pad + HW + pad, Cexp), jnp.float32)],
        compiler_params=pltpu.CompilerParams(dimension_semantics=("parallel",)),
    )(x_flat, w1, s1.reshape(1, -1), b1.reshape(1, -1), wd9,
      s2.reshape(1, -1), b2.reshape(1, -1), w3, s3.reshape(1, -1),
      b3.reshape(1, -1))

    return out_flat.reshape(N, Cout, Ho, Wo)       # free reshape, already NCHW


# ---------------------------------------------------------------------------
# BaseBlock forward
# ---------------------------------------------------------------------------
def fold_bn(gamma, beta, mean, var, eps=1e-5):
    scale = gamma / jnp.sqrt(var + eps)
    bias = beta - mean * scale
    return scale, bias


@functools.partial(jax.jit, static_argnames=("stride", "shortcut"))
def base_block_forward(x_nchw, params, *, stride, shortcut):
    w1, bn1, wd, bn2, w3, bn3 = params
    s1, b1 = fold_bn(*bn1)
    s2, b2 = fold_bn(*bn2)
    s3, b3 = fold_bn(*bn3)

    N, Cin, H, W = x_nchw.shape
    Cexp = w1.shape[1]
    Cout = w3.shape[1]
    if shortcut:
        assert stride == 1 and Cin == Cout, "residual requires stride=1, Cin==Cout"

    wd9 = wd.reshape(9, Cexp)
    return base_block_pallas(x_nchw, w1, s1, b1, wd9, s2, b2, w3, s3, b3,
                             stride=stride, shortcut=shortcut)


# ---------------------------------------------------------------------------
# Pure-JAX reference (same eval-mode BN semantics)
# ---------------------------------------------------------------------------
def reference_forward(x_nchw, params, *, stride, shortcut):
    w1, bn1, wd, bn2, w3, bn3 = params
    s1, b1 = fold_bn(*bn1)
    s2, b2 = fold_bn(*bn2)
    s3, b3 = fold_bn(*bn3)

    x = jnp.transpose(x_nchw, (0, 2, 3, 1))
    Cin = x.shape[-1]
    Cexp = w1.shape[1]
    dn = ("NHWC", "HWIO", "NHWC")
    hi = lax.Precision.HIGHEST

    y = lax.conv_general_dilated(
        x, w1.reshape(1, 1, Cin, Cexp), (1, 1), "VALID",
        dimension_numbers=dn, precision=hi)
    y = jnp.clip(y * s1 + b1, 0.0, 6.0)

    y = lax.conv_general_dilated(
        y, wd.reshape(3, 3, 1, Cexp), (stride, stride), ((1, 1), (1, 1)),
        dimension_numbers=dn, feature_group_count=Cexp, precision=hi)
    y = jnp.clip(y * s2 + b2, 0.0, 6.0)

    y = lax.conv_general_dilated(
        y, w3.reshape(1, 1, Cexp, w3.shape[1]), (1, 1), "VALID",
        dimension_numbers=dn, precision=hi)
    y = y * s3 + b3
    if shortcut:
        y = y + x
    return jnp.transpose(y, (0, 3, 1, 2))


# ---------------------------------------------------------------------------
if __name__ == "__main__":
    # BaseBlock(input_channel=4, output_channel=4, t=6, downsample=False)
    N, Cin, H, W = 2, 4, 16, 16
    t = 6
    Cout = 4
    downsample = False
    stride = 2 if downsample else 1
    shortcut = (not downsample) and (Cin == Cout)
    Cexp = t * Cin

    keys = jax.random.split(jax.random.PRNGKey(0), 16)
    x = jax.random.normal(keys[0], (N, Cin, H, W), jnp.float32)

    def bn_params(k, c):
        ka, kb, kc, kd = jax.random.split(k, 4)
        gamma = 1.0 + 0.1 * jax.random.normal(ka, (c,), jnp.float32)
        beta = 0.1 * jax.random.normal(kb, (c,), jnp.float32)
        mean = 0.1 * jax.random.normal(kc, (c,), jnp.float32)
        var = 1.0 + 0.1 * jnp.abs(jax.random.normal(kd, (c,), jnp.float32))
        return (gamma, beta, mean, var)

    w1 = 0.3 * jax.random.normal(keys[1], (Cin, Cexp), jnp.float32)   # conv1 (1x1)
    wd = 0.3 * jax.random.normal(keys[2], (3, 3, Cexp), jnp.float32)  # conv2 (dw 3x3)
    w3 = 0.3 * jax.random.normal(keys[3], (Cexp, Cout), jnp.float32)  # conv3 (1x1)
    params = (w1, bn_params(keys[4], Cexp),
              wd, bn_params(keys[5], Cexp),
              w3, bn_params(keys[6], Cout))

    out = base_block_forward(x, params, stride=stride, shortcut=shortcut)
    out = jax.block_until_ready(out)

    ref = reference_forward(x, params, stride=stride, shortcut=shortcut)
    np.testing.assert_allclose(np.asarray(out), np.asarray(ref), rtol=1e-2, atol=1e-2)
    assert out.shape == (N, Cout, H // stride, W // stride)

    print("KERNEL_OK")
</pallas_src>

<mosaic_0001>
module attributes {stable_mosaic.version = 11 : i64} {
  func.func @_base_block_kernel(%arg0: i32, %arg1: memref<1x4x256xf32, #tpu.memory_space<vmem>>, %arg2: memref<4x24xf32, #tpu.memory_space<vmem>>, %arg3: memref<1x24xf32, #tpu.memory_space<vmem>>, %arg4: memref<1x24xf32, #tpu.memory_space<vmem>>, %arg5: memref<9x24xf32, #tpu.memory_space<vmem>>, %arg6: memref<1x24xf32, #tpu.memory_space<vmem>>, %arg7: memref<1x24xf32, #tpu.memory_space<vmem>>, %arg8: memref<24x4xf32, #tpu.memory_space<vmem>>, %arg9: memref<1x4xf32, #tpu.memory_space<vmem>>, %arg10: memref<1x4xf32, #tpu.memory_space<vmem>>, %arg11: memref<1x4x256xf32, #tpu.memory_space<vmem>>, %arg12: memref<304x24xf32, #tpu.memory_space<vmem>>) attributes {dimension_semantics = [#tpu.dimension_semantics<parallel>], iteration_bounds = array<i64: 2>, scalar_prefetch = 0 : i64, scratch_operands = 1 : i64, tpu.core_type = #tpu.core_type<tc>, window_params = [{transform_indices = @transform_0, window_bounds = array<i64: 1, 4, 256>}, {pipeline_mode = #tpu.pipeline_mode<synchronous>, transform_indices = @transform_1, window_bounds = array<i64: 4, 24>}, {pipeline_mode = #tpu.pipeline_mode<synchronous>, transform_indices = @transform_2, window_bounds = array<i64: 1, 24>}, {pipeline_mode = #tpu.pipeline_mode<synchronous>, transform_indices = @transform_3, window_bounds = array<i64: 1, 24>}, {pipeline_mode = #tpu.pipeline_mode<synchronous>, transform_indices = @transform_4, window_bounds = array<i64: 9, 24>}, {pipeline_mode = #tpu.pipeline_mode<synchronous>, transform_indices = @transform_5, window_bounds = array<i64: 1, 24>}, {pipeline_mode = #tpu.pipeline_mode<synchronous>, transform_indices = @transform_6, window_bounds = array<i64: 1, 24>}, {pipeline_mode = #tpu.pipeline_mode<synchronous>, transform_indices = @transform_7, window_bounds = array<i64: 24, 4>}, {pipeline_mode = #tpu.pipeline_mode<synchronous>, transform_indices = @transform_8, window_bounds = array<i64: 1, 4>}, {pipeline_mode = #tpu.pipeline_mode<synchronous>, transform_indices = @transform_9, window_bounds = array<i64: 1, 4>}, {transform_indices = @transform_10, window_bounds = array<i64: 1, 4, 256>}]} {
    %c0 = arith.constant 0 : index
    %c0_0 = arith.constant 0 : index
    %c0_1 = arith.constant 0 : index
    %0 = vector.load %arg1[%c0, %c0_0, %c0_1] : memref<1x4x256xf32, #tpu.memory_space<vmem>>, vector<1x4x256xf32>
    %1 = vector.shape_cast %0 : vector<1x4x256xf32> to vector<4x256xf32>
    %2 = tpu.transpose %1, [1, 0] : vector<4x256xf32> -> vector<256x4xf32>
    %c0_2 = arith.constant 0 : index
    %c0_3 = arith.constant 0 : index
    %3 = vector.load %arg2[%c0_2, %c0_3] : memref<4x24xf32, #tpu.memory_space<vmem>>, vector<4x24xf32>
    %4 = vector.extract_strided_slice %2 {offsets = [0, 0], sizes = [256, 1], strides = [1, 1]} : vector<256x4xf32> to vector<256x1xf32>
    %5 = vector.extract_strided_slice %3 {offsets = [0, 0], sizes = [1, 24], strides = [1, 1]} : vector<4x24xf32> to vector<1x24xf32>
    %6 = vector.shape_cast %5 : vector<1x24xf32> to vector<24xf32>
    %7 = vector.shape_cast %6 : vector<24xf32> to vector<1x24xf32>
    %8 = vector.broadcast %4 : vector<256x1xf32> to vector<256x24xf32>
    %9 = vector.broadcast %7 : vector<1x24xf32> to vector<256x24xf32>
    %10 = arith.mulf %8, %9 : vector<256x24xf32>
    %11 = vector.extract_strided_slice %2 {offsets = [0, 1], sizes = [256, 1], strides = [1, 1]} : vector<256x4xf32> to vector<256x1xf32>
    %12 = vector.extract_strided_slice %3 {offsets = [1, 0], sizes = [1, 24], strides = [1, 1]} : vector<4x24xf32> to vector<1x24xf32>
    %13 = vector.shape_cast %12 : vector<1x24xf32> to vector<24xf32>
    %14 = vector.shape_cast %13 : vector<24xf32> to vector<1x24xf32>
    %15 = vector.broadcast %11 : vector<256x1xf32> to vector<256x24xf32>
    %16 = vector.broadcast %14 : vector<1x24xf32> to vector<256x24xf32>
    %17 = arith.mulf %15, %16 : vector<256x24xf32>
    %18 = arith.addf %10, %17 : vector<256x24xf32>
    %19 = vector.extract_strided_slice %2 {offsets = [0, 2], sizes = [256, 1], strides = [1, 1]} : vector<256x4xf32> to vector<256x1xf32>
    %20 = vector.extract_strided_slice %3 {offsets = [2, 0], sizes = [1, 24], strides = [1, 1]} : vector<4x24xf32> to vector<1x24xf32>
    %21 = vector.shape_cast %20 : vector<1x24xf32> to vector<24xf32>
    %22 = vector.shape_cast %21 : vector<24xf32> to vector<1x24xf32>
    %23 = vector.broadcast %19 : vector<256x1xf32> to vector<256x24xf32>
    %24 = vector.broadcast %22 : vector<1x24xf32> to vector<256x24xf32>
    %25 = arith.mulf %23, %24 : vector<256x24xf32>
    %26 = arith.addf %18, %25 : vector<256x24xf32>
    %27 = vector.extract_strided_slice %2 {offsets = [0, 3], sizes = [256, 1], strides = [1, 1]} : vector<256x4xf32> to vector<256x1xf32>
    %28 = vector.extract_strided_slice %3 {offsets = [3, 0], sizes = [1, 24], strides = [1, 1]} : vector<4x24xf32> to vector<1x24xf32>
    %29 = vector.shape_cast %28 : vector<1x24xf32> to vector<24xf32>
    %30 = vector.shape_cast %29 : vector<24xf32> to vector<1x24xf32>
    %31 = vector.broadcast %27 : vector<256x1xf32> to vector<256x24xf32>
    %32 = vector.broadcast %30 : vector<1x24xf32> to vector<256x24xf32>
    %33 = arith.mulf %31, %32 : vector<256x24xf32>
    %34 = arith.addf %26, %33 : vector<256x24xf32>
    %c0_4 = arith.constant 0 : index
    %c0_5 = arith.constant 0 : index
    %35 = vector.load %arg3[%c0_4, %c0_5] : memref<1x24xf32, #tpu.memory_space<vmem>>, vector<1x24xf32>
    %36 = vector.shape_cast %35 : vector<1x24xf32> to vector<24xf32>
    %37 = vector.shape_cast %36 : vector<24xf32> to vector<1x24xf32>
    %38 = vector.broadcast %37 : vector<1x24xf32> to vector<256x24xf32>
    %39 = arith.mulf %34, %38 : vector<256x24xf32>
    %c0_6 = arith.constant 0 : index
    %c0_7 = arith.constant 0 : index
    %40 = vector.load %arg4[%c0_6, %c0_7] : memref<1x24xf32, #tpu.memory_space<vmem>>, vector<1x24xf32>
    %41 = vector.shape_cast %40 : vector<1x24xf32> to vector<24xf32>
    %42 = vector.shape_cast %41 : vector<24xf32> to vector<1x24xf32>
    %43 = vector.broadcast %42 : vector<1x24xf32> to vector<256x24xf32>
    %44 = arith.addf %39, %43 : vector<256x24xf32>
    %cst = arith.constant 0.000000e+00 : f32
    %cst_8 = arith.constant 6.000000e+00 : f32
    %45 = vector.broadcast %cst : f32 to vector<256x24xf32>
    %46 = arith.maximumf %45, %44 : vector<256x24xf32>
    %47 = vector.broadcast %cst_8 : f32 to vector<256x24xf32>
    %48 = arith.minimumf %47, %46 : vector<256x24xf32>
    %cst_9 = arith.constant 0.000000e+00 : f32
    %49 = vector.broadcast %cst_9 : f32 to vector<304x24xf32>
    %c0_10 = arith.constant 0 : index
    %c0_11 = arith.constant 0 : index
    %50 = vector.load %arg12[%c0_10, %c0_11] : memref<304x24xf32, #tpu.memory_space<vmem>>, vector<304x24xf32>
    tpu.vector_store %arg12[%c0_10, %c0_11], %49 {strides = array<i32>} : memref<304x24xf32, #tpu.memory_space<vmem>>, vector<304x24xf32>,
    %c24 = arith.constant 24 : index
    %c0_12 = arith.constant 0 : index
    %51 = vector.load %arg12[%c24, %c0_12] : memref<304x24xf32, #tpu.memory_space<vmem>>, vector<256x24xf32>
    tpu.vector_store %arg12[%c24, %c0_12], %48 {strides = array<i32>} : memref<304x24xf32, #tpu.memory_space<vmem>>, vector<256x24xf32>,
    %c0_13 = arith.constant 0 : index
    %c0_14 = arith.constant 0 : index
    %52 = vector.load %arg5[%c0_13, %c0_14] : memref<9x24xf32, #tpu.memory_space<vmem>>, vector<9x24xf32>
    %53 = tpu.iota {dimensions = array<i32: 0>} : vector<256x1xi32>
    %c16_i32 = arith.constant 16 : i32
    %c0_i32 = arith.constant 0 : i32
    %54 = arith.cmpi eq, %c16_i32, %c0_i32 : i32
    %c1_i32 = arith.constant 1 : i32
    %55 = arith.select %54, %c1_i32, %c16_i32 : i32
    %56 = vector.broadcast %55 : i32 to vector<256x1xi32>
    %57 = arith.remsi %53, %56 : vector<256x1xi32>
    %c0_i32_15 = arith.constant 0 : i32
    %58 = vector.broadcast %c0_i32_15 : i32 to vector<256x1xi32>
    %59 = arith.cmpi ne, %57, %58 : vector<256x1xi32>
    %c0_i32_16 = arith.constant 0 : i32
    %60 = vector.broadcast %c0_i32_16 : i32 to vector<256x1xi32>
    %61 = arith.cmpi slt, %57, %60 : vector<256x1xi32>
    %c0_i32_17 = arith.constant 0 : i32
    %62 = arith.cmpi slt, %55, %c0_i32_17 : i32
    %63 = vector.broadcast %62 : i1 to vector<256x1xi1>
    %64 = vector.broadcast %63 : vector<256x1xi1> to vector<256x1xi1>
    %65 = arith.xori %61, %64 : vector<256x1xi1>
    %66 = arith.andi %65, %59 : vector<256x1xi1>
    %67 = vector.broadcast %55 : i32 to vector<256x1xi32>
    %68 = arith.addi %57, %67 : vector<256x1xi32>
    %69 = arith.select %66, %68, %57 : vector<256x1xi1>, vector<256x1xi32>
    %c0_i32_18 = arith.constant 0 : i32
    %70 = vector.broadcast %c0_i32_18 : i32 to vector<256x1xi32>
    %71 = arith.cmpi sgt, %69, %70 : vector<256x1xi32>
    %c15_i32 = arith.constant 15 : i32
    %72 = vector.broadcast %c15_i32 : i32 to vector<256x1xi32>
    %73 = arith.cmpi slt, %69, %72 : vector<256x1xi32>
    %cst_19 = arith.constant 0.000000e+00 : f32
    %74 = vector.broadcast %cst_19 : f32 to vector<256x24xf32>
    %c7 = arith.constant 7 : index
    %c0_20 = arith.constant 0 : index
    %75 = vector.load %arg12[%c7, %c0_20] : memref<304x24xf32, #tpu.memory_space<vmem>>, vector<256x24xf32>
    %cst_21 = arith.constant 0.000000e+00 : f32
    %76 = vector.shape_cast %71 : vector<256x1xi1> to vector<256x1xi1>
    %77 = vector.broadcast %76 : vector<256x1xi1> to vector<256x24xi1>
    %78 = vector.broadcast %cst_21 : f32 to vector<256x24xf32>
    %79 = arith.select %77, %75, %78 : vector<256x24xi1>, vector<256x24xf32>
    %80 = vector.extract_strided_slice %52 {offsets = [0, 0], sizes = [1, 24], strides = [1, 1]} : vector<9x24xf32> to vector<1x24xf32>
    %81 = vector.shape_cast %80 : vector<1x24xf32> to vector<24xf32>
    %82 = vector.shape_cast %81 : vector<24xf32> to vector<1x24xf32>
    %83 = vector.broadcast %82 : vector<1x24xf32> to vector<256x24xf32>
    %84 = arith.mulf %79, %83 : vector<256x24xf32>
    %85 = arith.addf %74, %84 : vector<256x24xf32>
    %c8 = arith.constant 8 : index
    %c0_22 = arith.constant 0 : index
    %86 = vector.load %arg12[%c8, %c0_22] : memref<304x24xf32, #tpu.memory_space<vmem>>, vector<256x24xf32>
    %87 = vector.extract_strided_slice %52 {offsets = [1, 0], sizes = [1, 24], strides = [1, 1]} : vector<9x24xf32> to vector<1x24xf32>
    %88 = vector.shape_cast %87 : vector<1x24xf32> to vector<24xf32>
    %89 = vector.shape_cast %88 : vector<24xf32> to vector<1x24xf32>
    %90 = vector.broadcast %89 : vector<1x24xf32> to vector<256x24xf32>
    %91 = arith.mulf %86, %90 : vector<256x24xf32>
    %92 = arith.addf %85, %91 : vector<256x24xf32>
    %c9 = arith.constant 9 : index
    %c0_23 = arith.constant 0 : index
    %93 = vector.load %arg12[%c9, %c0_23] : memref<304x24xf32, #tpu.memory_space<vmem>>, vector<256x24xf32>
    %cst_24 = arith.constant 0.000000e+00 : f32
    %94 = vector.shape_cast %73 : vector<256x1xi1> to vector<256x1xi1>
    %95 = vector.broadcast %94 : vector<256x1xi1> to vector<256x24xi1>
    %96 = vector.broadcast %cst_24 : f32 to vector<256x24xf32>
    %97 = arith.select %95, %93, %96 : vector<256x24xi1>, vector<256x24xf32>
    %98 = vector.extract_strided_slice %52 {offsets = [2, 0], sizes = [1, 24], strides = [1, 1]} : vector<9x24xf32> to vector<1x24xf32>
    %99 = vector.shape_cast %98 : vector<1x24xf32> to vector<24xf32>
    %100 = vector.shape_cast %99 : vector<24xf32> to vector<1x24xf32>
    %101 = vector.broadcast %100 : vector<1x24xf32> to vector<256x24xf32>
    %102 = arith.mulf %97, %101 : vector<256x24xf32>
    %103 = arith.addf %92, %102 : vector<256x24xf32>
    %c23 = arith.constant 23 : index
    %c0_25 = arith.constant 0 : index
    %104 = vector.load %arg12[%c23, %c0_25] : memref<304x24xf32, #tpu.memory_space<vmem>>, vector<256x24xf32>
    %cst_26 = arith.constant 0.000000e+00 : f32
    %105 = vector.shape_cast %71 : vector<256x1xi1> to vector<256x1xi1>
    %106 = vector.broadcast %105 : vector<256x1xi1> to vector<256x24xi1>
    %107 = vector.broadcast %cst_26 : f32 to vector<256x24xf32>
    %108 = arith.select %106, %104, %107 : vector<256x24xi1>, vector<256x24xf32>
    %109 = vector.extract_strided_slice %52 {offsets = [3, 0], sizes = [1, 24], strides = [1, 1]} : vector<9x24xf32> to vector<1x24xf32>
    %110 = vector.shape_cast %109 : vector<1x24xf32> to vector<24xf32>
    %111 = vector.shape_cast %110 : vector<24xf32> to vector<1x24xf32>
    %112 = vector.broadcast %111 : vector<1x24xf32> to vector<256x24xf32>
    %113 = arith.mulf %108, %112 : vector<256x24xf32>
    %114 = arith.addf %103, %113 : vector<256x24xf32>
    %c24_27 = arith.constant 24 : index
    %c0_28 = arith.constant 0 : index
    %115 = vector.load %arg12[%c24_27, %c0_28] : memref<304x24xf32, #tpu.memory_space<vmem>>, vector<256x24xf32>
    %116 = vector.extract_strided_slice %52 {offsets = [4, 0], sizes = [1, 24], strides = [1, 1]} : vector<9x24xf32> to vector<1x24xf32>
    %117 = vector.shape_cast %116 : vector<1x24xf32> to vector<24xf32>
    %118 = vector.shape_cast %117 : vector<24xf32> to vector<1x24xf32>
    %119 = vector.broadcast %118 : vector<1x24xf32> to vector<256x24xf32>
    %120 = arith.mulf %115, %119 : vector<256x24xf32>
    %121 = arith.addf %114, %120 : vector<256x24xf32>
    %c25 = arith.constant 25 : index
    %c0_29 = arith.constant 0 : index
    %122 = vector.load %arg12[%c25, %c0_29] : memref<304x24xf32, #tpu.memory_space<vmem>>, vector<256x24xf32>
    %cst_30 = arith.constant 0.000000e+00 : f32
    %123 = vector.shape_cast %73 : vector<256x1xi1> to vector<256x1xi1>
    %124 = vector.broadcast %123 : vector<256x1xi1> to vector<256x24xi1>
    %125 = vector.broadcast %cst_30 : f32 to vector<256x24xf32>
    %126 = arith.select %124, %122, %125 : vector<256x24xi1>, vector<256x24xf32>
    %127 = vector.extract_strided_slice %52 {offsets = [5, 0], sizes = [1, 24], strides = [1, 1]} : vector<9x24xf32> to vector<1x24xf32>
    %128 = vector.shape_cast %127 : vector<1x24xf32> to vector<24xf32>
    %129 = vector.shape_cast %128 : vector<24xf32> to vector<1x24xf32>
    %130 = vector.broadcast %129 : vector<1x24xf32> to vector<256x24xf32>
    %131 = arith.mulf %126, %130 : vector<256x24xf32>
    %132 = arith.addf %121, %131 : vector<256x24xf32>
    %c39 = arith.constant 39 : index
    %c0_31 = arith.constant 0 : index
    %133 = vector.load %arg12[%c39, %c0_31] : memref<304x24xf32, #tpu.memory_space<vmem>>, vector<256x24xf32>
    %cst_32 = arith.constant 0.000000e+00 : f32
    %134 = vector.shape_cast %71 : vector<256x1xi1> to vector<256x1xi1>
    %135 = vector.broadcast %134 : vector<256x1xi1> to vector<256x24xi1>
    %136 = vector.broadcast %cst_32 : f32 to vector<256x24xf32>
    %137 = arith.select %135, %133, %136 : vector<256x24xi1>, vector<256x24xf32>
    %138 = vector.extract_strided_slice %52 {offsets = [6, 0], sizes = [1, 24], strides = [1, 1]} : vector<9x24xf32> to vector<1x24xf32>
    %139 = vector.shape_cast %138 : vector<1x24xf32> to vector<24xf32>
    %140 = vector.shape_cast %139 : vector<24xf32> to vector<1x24xf32>
    %141 = vector.broadcast %140 : vector<1x24xf32> to vector<256x24xf32>
    %142 = arith.mulf %137, %141 : vector<256x24xf32>
    %143 = arith.addf %132, %142 : vector<256x24xf32>
    %c40 = arith.constant 40 : index
    %c0_33 = arith.constant 0 : index
    %144 = vector.load %arg12[%c40, %c0_33] : memref<304x24xf32, #tpu.memory_space<vmem>>, vector<256x24xf32>
    %145 = vector.extract_strided_slice %52 {offsets = [7, 0], sizes = [1, 24], strides = [1, 1]} : vector<9x24xf32> to vector<1x24xf32>
    %146 = vector.shape_cast %145 : vector<1x24xf32> to vector<24xf32>
    %147 = vector.shape_cast %146 : vector<24xf32> to vector<1x24xf32>
    %148 = vector.broadcast %147 : vector<1x24xf32> to vector<256x24xf32>
    %149 = arith.mulf %144, %148 : vector<256x24xf32>
    %150 = arith.addf %143, %149 : vector<256x24xf32>
    %c41 = arith.constant 41 : index
    %c0_34 = arith.constant 0 : index
    %151 = vector.load %arg12[%c41, %c0_34] : memref<304x24xf32, #tpu.memory_space<vmem>>, vector<256x24xf32>
    %cst_35 = arith.constant 0.000000e+00 : f32
    %152 = vector.shape_cast %73 : vector<256x1xi1> to vector<256x1xi1>
    %153 = vector.broadcast %152 : vector<256x1xi1> to vector<256x24xi1>
    %154 = vector.broadcast %cst_35 : f32 to vector<256x24xf32>
    %155 = arith.select %153, %151, %154 : vector<256x24xi1>, vector<256x24xf32>
    %156 = vector.extract_strided_slice %52 {offsets = [8, 0], sizes = [1, 24], strides = [1, 1]} : vector<9x24xf32> to vector<1x24xf32>
    %157 = vector.shape_cast %156 : vector<1x24xf32> to vector<24xf32>
    %158 = vector.shape_cast %157 : vector<24xf32> to vector<1x24xf32>
    %159 = vector.broadcast %158 : vector<1x24xf32> to vector<256x24xf32>
    %160 = arith.mulf %155, %159 : vector<256x24xf32>
    %161 = arith.addf %150, %160 : vector<256x24xf32>
    %c0_36 = arith.constant 0 : index
    %c0_37 = arith.constant 0 : index
    %162 = vector.load %arg6[%c0_36, %c0_37] : memref<1x24xf32, #tpu.memory_space<vmem>>, vector<1x24xf32>
    %163 = vector.shape_cast %162 : vector<1x24xf32> to vector<24xf32>
    %164 = vector.shape_cast %163 : vector<24xf32> to vector<1x24xf32>
    %165 = vector.broadcast %164 : vector<1x24xf32> to vector<256x24xf32>
    %166 = arith.mulf %161, %165 : vector<256x24xf32>
    %c0_38 = arith.constant 0 : index
    %c0_39 = arith.constant 0 : index
    %167 = vector.load %arg7[%c0_38, %c0_39] : memref<1x24xf32, #tpu.memory_space<vmem>>, vector<1x24xf32>
    %168 = vector.shape_cast %167 : vector<1x24xf32> to vector<24xf32>
    %169 = vector.shape_cast %168 : vector<24xf32> to vector<1x24xf32>
    %170 = vector.broadcast %169 : vector<1x24xf32> to vector<256x24xf32>
    %171 = arith.addf %166, %170 : vector<256x24xf32>
    %cst_40 = arith.constant 0.000000e+00 : f32
    %cst_41 = arith.constant 6.000000e+00 : f32
    %172 = vector.broadcast %cst_40 : f32 to vector<256x24xf32>
    %173 = arith.maximumf %172, %171 : vector<256x24xf32>
    %174 = vector.broadcast %cst_41 : f32 to vector<256x24xf32>
    %175 = arith.minimumf %174, %173 : vector<256x24xf32>
    %c0_42 = arith.constant 0 : index
    %c0_43 = arith.constant 0 : index
    %176 = vector.load %arg8[%c0_42, %c0_43] : memref<24x4xf32, #tpu.memory_space<vmem>>, vector<24x4xf32>
    %cst_44 = arith.constant dense<0.000000e+00> : vector<256x4xf32>
    %177 = tpu.matmul %175, %176, %cst_44 {dimension_numbers = #tpu.dot_dimension_numbers<[1], [0], [0], [1], [0, 0, 1, 1], [], []>} : vector<256x24xf32>, vector<24x4xf32>, vector<256x4xf32> -> vector<256x4xf32>
    %c0_45 = arith.constant 0 : index
    %c0_46 = arith.constant 0 : index
    %178 = vector.load %arg9[%c0_45, %c0_46] : memref<1x4xf32, #tpu.memory_space<vmem>>, vector<1x4xf32>
    %179 = vector.shape_cast %178 : vector<1x4xf32> to vector<4xf32>
    %180 = vector.shape_cast %179 : vector<4xf32> to vector<1x4xf32>
    %181 = vector.broadcast %180 : vector<1x4xf32> to vector<256x4xf32>
    %182 = arith.mulf %177, %181 : vector<256x4xf32>
    %c0_47 = arith.constant 0 : index
    %c0_48 = arith.constant 0 : index
    %183 = vector.load %arg10[%c0_47, %c0_48] : memref<1x4xf32, #tpu.memory_space<vmem>>, vector<1x4xf32>
    %184 = vector.shape_cast %183 : vector<1x4xf32> to vector<4xf32>
    %185 = vector.shape_cast %184 : vector<4xf32> to vector<1x4xf32>
    %186 = vector.broadcast %185 : vector<1x4xf32> to vector<256x4xf32>
    %187 = arith.addf %182, %186 : vector<256x4xf32>
    %188 = tpu.transpose %187, [1, 0] : vector<256x4xf32> -> vector<4x256xf32>
    %189 = arith.addf %188, %1 : vector<4x256xf32>
    %c0_49 = arith.constant 0 : index
    %c0_50 = arith.constant 0 : index
    %c0_51 = arith.constant 0 : index
    %190 = vector.load %arg11[%c0_49, %c0_50, %c0_51] : memref<1x4x256xf32, #tpu.memory_space<vmem>>, vector<1x4x256xf32>
    %191 = vector.shape_cast %190 : vector<1x4x256xf32> to vector<4x256xf32>
    %192 = vector.shape_cast %189 : vector<4x256xf32> to vector<1x4x256xf32>
    tpu.vector_store %arg11[%c0_49, %c0_50, %c0_51], %192 {strides = array<i32>} : memref<1x4x256xf32, #tpu.memory_space<vmem>>, vector<1x4x256xf32>,
    return
  }
  func.func @transform_0(%arg0: i32) -> (i32, i32, i32) {
    %c0_i32 = arith.constant 0 : i32
    %c0_i32_0 = arith.constant 0 : i32
    %c0_i32_1 = arith.constant 0 : i32
    return %arg0, %c0_i32, %c0_i32_0 : i32, i32, i32
  }
  func.func @transform_1(%arg0: i32) -> (i32, i32) {
    %c0_i32 = arith.constant 0 : i32
    %c0_i32_0 = arith.constant 0 : i32
    %c0_i32_1 = arith.constant 0 : i32
    return %c0_i32, %c0_i32_0 : i32, i32
  }
  func.func @transform_2(%arg0: i32) -> (i32, i32) {
    %c0_i32 = arith.constant 0 : i32
    %c0_i32_0 = arith.constant 0 : i32
    %c0_i32_1 = arith.constant 0 : i32
    return %c0_i32, %c0_i32_0 : i32, i32
  }
  func.func @transform_3(%arg0: i32) -> (i32, i32) {
    %c0_i32 = arith.constant 0 : i32
    %c0_i32_0 = arith.constant 0 : i32
    %c0_i32_1 = arith.constant 0 : i32
    return %c0_i32, %c0_i32_0 : i32, i32
  }
  func.func @transform_4(%arg0: i32) -> (i32, i32) {
    %c0_i32 = arith.constant 0 : i32
    %c0_i32_0 = arith.constant 0 : i32
    %c0_i32_1 = arith.constant 0 : i32
    return %c0_i32, %c0_i32_0 : i32, i32
  }
  func.func @transform_5(%arg0: i32) -> (i32, i32) {
    %c0_i32 = arith.constant 0 : i32
    %c0_i32_0 = arith.constant 0 : i32
    %c0_i32_1 = arith.constant 0 : i32
    return %c0_i32, %c0_i32_0 : i32, i32
  }
  func.func @transform_6(%arg0: i32) -> (i32, i32) {
    %c0_i32 = arith.constant 0 : i32
    %c0_i32_0 = arith.constant 0 : i32
    %c0_i32_1 = arith.constant 0 : i32
    return %c0_i32, %c0_i32_0 : i32, i32
  }
  func.func @transform_7(%arg0: i32) -> (i32, i32) {
    %c0_i32 = arith.constant 0 : i32
    %c0_i32_0 = arith.constant 0 : i32
    %c0_i32_1 = arith.constant 0 : i32
    return %c0_i32, %c0_i32_0 : i32, i32
  }
  func.func @transform_8(%arg0: i32) -> (i32, i32) {
    %c0_i32 = arith.constant 0 : i32
    %c0_i32_0 = arith.constant 0 : i32
    %c0_i32_1 = arith.constant 0 : i32
    return %c0_i32, %c0_i32_0 : i32, i32
  }
  func.func @transform_9(%arg0: i32) -> (i32, i32) {
    %c0_i32 = arith.constant 0 : i32
    %c0_i32_0 = arith.constant 0 : i32
    %c0_i32_1 = arith.constant 0 : i32
    return %c0_i32, %c0_i32_0 : i32, i32
  }
  func.func @transform_10(%arg0: i32) -> (i32, i32, i32) {
    %c0_i32 = arith.constant 0 : i32
    %c0_i32_0 = arith.constant 0 : i32
    %c0_i32_1 = arith.constant 0 : i32
    return %arg0, %c0_i32, %c0_i32_0 : i32, i32, i32
  }
}

</mosaic_0001>

<llo_original>
// kernel: base_block_forward.1
$region0: #{base_block_forward.1}
  #allocation0 [shape = 'u32[]', space=smem, size = 0x4, offset = 0x4, fixed_abs, tag = 'smem constant byte address 0x4 - core index']
  #allocation1 [shape = 'u32[72,128]{1,0:T(1,128)}', space=vmem, size = 0x9000, scoped, tag = 'internal scratch']
  #allocation2 [shape = 'f32[304,24]{1,0:T(8,128)}', space=vmem, size = 0x26000, scoped, tag = 'scratch operand']
  %s0 = inlined_call_operand.vmem [shape: f32[2,4,256], index: 0, kind: input, shape index: {}]
  %s1 = inlined_call_operand.vmem [shape: f32[4,24], index: 1, kind: input, shape index: {}]
  %s2 = inlined_call_operand.vmem [shape: f32[1,24], index: 2, kind: input, shape index: {}]
  %s3 = inlined_call_operand.vmem [shape: f32[1,24], index: 3, kind: input, shape index: {}]
  %s4 = inlined_call_operand.vmem [shape: f32[9,24], index: 4, kind: input, shape index: {}]
  %s5 = inlined_call_operand.vmem [shape: f32[1,24], index: 5, kind: input, shape index: {}]
  %s6 = inlined_call_operand.vmem [shape: f32[1,24], index: 6, kind: input, shape index: {}]
  %s7 = inlined_call_operand.vmem [shape: f32[24,4], index: 7, kind: input, shape index: {}]
  %s8 = inlined_call_operand.vmem [shape: f32[1,4], index: 8, kind: input, shape index: {}]
  %s9 = inlined_call_operand.vmem [shape: f32[1,4], index: 9, kind: input, shape index: {}]
  %s10 = inlined_call_operand.vmem [shape: f32[2,4,256], index: 10, kind: output, shape index: {}]
  %s11 = sld [smem:[#allocation0]]
  $region73: #{base_block_forward.1} parent=0
    _
  %s13 = ssub.s32 1, %s11
  %s14 = scalar_select 0, %s13, %s11
  loop: start=0, step=1, limit=4
  $region2: #{base_block_forward.1} parent=0 // loop_pre_header
    _
  $region3: #{base_block_forward.1} parent=0 // loop_header
    %s16 = sphi 0, %s20
    %p17 = scmp.ge.s32.totalorder %s16, 4
    %s26 = sphi 0, %s28
    %s29 = sphi 0, %s26
    %s30 = sphi 0, %s29
    %s46 = sphi 0, %s30
    %s50 = sphi 0, %s50
    %s52 = sphi 0, %s50
    %s53 = sphi 0, %s52
    %s67 = sphi 0, %s53
    %s71 = sphi 0, %s71
    %s73 = sphi 0, %s71
    %s74 = sphi 0, %s73
    %s88 = sphi 0, %s74
    %s92 = sphi 0, %s92
    %s94 = sphi 0, %s92
    %s95 = sphi 0, %s94
    %s109 = sphi 0, %s95
    %s113 = sphi 0, %s113
    %s115 = sphi 0, %s113
    %s116 = sphi 0, %s115
    %s130 = sphi 0, %s116
    %s134 = sphi 0, %s134
    %s136 = sphi 0, %s134
    %s137 = sphi 0, %s136
    %s151 = sphi 0, %s137
    %s155 = sphi 0, %s155
    %s157 = sphi 0, %s155
    %s158 = sphi 0, %s157
    %s172 = sphi 0, %s158
    %s176 = sphi 0, %s176
    %s178 = sphi 0, %s176
    %s179 = sphi 0, %s178
    %s193 = sphi 0, %s179
    %s197 = sphi 0, %s197
    %s199 = sphi 0, %s197
    %s200 = sphi 0, %s199
    %s214 = sphi 0, %s200
    %s218 = sphi 0, %s218
    %s220 = sphi 0, %s218
    %s221 = sphi 0, %s220
    %s235 = sphi 0, %s221
    %s241 = sphi 0, %s243
    %s244 = sphi 0, %s241
    %s245 = sphi 0, %s244
    %s261 = sphi 0, %s245
  $region4: #{base_block_forward.1} parent=0 // loop_header_branch
    %19 = sbr.rel (%p17) target = $region8
  $region5: #{base_block_forward.1} parent=0 // loop_body
    %s21 = ssub.s32 %s16, 1
    %s22 = ssub.s32 %s16, 2
    %s23 = sadd.s32 %s16, 1
    %s24 = ssub.s32 %s16, %s23
    %p25 = scmp.eq.s32.totalorder %s24, 0
    %s27 = sadd.s32 %s26, 1
    %s28 = scalar_select %p25, %s26, %s27
    %p31 = pneg %p25
    %p32 = scmp.eq.s32.totalorder %s16, 1
    %p33 = por %p31, %p32
    %p34 = scmp.ne.s32.totalorder %s26, %s29
    %p35 = scmp.eq.s32.totalorder %s16, 0
    %p36 = por %p34, %p35
    %p37 = scmp.ne.s32.totalorder %s26, %s29
    %p38 = scmp.eq.s32.totalorder %s21, 1
    %p39 = por %p37, %p38
    %p40 = scmp.ne.s32.totalorder %s29, %s30
    %p41 = scmp.eq.s32.totalorder %s21, 0
    %p42 = por %p40, %p41
    %p43 = scmp.ne.s32.totalorder %s29, %s30
    %p44 = scmp.eq.s32.totalorder %s22, 1
    %p45 = por %p43, %p44
    %p47 = scmp.ne.s32.totalorder %s30, %s46
    %p48 = scmp.eq.s32.totalorder %s22, 0
    %p49 = por %p47, %p48
    %s51 = sadd.s32 %s50, 1
    %p54 = scmp.eq.s32.totalorder %s16, 1
    %p55 = scmp.ne.s32.totalorder %s50, %s52
    %p56 = scmp.eq.s32.totalorder %s16, 0
    %p57 = por %p55, %p56
    %p58 = scmp.ne.s32.totalorder %s50, %s52
    %p59 = scmp.eq.s32.totalorder %s21, 1
    %p60 = por %p58, %p59
    %p61 = scmp.ne.s32.totalorder %s52, %s53
    %p62 = scmp.eq.s32.totalorder %s21, 0
    %p63 = por %p61, %p62
    %p64 = scmp.ne.s32.totalorder %s52, %s53
    %p65 = scmp.eq.s32.totalorder %s22, 1
    %p66 = por %p64, %p65
    %p68 = scmp.ne.s32.totalorder %s53, %s67
    %p69 = scmp.eq.s32.totalorder %s22, 0
    %p70 = por %p68, %p69
    %s72 = sadd.s32 %s71, 1
    %p75 = scmp.eq.s32.totalorder %s16, 1
    %p76 = scmp.ne.s32.totalorder %s71, %s73
    %p77 = scmp.eq.s32.totalorder %s16, 0
    %p78 = por %p76, %p77
    %p79 = scmp.ne.s32.totalorder %s71, %s73
    %p80 = scmp.eq.s32.totalorder %s21, 1
    %p81 = por %p79, %p80
    %p82 = scmp.ne.s32.totalorder %s73, %s74
    %p83 = scmp.eq.s32.totalorder %s21, 0
    %p84 = por %p82, %p83
    %p85 = scmp.ne.s32.totalorder %s73, %s74
    %p86 = scmp.eq.s32.totalorder %s22, 1
    %p87 = por %p85, %p86
    %p89 = scmp.ne.s32.totalorder %s74, %s88
    %p90 = scmp.eq.s32.totalorder %s22, 0
    %p91 = por %p89, %p90
    %s93 = sadd.s32 %s92, 1
    %p96 = scmp.eq.s32.totalorder %s16, 1
    %p97 = scmp.ne.s32.totalorder %s92, %s94
    %p98 = scmp.eq.s32.totalorder %s16, 0
    %p99 = por %p97, %p98
    %p100 = scmp.ne.s32.totalorder %s92, %s94
    %p101 = scmp.eq.s32.totalorder %s21, 1
    %p102 = por %p100, %p101
    %p103 = scmp.ne.s32.totalorder %s94, %s95
    %p104 = scmp.eq.s32.totalorder %s21, 0
    %p105 = por %p103, %p104
    %p106 = scmp.ne.s32.totalorder %s94, %s95
    %p107 = scmp.eq.s32.totalorder %s22, 1
    %p108 = por %p106, %p107
    %p110 = scmp.ne.s32.totalorder %s95, %s109
    %p111 = scmp.eq.s32.totalorder %s22, 0
    %p112 = por %p110, %p111
    %s114 = sadd.s32 %s113, 1
    %p117 = scmp.eq.s32.totalorder %s16, 1
    %p118 = scmp.ne.s32.totalorder %s113, %s115
    %p119 = scmp.eq.s32.totalorder %s16, 0
    %p120 = por %p118, %p119
    %p121 = scmp.ne.s32.totalorder %s113, %s115
    %p122 = scmp.eq.s32.totalorder %s21, 1
    %p123 = por %p121, %p122
    %p124 = scmp.ne.s32.totalorder %s115, %s116
    %p125 = scmp.eq.s32.totalorder %s21, 0
    %p126 = por %p124, %p125
    %p127 = scmp.ne.s32.totalorder %s115, %s116
    %p128 = scmp.eq.s32.totalorder %s22, 1
    %p129 = por %p127, %p128
    %p131 = scmp.ne.s32.totalorder %s116, %s130
    %p132 = scmp.eq.s32.totalorder %s22, 0
    %p133 = por %p131, %p132
    %s135 = sadd.s32 %s134, 1
    %p138 = scmp.eq.s32.totalorder %s16, 1
    %p139 = scmp.ne.s32.totalorder %s134, %s136
    %p140 = scmp.eq.s32.totalorder %s16, 0
    %p141 = por %p139, %p140
    %p142 = scmp.ne.s32.totalorder %s134, %s136
    %p143 = scmp.eq.s32.totalorder %s21, 1
    %p144 = por %p142, %p143
    %p145 = scmp.ne.s32.totalorder %s136, %s137
    %p146 = scmp.eq.s32.totalorder %s21, 0
    %p147 = por %p145, %p146
    %p148 = scmp.ne.s32.totalorder %s136, %s137
    %p149 = scmp.eq.s32.totalorder %s22, 1
    %p150 = por %p148, %p149
    %p152 = scmp.ne.s32.totalorder %s137, %s151
    %p153 = scmp.eq.s32.totalorder %s22, 0
    %p154 = por %p152, %p153
    %s156 = sadd.s32 %s155, 1
    %p159 = scmp.eq.s32.totalorder %s16, 1
    %p160 = scmp.ne.s32.totalorder %s155, %s157
    %p161 = scmp.eq.s32.totalorder %s16, 0
    %p162 = por %p160, %p161
    %p163 = scmp.ne.s32.totalorder %s155, %s157
    %p164 = scmp.eq.s32.totalorder %s21, 1
    %p165 = por %p163, %p164
    %p166 = scmp.ne.s32.totalorder %s157, %s158
    %p167 = scmp.eq.s32.totalorder %s21, 0
    %p168 = por %p166, %p167
    %p169 = scmp.ne.s32.totalorder %s157, %s158
    %p170 = scmp.eq.s32.totalorder %s22, 1
    %p171 = por %p169, %p170
    %p173 = scmp.ne.s32.totalorder %s158, %s172
    %p174 = scmp.eq.s32.totalorder %s22, 0
    %p175 = por %p173, %p174
    %s177 = sadd.s32 %s176, 1
    %p180 = scmp.eq.s32.totalorder %s16, 1
    %p181 = scmp.ne.s32.totalorder %s176, %s178
    %p182 = scmp.eq.s32.totalorder %s16, 0
    %p183 = por %p181, %p182
    %p184 = scmp.ne.s32.totalorder %s176, %s178
    %p185 = scmp.eq.s32.totalorder %s21, 1
    %p186 = por %p184, %p185
    %p187 = scmp.ne.s32.totalorder %s178, %s179
    %p188 = scmp.eq.s32.totalorder %s21, 0
    %p189 = por %p187, %p188
    %p190 = scmp.ne.s32.totalorder %s178, %s179
    %p191 = scmp.eq.s32.totalorder %s22, 1
    %p192 = por %p190, %p191
    %p194 = scmp.ne.s32.totalorder %s179, %s193
    %p195 = scmp.eq.s32.totalorder %s22, 0
    %p196 = por %p194, %p195
    %s198 = sadd.s32 %s197, 1
    %p201 = scmp.eq.s32.totalorder %s16, 1
    %p202 = scmp.ne.s32.totalorder %s197, %s199
    %p203 = scmp.eq.s32.totalorder %s16, 0
    %p204 = por %p202, %p203
    %p205 = scmp.ne.s32.totalorder %s197, %s199
    %p206 = scmp.eq.s32.totalorder %s21, 1
    %p207 = por %p205, %p206
    %p208 = scmp.ne.s32.totalorder %s199, %s200
    %p209 = scmp.eq.s32.totalorder %s21, 0
    %p210 = por %p208, %p209
    %p211 = scmp.ne.s32.totalorder %s199, %s200
    %p212 = scmp.eq.s32.totalorder %s22, 1
    %p213 = por %p211, %p212
    %p215 = scmp.ne.s32.totalorder %s200, %s214
    %p216 = scmp.eq.s32.totalorder %s22, 0
    %p217 = por %p215, %p216
    %s219 = sadd.s32 %s218, 1
    %p222 = scmp.eq.s32.totalorder %s16, 1
    %p223 = scmp.ne.s32.totalorder %s218, %s220
    %p224 = scmp.eq.s32.totalorder %s16, 0
    %p225 = por %p223, %p224
    %p226 = scmp.ne.s32.totalorder %s218, %s220
    %p227 = scmp.eq.s32.totalorder %s21, 1
    %p228 = por %p226, %p227
    %p229 = scmp.ne.s32.totalorder %s220, %s221
    %p230 = scmp.eq.s32.totalorder %s21, 0
    %p231 = por %p229, %p230
    %p232 = scmp.ne.s32.totalorder %s220, %s221
    %p233 = scmp.eq.s32.totalorder %s22, 1
    %p234 = por %p232, %p233
    %p236 = scmp.ne.s32.totalorder %s221, %s235
    %p237 = scmp.eq.s32.totalorder %s22, 0
    %p238 = por %p236, %p237
    %s239 = ssub.s32 %s16, %s23
    %p240 = scmp.eq.s32.totalorder %s239, 0
    %s242 = sadd.s32 %s241, 1
    %s243 = scalar_select %p240, %s241, %s242
    %p246 = pneg %p240
    %p247 = scmp.eq.s32.totalorder %s16, 1
    %p248 = por %p246, %p247
    %p249 = scmp.ne.s32.totalorder %s241, %s244
    %p250 = scmp.eq.s32.totalorder %s16, 0
    %p251 = por %p249, %p250
    %p252 = scmp.ne.s32.totalorder %s241, %s244
    %p253 = scmp.eq.s32.totalorder %s21, 1
    %p254 = por %p252, %p253
    %p255 = scmp.ne.s32.totalorder %s244, %s245
    %p256 = scmp.eq.s32.totalorder %s21, 0
    %p257 = por %p255, %p256
    %p258 = scmp.ne.s32.totalorder %s244, %s245
    %p259 = scmp.eq.s32.totalorder %s22, 1
    %p260 = por %p258, %p259
    %p262 = scmp.ne.s32.totalorder %s245, %s261
    %p263 = scmp.eq.s32.totalorder %s22, 0
    %p264 = por %p262, %p263
    %p265 = scmp.le.s32.totalorder 1, %s16
    %p266 = scmp.lt.s32.totalorder %s16, 3
    %p267 = pnand %p265, %p266
    %p268 = pneg %p267
    // Predicated region
    $region9: #{base_block_forward.1} parent=5 // pred_check
      _
    $region10: #{base_block_forward.1} parent=5 // pred_check_branch
      %270 = sbr.rel (%p267) target = $region12
    $region11: #{base_block_forward.1} parent=5 // pred_region
      %s271 = ssub.s32 %s16, 1
      // Predicated region
      $region13: #{base_block_forward.1} parent=11 // pred_check
        %p272 = pneg %p63
      $region14: #{base_block_forward.1} parent=11 // pred_check_branch
        %274 = sbr.rel (%p272) target = $region16
      $region15: #{base_block_forward.1} parent=11 // pred_region
        _
      $region16: #{base_block_forward.1} parent=11 // pred_fallthru
        _
      // Predicated region
      $region17: #{base_block_forward.1} parent=11 // pred_check
        %p275 = pneg %p84
      $region18: #{base_block_forward.1} parent=11 // pred_check_branch
        %277 = sbr.rel (%p275) target = $region20
      $region19: #{base_block_forward.1} parent=11 // pred_region
        _
      $region20: #{base_block_forward.1} parent=11 // pred_fallthru
        _
      // Predicated region
      $region21: #{base_block_forward.1} parent=11 // pred_check
        %p278 = pneg %p105
      $region22: #{base_block_forward.1} parent=11 // pred_check_branch
        %280 = sbr.rel (%p278) target = $region24
      $region23: #{base_block_forward.1} parent=11 // pred_region
        _
      $region24: #{base_block_forward.1} parent=11 // pred_fallthru
        _
      // Predicated region
      $region25: #{base_block_forward.1} parent=11 // pred_check
        %p281 = pneg %p126
      $region26: #{base_block_forward.1} parent=11 // pred_check_branch
        %283 = sbr.rel (%p281) target = $region28
      $region27: #{base_block_forward.1} parent=11 // pred_region
        _
      $region28: #{base_block_forward.1} parent=11 // pred_fallthru
        _
      // Predicated region
      $region29: #{base_block_forward.1} parent=11 // pred_check
        %p284 = pneg %p147
      $region30: #{base_block_forward.1} parent=11 // pred_check_branch
        %286 = sbr.rel (%p284) target = $region32
      $region31: #{base_block_forward.1} parent=11 // pred_region
        _
      $region32: #{base_block_forward.1} parent=11 // pred_fallthru
        _
      // Predicated region
      $region33: #{base_block_forward.1} parent=11 // pred_check
        %p287 = pneg %p168
      $region34: #{base_block_forward.1} parent=11 // pred_check_branch
        %289 = sbr.rel (%p287) target = $region36
      $region35: #{base_block_forward.1} parent=11 // pred_region
        _
      $region36: #{base_block_forward.1} parent=11 // pred_fallthru
        _
      // Predicated region
      $region37: #{base_block_forward.1} parent=11 // pred_check
        %p290 = pneg %p189
      $region38: #{base_block_forward.1} parent=11 // pred_check_branch
        %292 = sbr.rel (%p290) target = $region40
      $region39: #{base_block_forward.1} parent=11 // pred_region
        _
      $region40: #{base_block_forward.1} parent=11 // pred_fallthru
        _
      // Predicated region
      $region41: #{base_block_forward.1} parent=11 // pred_check
        %p293 = pneg %p210
      $region42: #{base_block_forward.1} parent=11 // pred_check_branch
        %295 = sbr.rel (%p293) target = $region44
      $region43: #{base_block_forward.1} parent=11 // pred_region
        _
      $region44: #{base_block_forward.1} parent=11 // pred_fallthru
        _
      // Predicated region
      $region45: #{base_block_forward.1} parent=11 // pred_check
        %p296 = pneg %p231
      $region46: #{base_block_forward.1} parent=11 // pred_check_branch
        %298 = sbr.rel (%p296) target = $region48
      $region47: #{base_block_forward.1} parent=11 // pred_region
        _
      $region48: #{base_block_forward.1} parent=11 // pred_fallthru
        _
    $region12: #{base_block_forward.1} parent=5 // pred_fallthru
      _
    %p299 = scmp.lt.s32.totalorder %s16, 2
    // Predicated region
    $region49: #{base_block_forward.1} parent=5 // pred_check
      %p300 = pneg %p299
    $region50: #{base_block_forward.1} parent=5 // pred_check_branch
      %302 = sbr.rel (%p300) target = $region52
    $region51: #{base_block_forward.1} parent=5 // pred_region
      // Predicated region
      $region53: #{base_block_forward.1} parent=51 // pred_check
        %p303 = pneg %p36
      $region54: #{base_block_forward.1} parent=51 // pred_check_branch
        %305 = sbr.rel (%p303) target = $region56
      $region55: #{base_block_forward.1} parent=51 // pred_region
        %p306 = scmp.lt.s32.totalorder %s16, 1
        %s307 = scalar_select %p306, %s16, 1
        %s308 = smul.addr %s307, 2
        %s309 = smul.addr %s308, 4
        %s310 = scalar_lea.vmem %s0, %s309
      $region56: #{base_block_forward.1} parent=51 // pred_fallthru
        _
    $region52: #{base_block_forward.1} parent=5 // pred_fallthru
      _
    %p311 = scmp.le.s32.totalorder 1, %s16
    %p312 = scmp.lt.s32.totalorder %s16, 3
    %p313 = pnand %p311, %p312
    %p314 = pneg %p313
    // Predicated region
    $region57: #{base_block_forward.1} parent=5 // pred_check
      _
    $region58: #{base_block_forward.1} parent=5 // pred_check_branch
      %316 = sbr.rel (%p313) target = $region60
    $region59: #{base_block_forward.1} parent=5 // pred_region
      %s317 = ssub.s32 %s16, 1
      %p318 = scmp.lt.s32.totalorder %s21, 1
      %s319 = scalar_select %p318, %s21, 1
      %s320 = smul.addr %s319, 2
      %s321 = smul.addr %s320, 4
      %s322 = scalar_lea.vmem %s0, %s321
      %p323 = pneg %p42
      %p324 = pneg %p39
      %p325 = pneg %p63
      %p326 = pneg %p60
      %p327 = pneg %p84
      %p328 = pneg %p81
      %p329 = pneg %p105
      %p330 = pneg %p102
      %p331 = pneg %p126
      %p332 = pneg %p123
      %p333 = pneg %p147
      %p334 = pneg %p144
      %p335 = pneg %p168
      %p336 = pneg %p165
      %p337 = pneg %p189
      %p338 = pneg %p186
      %p339 = pneg %p210
      %p340 = pneg %p207
      %p341 = pneg %p231
      %p342 = pneg %p228
      %p343 = pneg %p257
      %p344 = pneg %p254
      %p345 = scmp.lt.s32.totalorder %s21, 1
      %s346 = scalar_select %p345, %s21, 1
      %s347 = smul.addr %s346, 2
      %s348 = smul.addr %s347, 4
      %s349 = scalar_lea.vmem %s10, %s348
      %p350 = scmp.lt.s32.totalorder %s21, 1
      %s351 = scalar_select %p350, %s21, 1
      %s352 = smul.addr %s351, 2
      %s353 = smul.addr %s352, 4
      %s354 = scalar_lea.vmem %s0, %s353
      %p355 = scmp.lt.s32.totalorder %s21, 1
      %s356 = scalar_select %p355, %s21, 1
      %s357 = smul.addr %s356, 2
      %s358 = smul.addr %s357, 4
      %s359 = scalar_lea.vmem %s10, %s358
      %v360 = vld [vmem:[%s354] sm:$0xff]
      %362 = vst [vmem:[#allocation1] ss:$2 sm:$0xff] %v360
      %v363 = vld.sshfl [vmem:[#allocation1] sm:$0xff pattern:$0x75316420]
      %v364 = vld.sshfl [vmem:[#allocation1 + $0x8] sm:$0xff pattern:$0x75316420]
      %367 = vxpose.xlu0.b32.start [1/16] %v363, 128
      %368 = vxpose.xlu0.b32.cont [2/16] 0.0, 128
      %369 = vxpose.xlu0.b32.cont [3/16] 0.0, 128
      %370 = vxpose.xlu0.b32.cont [4/16] 0.0, 128
      %371 = vxpose.xlu0.b32.cont [5/16] 0.0, 128
      %372 = vxpose.xlu0.b32.cont [6/16] 0.0, 128
      %373 = vxpose.xlu0.b32.cont [7/16] 0.0, 128
      %374 = vxpose.xlu0.b32.cont [8/16] 0.0, 128
      %375 = vxpose.xlu0.b32.cont [9/16] 0.0, 128
      %376 = vxpose.xlu0.b32.cont [10/16] 0.0, 128
      %377 = vxpose.xlu0.b32.cont [11/16] 0.0, 128
      %378 = vxpose.xlu0.b32.cont [12/16] 0.0, 128
      %379 = vxpose.xlu0.b32.cont [13/16] 0.0, 128
      %380 = vxpose.xlu0.b32.cont [14/16] 0.0, 128
      %381 = vxpose.xlu0.b32.cont [15/16] 0.0, 128
      %382 = vxpose.xlu0.b32.end [16/16] 0.0, 128
      %v383 = vpop.trf.xlu0
      %v384 = vpop.trf.xlu0
      %v385 = vpop.trf.xlu0
      %v386 = vpop.trf.xlu0
      %v387 = vpop.trf.xlu0
      %v388 = vpop.trf.xlu0
      %v389 = vpop.trf.xlu0
      %v390 = vpop.trf.xlu0
      %v391 = vpop.trf.xlu0
      %v392 = vpop.trf.xlu0
      %v393 = vpop.trf.xlu0
      %v394 = vpop.trf.xlu0
      %v395 = vpop.trf.xlu0
      %v396 = vpop.trf.xlu0
      %v397 = vpop.trf.xlu0
      %v398 = vpop.trf.xlu0
      %399 = vxpose.xlu0.b32.start [1/16] %v364, 128
      %400 = vxpose.xlu0.b32.cont [2/16] 0.0, 128
      %401 = vxpose.xlu0.b32.cont [3/16] 0.0, 128
      %402 = vxpose.xlu0.b32.cont [4/16] 0.0, 128
      %403 = vxpose.xlu0.b32.cont [5/16] 0.0, 128
      %404 = vxpose.xlu0.b32.cont [6/16] 0.0, 128
      %405 = vxpose.xlu0.b32.cont [7/16] 0.0, 128
      %406 = vxpose.xlu0.b32.cont [8/16] 0.0, 128
      %407 = vxpose.xlu0.b32.cont [9/16] 0.0, 128
      %408 = vxpose.xlu0.b32.cont [10/16] 0.0, 128
      %409 = vxpose.xlu0.b32.cont [11/16] 0.0, 128
      %410 = vxpose.xlu0.b32.cont [12/16] 0.0, 128
      %411 = vxpose.xlu0.b32.cont [13/16] 0.0, 128
      %412 = vxpose.xlu0.b32.cont [14/16] 0.0, 128
      %413 = vxpose.xlu0.b32.cont [15/16] 0.0, 128
      %414 = vxpose.xlu0.b32.end [16/16] 0.0, 128
      %v415 = vpop.trf.xlu0
      %v416 = vpop.trf.xlu0
      %v417 = vpop.trf.xlu0
      %v418 = vpop.trf.xlu0
      %v419 = vpop.trf.xlu0
      %v420 = vpop.trf.xlu0
      %v421 = vpop.trf.xlu0
      %v422 = vpop.trf.xlu0
      %v423 = vpop.trf.xlu0
      %v424 = vpop.trf.xlu0
      %v425 = vpop.trf.xlu0
      %v426 = vpop.trf.xlu0
      %v427 = vpop.trf.xlu0
      %v428 = vpop.trf.xlu0
      %v429 = vpop.trf.xlu0
      %v430 = vpop.trf.xlu0
      %v431 = vld [vmem:[%s1] sm:$0xf]
      %433 = vset.pattern.permute.xlu0 0
      %434 = vperm.xlu0 %433, %v383
      %v435 = vpop.permute.xlu0 %434
      %438 = vset.pattern.permute.xlu0 0
      %439 = vperm.xlu0 %438, %v384
      %v440 = vpop.permute.xlu0 %439
      %443 = vset.pattern.permute.xlu0 0
      %444 = vperm.xlu0 %443, %v385
      %v445 = vpop.permute.xlu0 %444
      %448 = vset.pattern.permute.xlu0 0
      %449 = vperm.xlu0 %448, %v386
      %v450 = vpop.permute.xlu0 %449
      %453 = vset.pattern.permute.xlu0 0
      %454 = vperm.xlu0 %453, %v387
      %v455 = vpop.permute.xlu0 %454
      %458 = vset.pattern.permute.xlu0 0
      %459 = vperm.xlu0 %458, %v388
      %v460 = vpop.permute.xlu0 %459
      %463 = vset.pattern.permute.xlu0 0
      %464 = vperm.xlu0 %463, %v389
      %v465 = vpop.permute.xlu0 %464
      %468 = vset.pattern.permute.xlu0 0
      %469 = vperm.xlu0 %468, %v390
      %v470 = vpop.permute.xlu0 %469
      %473 = vset.pattern.permute.xlu0 0
      %474 = vperm.xlu0 %473, %v391
      %v475 = vpop.permute.xlu0 %474
      %478 = vset.pattern.permute.xlu0 0
      %479 = vperm.xlu0 %478, %v392
      %v480 = vpop.permute.xlu0 %479
      %483 = vset.pattern.permute.xlu0 0
      %484 = vperm.xlu0 %483, %v393
      %v485 = vpop.permute.xlu0 %484
      %488 = vset.pattern.permute.xlu0 0
      %489 = vperm.xlu0 %488, %v394
      %v490 = vpop.permute.xlu0 %489
      %493 = vset.pattern.permute.xlu0 0
      %494 = vperm.xlu0 %493, %v395
      %v495 = vpop.permute.xlu0 %494
      %498 = vset.pattern.permute.xlu0 0
      %499 = vperm.xlu0 %498, %v396
      %v500 = vpop.permute.xlu0 %499
      %503 = vset.pattern.permute.xlu0 0
      %504 = vperm.xlu0 %503, %v397
      %v505 = vpop.permute.xlu0 %504
      %508 = vset.pattern.permute.xlu0 0
      %509 = vperm.xlu0 %508, %v398
      %v510 = vpop.permute.xlu0 %509
      %513 = vset.pattern.permute.xlu0 0
      %514 = vperm.xlu0 %513, %v415
      %v515 = vpop.permute.xlu0 %514
      %518 = vset.pattern.permute.xlu0 0
      %519 = vperm.xlu0 %518, %v416
      %v520 = vpop.permute.xlu0 %519
      %523 = vset.pattern.permute.xlu0 0
      %524 = vperm.xlu0 %523, %v417
      %v525 = vpop.permute.xlu0 %524
      %528 = vset.pattern.permute.xlu0 0
      %529 = vperm.xlu0 %528, %v418
      %v530 = vpop.permute.xlu0 %529
      %533 = vset.pattern.permute.xlu0 0
      %534 = vperm.xlu0 %533, %v419
      %v535 = vpop.permute.xlu0 %534
      %538 = vset.pattern.permute.xlu0 0
      %539 = vperm.xlu0 %538, %v420
      %v540 = vpop.permute.xlu0 %539
      %543 = vset.pattern.permute.xlu0 0
      %544 = vperm.xlu0 %543, %v421
      %v545 = vpop.permute.xlu0 %544
      %548 = vset.pattern.permute.xlu0 0
      %549 = vperm.xlu0 %548, %v422
      %v550 = vpop.permute.xlu0 %549
      %553 = vset.pattern.permute.xlu0 0
      %554 = vperm.xlu0 %553, %v423
      %v555 = vpop.permute.xlu0 %554
      %558 = vset.pattern.permute.xlu0 0
      %559 = vperm.xlu0 %558, %v424
      %v560 = vpop.permute.xlu0 %559
      %563 = vset.pattern.permute.xlu0 0
      %564 = vperm.xlu0 %563, %v425
      %v565 = vpop.permute.xlu0 %564
      %568 = vset.pattern.permute.xlu0 0
      %569 = vperm.xlu0 %568, %v426
      %v570 = vpop.permute.xlu0 %569
      %573 = vset.pattern.permute.xlu0 0
      %574 = vperm.xlu0 %573, %v427
      %v575 = vpop.permute.xlu0 %574
      %578 = vset.pattern.permute.xlu0 0
      %579 = vperm.xlu0 %578, %v428
      %v580 = vpop.permute.xlu0 %579
      %583 = vset.pattern.permute.xlu0 0
      %584 = vperm.xlu0 %583, %v429
      %v585 = vpop.permute.xlu0 %584
      %588 = vset.pattern.permute.xlu0 0
      %589 = vperm.xlu0 %588, %v430
      %v590 = vpop.permute.xlu0 %589
      %v592 = vperm.slane %v431, 0
      %v593 = vmul.f32 %v435, %v592
      %v594 = vmul.f32 %v440, %v592
      %v595 = vmul.f32 %v445, %v592
      %v596 = vmul.f32 %v450, %v592
      %v597 = vmul.f32 %v455, %v592
      %v598 = vmul.f32 %v460, %v592
      %v599 = vmul.f32 %v465, %v592
      %v600 = vmul.f32 %v470, %v592
      %v601 = vmul.f32 %v475, %v592
      %v602 = vmul.f32 %v480, %v592
      %v603 = vmul.f32 %v485, %v592
      %v604 = vmul.f32 %v490, %v592
      %v605 = vmul.f32 %v495, %v592
      %v606 = vmul.f32 %v500, %v592
      %v607 = vmul.f32 %v505, %v592
      %v608 = vmul.f32 %v510, %v592
      %v609 = vmul.f32 %v515, %v592
      %v610 = vmul.f32 %v520, %v592
      %v611 = vmul.f32 %v525, %v592
      %v612 = vmul.f32 %v530, %v592
      %v613 = vmul.f32 %v535, %v592
      %v614 = vmul.f32 %v540, %v592
      %v615 = vmul.f32 %v545, %v592
      %v616 = vmul.f32 %v550, %v592
      %v617 = vmul.f32 %v555, %v592
      %v618 = vmul.f32 %v560, %v592
      %v619 = vmul.f32 %v565, %v592
      %v620 = vmul.f32 %v570, %v592
      %v621 = vmul.f32 %v575, %v592
      %v622 = vmul.f32 %v580, %v592
      %v623 = vmul.f32 %v585, %v592
      %v624 = vmul.f32 %v590, %v592
      %625 = vset.pattern.permute.xlu0 1
      %626 = vperm.xlu0 %625, %v383
      %v627 = vpop.permute.xlu0 %626
      %629 = vset.pattern.permute.xlu0 1
      %630 = vperm.xlu0 %629, %v384
      %v631 = vpop.permute.xlu0 %630
      %633 = vset.pattern.permute.xlu0 1
      %634 = vperm.xlu0 %633, %v385
      %v635 = vpop.permute.xlu0 %634
      %637 = vset.pattern.permute.xlu0 1
      %638 = vperm.xlu0 %637, %v386
      %v639 = vpop.permute.xlu0 %638
      %641 = vset.pattern.permute.xlu0 1
      %642 = vperm.xlu0 %641, %v387
      %v643 = vpop.permute.xlu0 %642
      %645 = vset.pattern.permute.xlu0 1
      %646 = vperm.xlu0 %645, %v388
      %v647 = vpop.permute.xlu0 %646
      %649 = vset.pattern.permute.xlu0 1
      %650 = vperm.xlu0 %649, %v389
      %v651 = vpop.permute.xlu0 %650
      %653 = vset.pattern.permute.xlu0 1
      %654 = vperm.xlu0 %653, %v390
      %v655 = vpop.permute.xlu0 %654
      %657 = vset.pattern.permute.xlu0 1
      %658 = vperm.xlu0 %657, %v391
      %v659 = vpop.permute.xlu0 %658
      %661 = vset.pattern.permute.xlu0 1
      %662 = vperm.xlu0 %661, %v392
      %v663 = vpop.permute.xlu0 %662
      %665 = vset.pattern.permute.xlu0 1
      %666 = vperm.xlu0 %665, %v393
      %v667 = vpop.permute.xlu0 %666
      %669 = vset.pattern.permute.xlu0 1
      %670 = vperm.xlu0 %669, %v394
      %v671 = vpop.permute.xlu0 %670
      %673 = vset.pattern.permute.xlu0 1
      %674 = vperm.xlu0 %673, %v395
      %v675 = vpop.permute.xlu0 %674
      %677 = vset.pattern.permute.xlu0 1
      %678 = vperm.xlu0 %677, %v396
      %v679 = vpop.permute.xlu0 %678
      %681 = vset.pattern.permute.xlu0 1
      %682 = vperm.xlu0 %681, %v397
      %v683 = vpop.permute.xlu0 %682
      %685 = vset.pattern.permute.xlu0 1
      %686 = vperm.xlu0 %685, %v398
      %v687 = vpop.permute.xlu0 %686
      %689 = vset.pattern.permute.xlu0 1
      %690 = vperm.xlu0 %689, %v415
      %v691 = vpop.permute.xlu0 %690
      %693 = vset.pattern.permute.xlu0 1
      %694 = vperm.xlu0 %693, %v416
      %v695 = vpop.permute.xlu0 %694
      %697 = vset.pattern.permute.xlu0 1
      %698 = vperm.xlu0 %697, %v417
      %v699 = vpop.permute.xlu0 %698
      %701 = vset.pattern.permute.xlu0 1
      %702 = vperm.xlu0 %701, %v418
      %v703 = vpop.permute.xlu0 %702
      %705 = vset.pattern.permute.xlu0 1
      %706 = vperm.xlu0 %705, %v419
      %v707 = vpop.permute.xlu0 %706
      %709 = vset.pattern.permute.xlu0 1
      %710 = vperm.xlu0 %709, %v420
      %v711 = vpop.permute.xlu0 %710
      %713 = vset.pattern.permute.xlu0 1
      %714 = vperm.xlu0 %713, %v421
      %v715 = vpop.permute.xlu0 %714
      %717 = vset.pattern.permute.xlu0 1
      %718 = vperm.xlu0 %717, %v422
      %v719 = vpop.permute.xlu0 %718
      %721 = vset.pattern.permute.xlu0 1
      %722 = vperm.xlu0 %721, %v423
      %v723 = vpop.permute.xlu0 %722
      %725 = vset.pattern.permute.xlu0 1
      %726 = vperm.xlu0 %725, %v424
      %v727 = vpop.permute.xlu0 %726
      %729 = vset.pattern.permute.xlu0 1
      %730 = vperm.xlu0 %729, %v425
      %v731 = vpop.permute.xlu0 %730
      %733 = vset.pattern.permute.xlu0 1
      %734 = vperm.xlu0 %733, %v426
      %v735 = vpop.permute.xlu0 %734
      %737 = vset.pattern.permute.xlu0 1
      %738 = vperm.xlu0 %737, %v427
      %v739 = vpop.permute.xlu0 %738
      %741 = vset.pattern.permute.xlu0 1
      %742 = vperm.xlu0 %741, %v428
      %v743 = vpop.permute.xlu0 %742
      %745 = vset.pattern.permute.xlu0 1
      %746 = vperm.xlu0 %745, %v429
      %v747 = vpop.permute.xlu0 %746
      %749 = vset.pattern.permute.xlu0 1
      %750 = vperm.xlu0 %749, %v430
      %v751 = vpop.permute.xlu0 %750
      %v753 = vperm.slane %v431, 1
      %v754 = vmul.f32 %v627, %v753
      %v755 = vmul.f32 %v631, %v753
      %v756 = vmul.f32 %v635, %v753
      %v757 = vmul.f32 %v639, %v753
      %v758 = vmul.f32 %v643, %v753
      %v759 = vmul.f32 %v647, %v753
      %v760 = vmul.f32 %v651, %v753
      %v761 = vmul.f32 %v655, %v753
      %v762 = vmul.f32 %v659, %v753
      %v763 = vmul.f32 %v663, %v753
      %v764 = vmul.f32 %v667, %v753
      %v765 = vmul.f32 %v671, %v753
      %v766 = vmul.f32 %v675, %v753
      %v767 = vmul.f32 %v679, %v753
      %v768 = vmul.f32 %v683, %v753
      %v769 = vmul.f32 %v687, %v753
      %v770 = vmul.f32 %v691, %v753
      %v771 = vmul.f32 %v695, %v753
      %v772 = vmul.f32 %v699, %v753
      %v773 = vmul.f32 %v703, %v753
      %v774 = vmul.f32 %v707, %v753
      %v775 = vmul.f32 %v711, %v753
      %v776 = vmul.f32 %v715, %v753
      %v777 = vmul.f32 %v719, %v753
      %v778 = vmul.f32 %v723, %v753
      %v779 = vmul.f32 %v727, %v753
      %v780 = vmul.f32 %v731, %v753
      %v781 = vmul.f32 %v735, %v753
      %v782 = vmul.f32 %v739, %v753
      %v783 = vmul.f32 %v743, %v753
      %v784 = vmul.f32 %v747, %v753
      %v785 = vmul.f32 %v751, %v753
      %v786 = vadd.f32 %v593, %v754
      %v787 = vadd.f32 %v594, %v755
      %v788 = vadd.f32 %v595, %v756
      %v789 = vadd.f32 %v596, %v757
      %v790 = vadd.f32 %v597, %v758
      %v791 = vadd.f32 %v598, %v759
      %v792 = vadd.f32 %v599, %v760
      %v793 = vadd.f32 %v600, %v761
      %v794 = vadd.f32 %v601, %v762
      %v795 = vadd.f32 %v602, %v763
      %v796 = vadd.f32 %v603, %v764
      %v797 = vadd.f32 %v604, %v765
      %v798 = vadd.f32 %v605, %v766
      %v799 = vadd.f32 %v606, %v767
      %v800 = vadd.f32 %v607, %v768
      %v801 = vadd.f32 %v608, %v769
      %v802 = vadd.f32 %v609, %v770
      %v803 = vadd.f32 %v610, %v771
      %v804 = vadd.f32 %v611, %v772
      %v805 = vadd.f32 %v612, %v773
      %v806 = vadd.f32 %v613, %v774
      %v807 = vadd.f32 %v614, %v775
      %v808 = vadd.f32 %v615, %v776
      %v809 = vadd.f32 %v616, %v777
      %v810 = vadd.f32 %v617, %v778
      %v811 = vadd.f32 %v618, %v779
      %v812 = vadd.f32 %v619, %v780
      %v813 = vadd.f32 %v620, %v781
      %v814 = vadd.f32 %v621, %v782
      %v815 = vadd.f32 %v622, %v783
      %v816 = vadd.f32 %v623, %v784
      %v817 = vadd.f32 %v624, %v785
      %818 = vset.pattern.permute.xlu0 2
      %819 = vperm.xlu0 %818, %v383
      %v820 = vpop.permute.xlu0 %819
      %822 = vset.pattern.permute.xlu0 2
      %823 = vperm.xlu0 %822, %v384
      %v824 = vpop.permute.xlu0 %823
      %826 = vset.pattern.permute.xlu0 2
      %827 = vperm.xlu0 %826, %v385
      %v828 = vpop.permute.xlu0 %827
      %830 = vset.pattern.permute.xlu0 2
      %831 = vperm.xlu0 %830, %v386
      %v832 = vpop.permute.xlu0 %831
      %834 = vset.pattern.permute.xlu0 2
      %835 = vperm.xlu0 %834, %v387
      %v836 = vpop.permute.xlu0 %835
      %838 = vset.pattern.permute.xlu0 2
      %839 = vperm.xlu0 %838, %v388
      %v840 = vpop.permute.xlu0 %839
      %842 = vset.pattern.permute.xlu0 2
      %843 = vperm.xlu0 %842, %v389
      %v844 = vpop.permute.xlu0 %843
      %846 = vset.pattern.permute.xlu0 2
      %847 = vperm.xlu0 %846, %v390
      %v848 = vpop.permute.xlu0 %847
      %850 = vset.pattern.permute.xlu0 2
      %851 = vperm.xlu0 %850, %v391
      %v852 = vpop.permute.xlu0 %851
      %854 = vset.pattern.permute.xlu0 2
      %855 = vperm.xlu0 %854, %v392
      %v856 = vpop.permute.xlu0 %855
      %858 = vset.pattern.permute.xlu0 2
      %859 = vperm.xlu0 %858, %v393
      %v860 = vpop.permute.xlu0 %859
      %862 = vset.pattern.permute.xlu0 2
      %863 = vperm.xlu0 %862, %v394
      %v864 = vpop.permute.xlu0 %863
      %866 = vset.pattern.permute.xlu0 2
      %867 = vperm.xlu0 %866, %v395
      %v868 = vpop.permute.xlu0 %867
      %870 = vset.pattern.permute.xlu0 2
      %871 = vperm.xlu0 %870, %v396
      %v872 = vpop.permute.xlu0 %871
      %874 = vset.pattern.permute.xlu0 2
      %875 = vperm.xlu0 %874, %v397
      %v876 = vpop.permute.xlu0 %875
      %878 = vset.pattern.permute.xlu0 2
      %879 = vperm.xlu0 %878, %v398
      %v880 = vpop.permute.xlu0 %879
      %882 = vset.pattern.permute.xlu0 2
      %883 = vperm.xlu0 %882, %v415
      %v884 = vpop.permute.xlu0 %883
      %886 = vset.pattern.permute.xlu0 2
      %887 = vperm.xlu0 %886, %v416
      %v888 = vpop.permute.xlu0 %887
      %890 = vset.pattern.permute.xlu0 2
      %891 = vperm.xlu0 %890, %v417
      %v892 = vpop.permute.xlu0 %891
      %894 = vset.pattern.permute.xlu0 2
      %895 = vperm.xlu0 %894, %v418
      %v896 = vpop.permute.xlu0 %895
      %898 = vset.pattern.permute.xlu0 2
      %899 = vperm.xlu0 %898, %v419
      %v900 = vpop.permute.xlu0 %899
      %902 = vset.pattern.permute.xlu0 2
      %903 = vperm.xlu0 %902, %v420
      %v904 = vpop.permute.xlu0 %903
      %906 = vset.pattern.permute.xlu0 2
      %907 = vperm.xlu0 %906, %v421
      %v908 = vpop.permute.xlu0 %907
      %910 = vset.pattern.permute.xlu0 2
      %911 = vperm.xlu0 %910, %v422
      %v912 = vpop.permute.xlu0 %911
      %914 = vset.pattern.permute.xlu0 2
      %915 = vperm.xlu0 %914, %v423
      %v916 = vpop.permute.xlu0 %915
      %918 = vset.pattern.permute.xlu0 2
      %919 = vperm.xlu0 %918, %v424
      %v920 = vpop.permute.xlu0 %919
      %922 = vset.pattern.permute.xlu0 2
      %923 = vperm.xlu0 %922, %v425
      %v924 = vpop.permute.xlu0 %923
      %926 = vset.pattern.permute.xlu0 2
      %927 = vperm.xlu0 %926, %v426
      %v928 = vpop.permute.xlu0 %927
      %930 = vset.pattern.permute.xlu0 2
      %931 = vperm.xlu0 %930, %v427
      %v932 = vpop.permute.xlu0 %931
      %934 = vset.pattern.permute.xlu0 2
      %935 = vperm.xlu0 %934, %v428
      %v936 = vpop.permute.xlu0 %935
      %938 = vset.pattern.permute.xlu0 2
      %939 = vperm.xlu0 %938, %v429
      %v940 = vpop.permute.xlu0 %939
      %942 = vset.pattern.permute.xlu0 2
      %943 = vperm.xlu0 %942, %v430
      %v944 = vpop.permute.xlu0 %943
      %v946 = vperm.slane %v431, 2
      %v947 = vmul.f32 %v820, %v946
      %v948 = vmul.f32 %v824, %v946
      %v949 = vmul.f32 %v828, %v946
      %v950 = vmul.f32 %v832, %v946
      %v951 = vmul.f32 %v836, %v946
      %v952 = vmul.f32 %v840, %v946
      %v953 = vmul.f32 %v844, %v946
      %v954 = vmul.f32 %v848, %v946
      %v955 = vmul.f32 %v852, %v946
      %v956 = vmul.f32 %v856, %v946
      %v957 = vmul.f32 %v860, %v946
      %v958 = vmul.f32 %v864, %v946
      %v959 = vmul.f32 %v868, %v946
      %v960 = vmul.f32 %v872, %v946
      %v961 = vmul.f32 %v876, %v946
      %v962 = vmul.f32 %v880, %v946
      %v963 = vmul.f32 %v884, %v946
      %v964 = vmul.f32 %v888, %v946
      %v965 = vmul.f32 %v892, %v946
      %v966 = vmul.f32 %v896, %v946
      %v967 = vmul.f32 %v900, %v946
      %v968 = vmul.f32 %v904, %v946
      %v969 = vmul.f32 %v908, %v946
      %v970 = vmul.f32 %v912, %v946
      %v971 = vmul.f32 %v916, %v946
      %v972 = vmul.f32 %v920, %v946
      %v973 = vmul.f32 %v924, %v946
      %v974 = vmul.f32 %v928, %v946
      %v975 = vmul.f32 %v932, %v946
      %v976 = vmul.f32 %v936, %v946
      %v977 = vmul.f32 %v940, %v946
      %v978 = vmul.f32 %v944, %v946
      %v979 = vadd.f32 %v786, %v947
      %v980 = vadd.f32 %v787, %v948
      %v981 = vadd.f32 %v788, %v949
      %v982 = vadd.f32 %v789, %v950
      %v983 = vadd.f32 %v790, %v951
      %v984 = vadd.f32 %v791, %v952
      %v985 = vadd.f32 %v792, %v953
      %v986 = vadd.f32 %v793, %v954
      %v987 = vadd.f32 %v794, %v955
      %v988 = vadd.f32 %v795, %v956
      %v989 = vadd.f32 %v796, %v957
      %v990 = vadd.f32 %v797, %v958
      %v991 = vadd.f32 %v798, %v959
      %v992 = vadd.f32 %v799, %v960
      %v993 = vadd.f32 %v800, %v961
      %v994 = vadd.f32 %v801, %v962
      %v995 = vadd.f32 %v802, %v963
      %v996 = vadd.f32 %v803, %v964
      %v997 = vadd.f32 %v804, %v965
      %v998 = vadd.f32 %v805, %v966
      %v999 = vadd.f32 %v806, %v967
      %v1000 = vadd.f32 %v807, %v968
      %v1001 = vadd.f32 %v808, %v969
      %v1002 = vadd.f32 %v809, %v970
      %v1003 = vadd.f32 %v810, %v971
      %v1004 = vadd.f32 %v811, %v972
      %v1005 = vadd.f32 %v812, %v973
      %v1006 = vadd.f32 %v813, %v974
      %v1007 = vadd.f32 %v814, %v975
      %v1008 = vadd.f32 %v815, %v976
      %v1009 = vadd.f32 %v816, %v977
      %v1010 = vadd.f32 %v817, %v978
      %1011 = vset.pattern.permute.xlu0 3
      %1012 = vperm.xlu0 %1011, %v383
      %v1013 = vpop.permute.xlu0 %1012
      %1015 = vset.pattern.permute.xlu0 3
      %1016 = vperm.xlu0 %1015, %v384
      %v1017 = vpop.permute.xlu0 %1016
      %1019 = vset.pattern.permute.xlu0 3
      %1020 = vperm.xlu0 %1019, %v385
      %v1021 = vpop.permute.xlu0 %1020
      %1023 = vset.pattern.permute.xlu0 3
      %1024 = vperm.xlu0 %1023, %v386
      %v1025 = vpop.permute.xlu0 %1024
      %1027 = vset.pattern.permute.xlu0 3
      %1028 = vperm.xlu0 %1027, %v387
      %v1029 = vpop.permute.xlu0 %1028
      %1031 = vset.pattern.permute.xlu0 3
      %1032 = vperm.xlu0 %1031, %v388
      %v1033 = vpop.permute.xlu0 %1032
      %1035 = vset.pattern.permute.xlu0 3
      %1036 = vperm.xlu0 %1035, %v389
      %v1037 = vpop.permute.xlu0 %1036
      %1039 = vset.pattern.permute.xlu0 3
      %1040 = vperm.xlu0 %1039, %v390
      %v1041 = vpop.permute.xlu0 %1040
      %1043 = vset.pattern.permute.xlu0 3
      %1044 = vperm.xlu0 %1043, %v391
      %v1045 = vpop.permute.xlu0 %1044
      %1047 = vset.pattern.permute.xlu0 3
      %1048 = vperm.xlu0 %1047, %v392
      %v1049 = vpop.permute.xlu0 %1048
      %1051 = vset.pattern.permute.xlu0 3
      %1052 = vperm.xlu0 %1051, %v393
      %v1053 = vpop.permute.xlu0 %1052
      %1055 = vset.pattern.permute.xlu0 3
      %1056 = vperm.xlu0 %1055, %v394
      %v1057 = vpop.permute.xlu0 %1056
      %1059 = vset.pattern.permute.xlu0 3
      %1060 = vperm.xlu0 %1059, %v395
      %v1061 = vpop.permute.xlu0 %1060
      %1063 = vset.pattern.permute.xlu0 3
      %1064 = vperm.xlu0 %1063, %v396
      %v1065 = vpop.permute.xlu0 %1064
      %1067 = vset.pattern.permute.xlu0 3
      %1068 = vperm.xlu0 %1067, %v397
      %v1069 = vpop.permute.xlu0 %1068
      %1071 = vset.pattern.permute.xlu0 3
      %1072 = vperm.xlu0 %1071, %v398
      %v1073 = vpop.permute.xlu0 %1072
      %1075 = vset.pattern.permute.xlu0 3
      %1076 = vperm.xlu0 %1075, %v415
      %v1077 = vpop.permute.xlu0 %1076
      %1079 = vset.pattern.permute.xlu0 3
      %1080 = vperm.xlu0 %1079, %v416
      %v1081 = vpop.permute.xlu0 %1080
      %1083 = vset.pattern.permute.xlu0 3
      %1084 = vperm.xlu0 %1083, %v417
      %v1085 = vpop.permute.xlu0 %1084
      %1087 = vset.pattern.permute.xlu0 3
      %1088 = vperm.xlu0 %1087, %v418
      %v1089 = vpop.permute.xlu0 %1088
      %1091 = vset.pattern.permute.xlu0 3
      %1092 = vperm.xlu0 %1091, %v419
      %v1093 = vpop.permute.xlu0 %1092
      %1095 = vset.pattern.permute.xlu0 3
      %1096 = vperm.xlu0 %1095, %v420
      %v1097 = vpop.permute.xlu0 %1096
      %1099 = vset.pattern.permute.xlu0 3
      %1100 = vperm.xlu0 %1099, %v421
      %v1101 = vpop.permute.xlu0 %1100
      %1103 = vset.pattern.permute.xlu0 3
      %1104 = vperm.xlu0 %1103, %v422
      %v1105 = vpop.permute.xlu0 %1104
      %1107 = vset.pattern.permute.xlu0 3
      %1108 = vperm.xlu0 %1107, %v423
      %v1109 = vpop.permute.xlu0 %1108
      %1111 = vset.pattern.permute.xlu0 3
      %1112 = vperm.xlu0 %1111, %v424
      %v1113 = vpop.permute.xlu0 %1112
      %1115 = vset.pattern.permute.xlu0 3
      %1116 = vperm.xlu0 %1115, %v425
      %v1117 = vpop.permute.xlu0 %1116
      %1119 = vset.pattern.permute.xlu0 3
      %1120 = vperm.xlu0 %1119, %v426
      %v1121 = vpop.permute.xlu0 %1120
      %1123 = vset.pattern.permute.xlu0 3
      %1124 = vperm.xlu0 %1123, %v427
      %v1125 = vpop.permute.xlu0 %1124
      %1127 = vset.pattern.permute.xlu0 3
      %1128 = vperm.xlu0 %1127, %v428
      %v1129 = vpop.permute.xlu0 %1128
      %1131 = vset.pattern.permute.xlu0 3
      %1132 = vperm.xlu0 %1131, %v429
      %v1133 = vpop.permute.xlu0 %1132
      %1135 = vset.pattern.permute.xlu0 3
      %1136 = vperm.xlu0 %1135, %v430
      %v1137 = vpop.permute.xlu0 %1136
      %v1139 = vperm.slane %v431, 3
      %v1140 = vmul.f32 %v1013, %v1139
      %v1141 = vmul.f32 %v1017, %v1139
      %v1142 = vmul.f32 %v1021, %v1139
      %v1143 = vmul.f32 %v1025, %v1139
      %v1144 = vmul.f32 %v1029, %v1139
      %v1145 = vmul.f32 %v1033, %v1139
      %v1146 = vmul.f32 %v1037, %v1139
      %v1147 = vmul.f32 %v1041, %v1139
      %v1148 = vmul.f32 %v1045, %v1139
      %v1149 = vmul.f32 %v1049, %v1139
      %v1150 = vmul.f32 %v1053, %v1139
      %v1151 = vmul.f32 %v1057, %v1139
      %v1152 = vmul.f32 %v1061, %v1139
      %v1153 = vmul.f32 %v1065, %v1139
      %v1154 = vmul.f32 %v1069, %v1139
      %v1155 = vmul.f32 %v1073, %v1139
      %v1156 = vmul.f32 %v1077, %v1139
      %v1157 = vmul.f32 %v1081, %v1139
      %v1158 = vmul.f32 %v1085, %v1139
      %v1159 = vmul.f32 %v1089, %v1139
      %v1160 = vmul.f32 %v1093, %v1139
      %v1161 = vmul.f32 %v1097, %v1139
      %v1162 = vmul.f32 %v1101, %v1139
      %v1163 = vmul.f32 %v1105, %v1139
      %v1164 = vmul.f32 %v1109, %v1139
      %v1165 = vmul.f32 %v1113, %v1139
      %v1166 = vmul.f32 %v1117, %v1139
      %v1167 = vmul.f32 %v1121, %v1139
      %v1168 = vmul.f32 %v1125, %v1139
      %v1169 = vmul.f32 %v1129, %v1139
      %v1170 = vmul.f32 %v1133, %v1139
      %v1171 = vmul.f32 %v1137, %v1139
      %v1172 = vadd.f32 %v979, %v1140
      %v1173 = vadd.f32 %v980, %v1141
      %v1174 = vadd.f32 %v981, %v1142
      %v1175 = vadd.f32 %v982, %v1143
      %v1176 = vadd.f32 %v983, %v1144
      %v1177 = vadd.f32 %v984, %v1145
      %v1178 = vadd.f32 %v985, %v1146
      %v1179 = vadd.f32 %v986, %v1147
      %v1180 = vadd.f32 %v987, %v1148
      %v1181 = vadd.f32 %v988, %v1149
      %v1182 = vadd.f32 %v989, %v1150
      %v1183 = vadd.f32 %v990, %v1151
      %v1184 = vadd.f32 %v991, %v1152
      %v1185 = vadd.f32 %v992, %v1153
      %v1186 = vadd.f32 %v993, %v1154
      %v1187 = vadd.f32 %v994, %v1155
      %v1188 = vadd.f32 %v995, %v1156
      %v1189 = vadd.f32 %v996, %v1157
      %v1190 = vadd.f32 %v997, %v1158
      %v1191 = vadd.f32 %v998, %v1159
      %v1192 = vadd.f32 %v999, %v1160
      %v1193 = vadd.f32 %v1000, %v1161
      %v1194 = vadd.f32 %v1001, %v1162
      %v1195 = vadd.f32 %v1002, %v1163
      %v1196 = vadd.f32 %v1003, %v1164
      %v1197 = vadd.f32 %v1004, %v1165
      %v1198 = vadd.f32 %v1005, %v1166
      %v1199 = vadd.f32 %v1006, %v1167
      %v1200 = vadd.f32 %v1007, %v1168
      %v1201 = vadd.f32 %v1008, %v1169
      %v1202 = vadd.f32 %v1009, %v1170
      %v1203 = vadd.f32 %v1010, %v1171
      %v1204 = vld [vmem:[%s2] sm:$0x1]
      %v1206 = vperm.slane %v1204, 0
      %v1208 = vmul.f32 %v1172, %v1206
      %v1209 = vmul.f32 %v1173, %v1206
      %v1210 = vmul.f32 %v1174, %v1206
      %v1211 = vmul.f32 %v1175, %v1206
      %v1212 = vmul.f32 %v1176, %v1206
      %v1213 = vmul.f32 %v1177, %v1206
      %v1214 = vmul.f32 %v1178, %v1206
      %v1215 = vmul.f32 %v1179, %v1206
      %v1216 = vmul.f32 %v1180, %v1206
      %v1217 = vmul.f32 %v1181, %v1206
      %v1218 = vmul.f32 %v1182, %v1206
      %v1219 = vmul.f32 %v1183, %v1206
      %v1220 = vmul.f32 %v1184, %v1206
      %v1221 = vmul.f32 %v1185, %v1206
      %v1222 = vmul.f32 %v1186, %v1206
      %v1223 = vmul.f32 %v1187, %v1206
      %v1224 = vmul.f32 %v1188, %v1206
      %v1225 = vmul.f32 %v1189, %v1206
      %v1226 = vmul.f32 %v1190, %v1206
      %v1227 = vmul.f32 %v1191, %v1206
      %v1228 = vmul.f32 %v1192, %v1206
      %v1229 = vmul.f32 %v1193, %v1206
      %v1230 = vmul.f32 %v1194, %v1206
      %v1231 = vmul.f32 %v1195, %v1206
      %v1232 = vmul.f32 %v1196, %v1206
      %v1233 = vmul.f32 %v1197, %v1206
      %v1234 = vmul.f32 %v1198, %v1206
      %v1235 = vmul.f32 %v1199, %v1206
      %v1236 = vmul.f32 %v1200, %v1206
      %v1237 = vmul.f32 %v1201, %v1206
      %v1238 = vmul.f32 %v1202, %v1206
      %v1239 = vmul.f32 %v1203, %v1206
      %v1240 = vld [vmem:[%s3] sm:$0x1]
      %v1242 = vperm.slane %v1240, 0
      %v1244 = vadd.f32 %v1208, %v1242
      %v1245 = vadd.f32 %v1209, %v1242
      %v1246 = vadd.f32 %v1210, %v1242
      %v1247 = vadd.f32 %v1211, %v1242
      %v1248 = vadd.f32 %v1212, %v1242
      %v1249 = vadd.f32 %v1213, %v1242
      %v1250 = vadd.f32 %v1214, %v1242
      %v1251 = vadd.f32 %v1215, %v1242
      %v1252 = vadd.f32 %v1216, %v1242
      %v1253 = vadd.f32 %v1217, %v1242
      %v1254 = vadd.f32 %v1218, %v1242
      %v1255 = vadd.f32 %v1219, %v1242
      %v1256 = vadd.f32 %v1220, %v1242
      %v1257 = vadd.f32 %v1221, %v1242
      %v1258 = vadd.f32 %v1222, %v1242
      %v1259 = vadd.f32 %v1223, %v1242
      %v1260 = vadd.f32 %v1224, %v1242
      %v1261 = vadd.f32 %v1225, %v1242
      %v1262 = vadd.f32 %v1226, %v1242
      %v1263 = vadd.f32 %v1227, %v1242
      %v1264 = vadd.f32 %v1228, %v1242
      %v1265 = vadd.f32 %v1229, %v1242
      %v1266 = vadd.f32 %v1230, %v1242
      %v1267 = vadd.f32 %v1231, %v1242
      %v1268 = vadd.f32 %v1232, %v1242
      %v1269 = vadd.f32 %v1233, %v1242
      %v1270 = vadd.f32 %v1234, %v1242
      %v1271 = vadd.f32 %v1235, %v1242
      %v1272 = vadd.f32 %v1236, %v1242
      %v1273 = vadd.f32 %v1237, %v1242
      %v1274 = vadd.f32 %v1238, %v1242
      %v1275 = vadd.f32 %v1239, %v1242
      %v1276 = vmax.f32 %v1244, 0.0
      %v1277 = vmax.f32 %v1245, 0.0
      %v1278 = vmax.f32 %v1246, 0.0
      %v1279 = vmax.f32 %v1247, 0.0
      %v1280 = vmax.f32 %v1248, 0.0
      %v1281 = vmax.f32 %v1249, 0.0
      %v1282 = vmax.f32 %v1250, 0.0
      %v1283 = vmax.f32 %v1251, 0.0
      %v1284 = vmax.f32 %v1252, 0.0
      %v1285 = vmax.f32 %v1253, 0.0
      %v1286 = vmax.f32 %v1254, 0.0
      %v1287 = vmax.f32 %v1255, 0.0
      %v1288 = vmax.f32 %v1256, 0.0
      %v1289 = vmax.f32 %v1257, 0.0
      %v1290 = vmax.f32 %v1258, 0.0
      %v1291 = vmax.f32 %v1259, 0.0
      %v1292 = vmax.f32 %v1260, 0.0
      %v1293 = vmax.f32 %v1261, 0.0
      %v1294 = vmax.f32 %v1262, 0.0
      %v1295 = vmax.f32 %v1263, 0.0
      %v1296 = vmax.f32 %v1264, 0.0
      %v1297 = vmax.f32 %v1265, 0.0
      %v1298 = vmax.f32 %v1266, 0.0
      %v1299 = vmax.f32 %v1267, 0.0
      %v1300 = vmax.f32 %v1268, 0.0
      %v1301 = vmax.f32 %v1269, 0.0
      %v1302 = vmax.f32 %v1270, 0.0
      %v1303 = vmax.f32 %v1271, 0.0
      %v1304 = vmax.f32 %v1272, 0.0
      %v1305 = vmax.f32 %v1273, 0.0
      %v1306 = vmax.f32 %v1274, 0.0
      %v1307 = vmax.f32 %v1275, 0.0
      %v1308 = vmin.f32 %v1276, 6.0
      %v1309 = vmin.f32 %v1277, 6.0
      %v1310 = vmin.f32 %v1278, 6.0
      %v1311 = vmin.f32 %v1279, 6.0
      %v1312 = vmin.f32 %v1280, 6.0
      %v1313 = vmin.f32 %v1281, 6.0
      %v1314 = vmin.f32 %v1282, 6.0
      %v1315 = vmin.f32 %v1283, 6.0
      %v1316 = vmin.f32 %v1284, 6.0
      %v1317 = vmin.f32 %v1285, 6.0
      %v1318 = vmin.f32 %v1286, 6.0
      %v1319 = vmin.f32 %v1287, 6.0
      %v1320 = vmin.f32 %v1288, 6.0
      %v1321 = vmin.f32 %v1289, 6.0
      %v1322 = vmin.f32 %v1290, 6.0
      %v1323 = vmin.f32 %v1291, 6.0
      %v1324 = vmin.f32 %v1292, 6.0
      %v1325 = vmin.f32 %v1293, 6.0
      %v1326 = vmin.f32 %v1294, 6.0
      %v1327 = vmin.f32 %v1295, 6.0
      %v1328 = vmin.f32 %v1296, 6.0
      %v1329 = vmin.f32 %v1297, 6.0
      %v1330 = vmin.f32 %v1298, 6.0
      %v1331 = vmin.f32 %v1299, 6.0
      %v1332 = vmin.f32 %v1300, 6.0
      %v1333 = vmin.f32 %v1301, 6.0
      %v1334 = vmin.f32 %v1302, 6.0
      %v1335 = vmin.f32 %v1303, 6.0
      %v1336 = vmin.f32 %v1304, 6.0
      %v1337 = vmin.f32 %v1305, 6.0
      %v1338 = vmin.f32 %v1306, 6.0
      %v1339 = vmin.f32 %v1307, 6.0
      %vm1340 = vcmask 195584
      %1341 = vst.msk [vmem:[#allocation2] sm:$0xff] %vm1340, 0.0
      %1342 = vst.msk [vmem:[#allocation2 + $0x8] sm:$0xff] %vm1340, 0.0
      %1343 = vst.msk [vmem:[#allocation2 + $0x10] sm:$0xff] %vm1340, 0.0
      %1344 = vst.msk [vmem:[#allocation2 + $0x18] sm:$0xff] %vm1340, 0.0
      %1345 = vst.msk [vmem:[#allocation2 + $0x20] sm:$0xff] %vm1340, 0.0
      %1346 = vst.msk [vmem:[#allocation2 + $0x28] sm:$0xff] %vm1340, 0.0
      %1347 = vst.msk [vmem:[#allocation2 + $0x30] sm:$0xff] %vm1340, 0.0
      %1348 = vst.msk [vmem:[#allocation2 + $0x38] sm:$0xff] %vm1340, 0.0
      %1349 = vst.msk [vmem:[#allocation2 + $0x40] sm:$0xff] %vm1340, 0.0
      %1350 = vst.msk [vmem:[#allocation2 + $0x48] sm:$0xff] %vm1340, 0.0
      %1351 = vst.msk [vmem:[#allocation2 + $0x50] sm:$0xff] %vm1340, 0.0
      %1352 = vst.msk [vmem:[#allocation2 + $0x58] sm:$0xff] %vm1340, 0.0
      %1353 = vst.msk [vmem:[#allocation2 + $0x60] sm:$0xff] %vm1340, 0.0
      %1354 = vst.msk [vmem:[#allocation2 + $0x68] sm:$0xff] %vm1340, 0.0
      %1355 = vst.msk [vmem:[#allocation2 + $0x70] sm:$0xff] %vm1340, 0.0
      %1356 = vst.msk [vmem:[#allocation2 + $0x78] sm:$0xff] %vm1340, 0.0
      %1357 = vst.msk [vmem:[#allocation2 + $0x80] sm:$0xff] %vm1340, 0.0
      %1358 = vst.msk [vmem:[#allocation2 + $0x88] sm:$0xff] %vm1340, 0.0
      %1359 = vst.msk [vmem:[#allocation2 + $0x90] sm:$0xff] %vm1340, 0.0
      %1360 = vst.msk [vmem:[#allocation2 + $0x98] sm:$0xff] %vm1340, 0.0
      %1361 = vst.msk [vmem:[#allocation2 + $0xa0] sm:$0xff] %vm1340, 0.0
      %1362 = vst.msk [vmem:[#allocation2 + $0xa8] sm:$0xff] %vm1340, 0.0
      %1363 = vst.msk [vmem:[#allocation2 + $0xb0] sm:$0xff] %vm1340, 0.0
      %1364 = vst.msk [vmem:[#allocation2 + $0xb8] sm:$0xff] %vm1340, 0.0
      %1365 = vst.msk [vmem:[#allocation2 + $0xc0] sm:$0xff] %vm1340, 0.0
      %1366 = vst.msk [vmem:[#allocation2 + $0xc8] sm:$0xff] %vm1340, 0.0
      %1367 = vst.msk [vmem:[#allocation2 + $0xd0] sm:$0xff] %vm1340, 0.0
      %1368 = vst.msk [vmem:[#allocation2 + $0xd8] sm:$0xff] %vm1340, 0.0
      %1369 = vst.msk [vmem:[#allocation2 + $0xe0] sm:$0xff] %vm1340, 0.0
      %1370 = vst.msk [vmem:[#allocation2 + $0xe8] sm:$0xff] %vm1340, 0.0
      %1371 = vst.msk [vmem:[#allocation2 + $0xf0] sm:$0xff] %vm1340, 0.0
      %1372 = vst.msk [vmem:[#allocation2 + $0xf8] sm:$0xff] %vm1340, 0.0
      %1373 = vst.msk [vmem:[#allocation2 + $0x100] sm:$0xff] %vm1340, 0.0
      %1374 = vst.msk [vmem:[#allocation2 + $0x108] sm:$0xff] %vm1340, 0.0
      %1375 = vst.msk [vmem:[#allocation2 + $0x110] sm:$0xff] %vm1340, 0.0
      %1376 = vst.msk [vmem:[#allocation2 + $0x118] sm:$0xff] %vm1340, 0.0
      %1377 = vst.msk [vmem:[#allocation2 + $0x120] sm:$0xff] %vm1340, 0.0
      %1378 = vst.msk [vmem:[#allocation2 + $0x128] sm:$0xff] %vm1340, 0.0
      %1379 = vst.msk [vmem:[#allocation2 + $0x18] sm:$0xff] %vm1340, %v1308
      %1380 = vst.msk [vmem:[#allocation2 + $0x20] sm:$0xff] %vm1340, %v1309
      %1381 = vst.msk [vmem:[#allocation2 + $0x28] sm:$0xff] %vm1340, %v1310
      %1382 = vst.msk [vmem:[#allocation2 + $0x30] sm:$0xff] %vm1340, %v1311
      %1383 = vst.msk [vmem:[#allocation2 + $0x38] sm:$0xff] %vm1340, %v1312
      %1384 = vst.msk [vmem:[#allocation2 + $0x40] sm:$0xff] %vm1340, %v1313
      %1385 = vst.msk [vmem:[#allocation2 + $0x48] sm:$0xff] %vm1340, %v1314
      %1386 = vst.msk [vmem:[#allocation2 + $0x50] sm:$0xff] %vm1340, %v1315
      %1387 = vst.msk [vmem:[#allocation2 + $0x58] sm:$0xff] %vm1340, %v1316
      %1388 = vst.msk [vmem:[#allocation2 + $0x60] sm:$0xff] %vm1340, %v1317
      %1389 = vst.msk [vmem:[#allocation2 + $0x68] sm:$0xff] %vm1340, %v1318
      %1390 = vst.msk [vmem:[#allocation2 + $0x70] sm:$0xff] %vm1340, %v1319
      %1391 = vst.msk [vmem:[#allocation2 + $0x78] sm:$0xff] %vm1340, %v1320
      %1392 = vst.msk [vmem:[#allocation2 + $0x80] sm:$0xff] %vm1340, %v1321
      %1393 = vst.msk [vmem:[#allocation2 + $0x88] sm:$0xff] %vm1340, %v1322
      %1394 = vst.msk [vmem:[#allocation2 + $0x90] sm:$0xff] %vm1340, %v1323
      %1395 = vst.msk [vmem:[#allocation2 + $0x98] sm:$0xff] %vm1340, %v1324
      %1396 = vst.msk [vmem:[#allocation2 + $0xa0] sm:$0xff] %vm1340, %v1325
      %1397 = vst.msk [vmem:[#allocation2 + $0xa8] sm:$0xff] %vm1340, %v1326
      %1398 = vst.msk [vmem:[#allocation2 + $0xb0] sm:$0xff] %vm1340, %v1327
      %1399 = vst.msk [vmem:[#allocation2 + $0xb8] sm:$0xff] %vm1340, %v1328
      %1400 = vst.msk [vmem:[#allocation2 + $0xc0] sm:$0xff] %vm1340, %v1329
      %1401 = vst.msk [vmem:[#allocation2 + $0xc8] sm:$0xff] %vm1340, %v1330
      %1402 = vst.msk [vmem:[#allocation2 + $0xd0] sm:$0xff] %vm1340, %v1331
      %1403 = vst.msk [vmem:[#allocation2 + $0xd8] sm:$0xff] %vm1340, %v1332
      %1404 = vst.msk [vmem:[#allocation2 + $0xe0] sm:$0xff] %vm1340, %v1333
      %1405 = vst.msk [vmem:[#allocation2 + $0xe8] sm:$0xff] %vm1340, %v1334
      %1406 = vst.msk [vmem:[#allocation2 + $0xf0] sm:$0xff] %vm1340, %v1335
      %1407 = vst.msk [vmem:[#allocation2 + $0xf8] sm:$0xff] %vm1340, %v1336
      %1408 = vst.msk [vmem:[#allocation2 + $0x100] sm:$0xff] %vm1340, %v1337
      %1409 = vst.msk [vmem:[#allocation2 + $0x108] sm:$0xff] %vm1340, %v1338
      %1410 = vst.msk [vmem:[#allocation2 + $0x110] sm:$0xff] %vm1340, %v1339
      %v1411 = vld [vmem:[%s4] sm:$0xff]
      %v1412 = vld [vmem:[%s4 + $0x8] sm:$0x1]
      %v1413 = vlaneseq
      %v1414 = vshrl.u32 %v1413, 7
      %v1415 = vadd.s32 %v1414, 8
      %v1416 = vadd.s32 %v1414, 16
      %v1417 = vadd.s32 %v1414, 24
      %v1418 = vadd.s32 %v1414, 32
      %v1419 = vadd.s32 %v1414, 40
      %v1420 = vadd.s32 %v1414, 48
      %v1421 = vadd.s32 %v1414, 56
      %v1422 = vadd.s32 %v1414, 64
      %v1423 = vadd.s32 %v1414, 72
      %v1424 = vadd.s32 %v1414, 80
      %v1425 = vadd.s32 %v1414, 88
      %v1426 = vadd.s32 %v1414, 96
      %v1427 = vadd.s32 %v1414, 104
      %v1428 = vadd.s32 %v1414, 112
      %v1429 = vadd.s32 %v1414, 120
      %v1430 = vadd.s32 %v1414, 128
      %v1431 = vadd.s32 %v1414, 136
      %v1432 = vadd.s32 %v1414, 144
      %v1433 = vadd.s32 %v1414, 152
      %v1434 = vadd.s32 %v1414, 160
      %v1435 = vadd.s32 %v1414, 168
      %v1436 = vadd.s32 %v1414, 176
      %v1437 = vadd.s32 %v1414, 184
      %v1438 = vadd.s32 %v1414, 192
      %v1439 = vadd.s32 %v1414, 200
      %v1440 = vadd.s32 %v1414, 208
      %v1441 = vadd.s32 %v1414, 216
      %v1442 = vadd.s32 %v1414, 224
      %v1443 = vadd.s32 %v1414, 232
      %v1444 = vadd.s32 %v1414, 240
      %v1445 = vadd.s32 %v1414, 248
      %vm1446 = vcmp.lt.s32.totalorder %v1414, 0
      %v1447 = vsub.s32 0, %v1414
      %v1448 = vsel %vm1446, %v1447, %v1414
      %v1449 = vshrl.u32 %v1448, 4
      %v1450 = vand.u32 %v1448, 15
      %v1451 = vsub.s32 0, %v1450
      %v1452 = vsel %vm1446, %v1451, %v1450
      %vm1453 = vcmp.lt.s32.totalorder %v1415, 0
      %v1454 = vsub.s32 0, %v1415
      %v1455 = vsel %vm1453, %v1454, %v1415
      %v1456 = vshrl.u32 %v1455, 4
      %v1457 = vand.u32 %v1455, 15
      %v1458 = vsub.s32 0, %v1457
      %v1459 = vsel %vm1453, %v1458, %v1457
      %vm1460 = vcmp.lt.s32.totalorder %v1416, 0
      %v1461 = vsub.s32 0, %v1416
      %v1462 = vsel %vm1460, %v1461, %v1416
      %v1463 = vshrl.u32 %v1462, 4
      %v1464 = vand.u32 %v1462, 15
      %v1465 = vsub.s32 0, %v1464
      %v1466 = vsel %vm1460, %v1465, %v1464
      %vm1467 = vcmp.lt.s32.totalorder %v1417, 0
      %v1468 = vsub.s32 0, %v1417
      %v1469 = vsel %vm1467, %v1468, %v1417
      %v1470 = vshrl.u32 %v1469, 4
      %v1471 = vand.u32 %v1469, 15
      %v1472 = vsub.s32 0, %v1471
      %v1473 = vsel %vm1467, %v1472, %v1471
      %vm1474 = vcmp.lt.s32.totalorder %v1418, 0
      %v1475 = vsub.s32 0, %v1418
      %v1476 = vsel %vm1474, %v1475, %v1418
      %v1477 = vshrl.u32 %v1476, 4
      %v1478 = vand.u32 %v1476, 15
      %v1479 = vsub.s32 0, %v1478
      %v1480 = vsel %vm1474, %v1479, %v1478
      %vm1481 = vcmp.lt.s32.totalorder %v1419, 0
      %v1482 = vsub.s32 0, %v1419
      %v1483 = vsel %vm1481, %v1482, %v1419
      %v1484 = vshrl.u32 %v1483, 4
      %v1485 = vand.u32 %v1483, 15
      %v1486 = vsub.s32 0, %v1485
      %v1487 = vsel %vm1481, %v1486, %v1485
      %vm1488 = vcmp.lt.s32.totalorder %v1420, 0
      %v1489 = vsub.s32 0, %v1420
      %v1490 = vsel %vm1488, %v1489, %v1420
      %v1491 = vshrl.u32 %v1490, 4
      %v1492 = vand.u32 %v1490, 15
      %v1493 = vsub.s32 0, %v1492
      %v1494 = vsel %vm1488, %v1493, %v1492
      %vm1495 = vcmp.lt.s32.totalorder %v1421, 0
      %v1496 = vsub.s32 0, %v1421
      %v1497 = vsel %vm1495, %v1496, %v1421
      %v1498 = vshrl.u32 %v1497, 4
      %v1499 = vand.u32 %v1497, 15
      %v1500 = vsub.s32 0, %v1499
      %v1501 = vsel %vm1495, %v1500, %v1499
      %vm1502 = vcmp.lt.s32.totalorder %v1422, 0
      %v1503 = vsub.s32 0, %v1422
      %v1504 = vsel %vm1502, %v1503, %v1422
      %v1505 = vshrl.u32 %v1504, 4
      %v1506 = vand.u32 %v1504, 15
      %v1507 = vsub.s32 0, %v1506
      %v1508 = vsel %vm1502, %v1507, %v1506
      %vm1509 = vcmp.lt.s32.totalorder %v1423, 0
      %v1510 = vsub.s32 0, %v1423
      %v1511 = vsel %vm1509, %v1510, %v1423
      %v1512 = vshrl.u32 %v1511, 4
      %v1513 = vand.u32 %v1511, 15
      %v1514 = vsub.s32 0, %v1513
      %v1515 = vsel %vm1509, %v1514, %v1513
      %vm1516 = vcmp.lt.s32.totalorder %v1424, 0
      %v1517 = vsub.s32 0, %v1424
      %v1518 = vsel %vm1516, %v1517, %v1424
      %v1519 = vshrl.u32 %v1518, 4
      %v1520 = vand.u32 %v1518, 15
      %v1521 = vsub.s32 0, %v1520
      %v1522 = vsel %vm1516, %v1521, %v1520
      %vm1523 = vcmp.lt.s32.totalorder %v1425, 0
      %v1524 = vsub.s32 0, %v1425
      %v1525 = vsel %vm1523, %v1524, %v1425
      %v1526 = vshrl.u32 %v1525, 4
      %v1527 = vand.u32 %v1525, 15
      %v1528 = vsub.s32 0, %v1527
      %v1529 = vsel %vm1523, %v1528, %v1527
      %vm1530 = vcmp.lt.s32.totalorder %v1426, 0
      %v1531 = vsub.s32 0, %v1426
      %v1532 = vsel %vm1530, %v1531, %v1426
      %v1533 = vshrl.u32 %v1532, 4
      %v1534 = vand.u32 %v1532, 15
      %v1535 = vsub.s32 0, %v1534
      %v1536 = vsel %vm1530, %v1535, %v1534
      %vm1537 = vcmp.lt.s32.totalorder %v1427, 0
      %v1538 = vsub.s32 0, %v1427
      %v1539 = vsel %vm1537, %v1538, %v1427
      %v1540 = vshrl.u32 %v1539, 4
      %v1541 = vand.u32 %v1539, 15
      %v1542 = vsub.s32 0, %v1541
      %v1543 = vsel %vm1537, %v1542, %v1541
      %vm1544 = vcmp.lt.s32.totalorder %v1428, 0
      %v1545 = vsub.s32 0, %v1428
      %v1546 = vsel %vm1544, %v1545, %v1428
      %v1547 = vshrl.u32 %v1546, 4
      %v1548 = vand.u32 %v1546, 15
      %v1549 = vsub.s32 0, %v1548
      %v1550 = vsel %vm1544, %v1549, %v1548
      %vm1551 = vcmp.lt.s32.totalorder %v1429, 0
      %v1552 = vsub.s32 0, %v1429
      %v1553 = vsel %vm1551, %v1552, %v1429
      %v1554 = vshrl.u32 %v1553, 4
      %v1555 = vand.u32 %v1553, 15
      %v1556 = vsub.s32 0, %v1555
      %v1557 = vsel %vm1551, %v1556, %v1555
      %vm1558 = vcmp.lt.s32.totalorder %v1430, 0
      %v1559 = vsub.s32 0, %v1430
      %v1560 = vsel %vm1558, %v1559, %v1430
      %v1561 = vshrl.u32 %v1560, 4
      %v1562 = vand.u32 %v1560, 15
      %v1563 = vsub.s32 0, %v1562
      %v1564 = vsel %vm1558, %v1563, %v1562
      %vm1565 = vcmp.lt.s32.totalorder %v1431, 0
      %v1566 = vsub.s32 0, %v1431
      %v1567 = vsel %vm1565, %v1566, %v1431
      %v1568 = vshrl.u32 %v1567, 4
      %v1569 = vand.u32 %v1567, 15
      %v1570 = vsub.s32 0, %v1569
      %v1571 = vsel %vm1565, %v1570, %v1569
      %vm1572 = vcmp.lt.s32.totalorder %v1432, 0
      %v1573 = vsub.s32 0, %v1432
      %v1574 = vsel %vm1572, %v1573, %v1432
      %v1575 = vshrl.u32 %v1574, 4
      %v1576 = vand.u32 %v1574, 15
      %v1577 = vsub.s32 0, %v1576
      %v1578 = vsel %vm1572, %v1577, %v1576
      %vm1579 = vcmp.lt.s32.totalorder %v1433, 0
      %v1580 = vsub.s32 0, %v1433
      %v1581 = vsel %vm1579, %v1580, %v1433
      %v1582 = vshrl.u32 %v1581, 4
      %v1583 = vand.u32 %v1581, 15
      %v1584 = vsub.s32 0, %v1583
      %v1585 = vsel %vm1579, %v1584, %v1583
      %vm1586 = vcmp.lt.s32.totalorder %v1434, 0
      %v1587 = vsub.s32 0, %v1434
      %v1588 = vsel %vm1586, %v1587, %v1434
      %v1589 = vshrl.u32 %v1588, 4
      %v1590 = vand.u32 %v1588, 15
      %v1591 = vsub.s32 0, %v1590
      %v1592 = vsel %vm1586, %v1591, %v1590
      %vm1593 = vcmp.lt.s32.totalorder %v1435, 0
      %v1594 = vsub.s32 0, %v1435
      %v1595 = vsel %vm1593, %v1594, %v1435
      %v1596 = vshrl.u32 %v1595, 4
      %v1597 = vand.u32 %v1595, 15
      %v1598 = vsub.s32 0, %v1597
      %v1599 = vsel %vm1593, %v1598, %v1597
      %vm1600 = vcmp.lt.s32.totalorder %v1436, 0
      %v1601 = vsub.s32 0, %v1436
      %v1602 = vsel %vm1600, %v1601, %v1436
      %v1603 = vshrl.u32 %v1602, 4
      %v1604 = vand.u32 %v1602, 15
      %v1605 = vsub.s32 0, %v1604
      %v1606 = vsel %vm1600, %v1605, %v1604
      %vm1607 = vcmp.lt.s32.totalorder %v1437, 0
      %v1608 = vsub.s32 0, %v1437
      %v1609 = vsel %vm1607, %v1608, %v1437
      %v1610 = vshrl.u32 %v1609, 4
      %v1611 = vand.u32 %v1609, 15
      %v1612 = vsub.s32 0, %v1611
      %v1613 = vsel %vm1607, %v1612, %v1611
      %vm1614 = vcmp.lt.s32.totalorder %v1438, 0
      %v1615 = vsub.s32 0, %v1438
      %v1616 = vsel %vm1614, %v1615, %v1438
      %v1617 = vshrl.u32 %v1616, 4
      %v1618 = vand.u32 %v1616, 15
      %v1619 = vsub.s32 0, %v1618
      %v1620 = vsel %vm1614, %v1619, %v1618
      %vm1621 = vcmp.lt.s32.totalorder %v1439, 0
      %v1622 = vsub.s32 0, %v1439
      %v1623 = vsel %vm1621, %v1622, %v1439
      %v1624 = vshrl.u32 %v1623, 4
      %v1625 = vand.u32 %v1623, 15
      %v1626 = vsub.s32 0, %v1625
      %v1627 = vsel %vm1621, %v1626, %v1625
      %vm1628 = vcmp.lt.s32.totalorder %v1440, 0
      %v1629 = vsub.s32 0, %v1440
      %v1630 = vsel %vm1628, %v1629, %v1440
      %v1631 = vshrl.u32 %v1630, 4
      %v1632 = vand.u32 %v1630, 15
      %v1633 = vsub.s32 0, %v1632
      %v1634 = vsel %vm1628, %v1633, %v1632
      %vm1635 = vcmp.lt.s32.totalorder %v1441, 0
      %v1636 = vsub.s32 0, %v1441
      %v1637 = vsel %vm1635, %v1636, %v1441
      %v1638 = vshrl.u32 %v1637, 4
      %v1639 = vand.u32 %v1637, 15
      %v1640 = vsub.s32 0, %v1639
      %v1641 = vsel %vm1635, %v1640, %v1639
      %vm1642 = vcmp.lt.s32.totalorder %v1442, 0
      %v1643 = vsub.s32 0, %v1442
      %v1644 = vsel %vm1642, %v1643, %v1442
      %v1645 = vshrl.u32 %v1644, 4
      %v1646 = vand.u32 %v1644, 15
      %v1647 = vsub.s32 0, %v1646
      %v1648 = vsel %vm1642, %v1647, %v1646
      %vm1649 = vcmp.lt.s32.totalorder %v1443, 0
      %v1650 = vsub.s32 0, %v1443
      %v1651 = vsel %vm1649, %v1650, %v1443
      %v1652 = vshrl.u32 %v1651, 4
      %v1653 = vand.u32 %v1651, 15
      %v1654 = vsub.s32 0, %v1653
      %v1655 = vsel %vm1649, %v1654, %v1653
      %vm1656 = vcmp.lt.s32.totalorder %v1444, 0
      %v1657 = vsub.s32 0, %v1444
      %v1658 = vsel %vm1656, %v1657, %v1444
      %v1659 = vshrl.u32 %v1658, 4
      %v1660 = vand.u32 %v1658, 15
      %v1661 = vsub.s32 0, %v1660
      %v1662 = vsel %vm1656, %v1661, %v1660
      %vm1663 = vcmp.lt.s32.totalorder %v1445, 0
      %v1664 = vsub.s32 0, %v1445
      %v1665 = vsel %vm1663, %v1664, %v1445
      %v1666 = vshrl.u32 %v1665, 4
      %v1667 = vand.u32 %v1665, 15
      %v1668 = vsub.s32 0, %v1667
      %v1669 = vsel %vm1663, %v1668, %v1667
      %vm1670 = vcmp.ne.s32.totalorder %v1452, 0
      %vm1671 = vcmp.ne.s32.totalorder %v1459, 0
      %vm1672 = vcmp.ne.s32.totalorder %v1466, 0
      %vm1673 = vcmp.ne.s32.totalorder %v1473, 0
      %vm1674 = vcmp.ne.s32.totalorder %v1480, 0
      %vm1675 = vcmp.ne.s32.totalorder %v1487, 0
      %vm1676 = vcmp.ne.s32.totalorder %v1494, 0
      %vm1677 = vcmp.ne.s32.totalorder %v1501, 0
      %vm1678 = vcmp.ne.s32.totalorder %v1508, 0
      %vm1679 = vcmp.ne.s32.totalorder %v1515, 0
      %vm1680 = vcmp.ne.s32.totalorder %v1522, 0
      %vm1681 = vcmp.ne.s32.totalorder %v1529, 0
      %vm1682 = vcmp.ne.s32.totalorder %v1536, 0
      %vm1683 = vcmp.ne.s32.totalorder %v1543, 0
      %vm1684 = vcmp.ne.s32.totalorder %v1550, 0
      %vm1685 = vcmp.ne.s32.totalorder %v1557, 0
      %vm1686 = vcmp.ne.s32.totalorder %v1564, 0
      %vm1687 = vcmp.ne.s32.totalorder %v1571, 0
      %vm1688 = vcmp.ne.s32.totalorder %v1578, 0
      %vm1689 = vcmp.ne.s32.totalorder %v1585, 0
      %vm1690 = vcmp.ne.s32.totalorder %v1592, 0
      %vm1691 = vcmp.ne.s32.totalorder %v1599, 0
      %vm1692 = vcmp.ne.s32.totalorder %v1606, 0
      %vm1693 = vcmp.ne.s32.totalorder %v1613, 0
      %vm1694 = vcmp.ne.s32.totalorder %v1620, 0
      %vm1695 = vcmp.ne.s32.totalorder %v1627, 0
      %vm1696 = vcmp.ne.s32.totalorder %v1634, 0
      %vm1697 = vcmp.ne.s32.totalorder %v1641, 0
      %vm1698 = vcmp.ne.s32.totalorder %v1648, 0
      %vm1699 = vcmp.ne.s32.totalorder %v1655, 0
      %vm1700 = vcmp.ne.s32.totalorder %v1662, 0
      %vm1701 = vcmp.ne.s32.totalorder %v1669, 0
      %vm1702 = vcmp.lt.s32.totalorder %v1452, 0
      %vm1703 = vcmp.lt.s32.totalorder %v1459, 0
      %vm1704 = vcmp.lt.s32.totalorder %v1466, 0
      %vm1705 = vcmp.lt.s32.totalorder %v1473, 0
      %vm1706 = vcmp.lt.s32.totalorder %v1480, 0
      %vm1707 = vcmp.lt.s32.totalorder %v1487, 0
      %vm1708 = vcmp.lt.s32.totalorder %v1494, 0
      %vm1709 = vcmp.lt.s32.totalorder %v1501, 0
      %vm1710 = vcmp.lt.s32.totalorder %v1508, 0
      %vm1711 = vcmp.lt.s32.totalorder %v1515, 0
      %vm1712 = vcmp.lt.s32.totalorder %v1522, 0
      %vm1713 = vcmp.lt.s32.totalorder %v1529, 0
      %vm1714 = vcmp.lt.s32.totalorder %v1536, 0
      %vm1715 = vcmp.lt.s32.totalorder %v1543, 0
      %vm1716 = vcmp.lt.s32.totalorder %v1550, 0
      %vm1717 = vcmp.lt.s32.totalorder %v1557, 0
      %vm1718 = vcmp.lt.s32.totalorder %v1564, 0
      %vm1719 = vcmp.lt.s32.totalorder %v1571, 0
      %vm1720 = vcmp.lt.s32.totalorder %v1578, 0
      %vm1721 = vcmp.lt.s32.totalorder %v1585, 0
      %vm1722 = vcmp.lt.s32.totalorder %v1592, 0
      %vm1723 = vcmp.lt.s32.totalorder %v1599, 0
      %vm1724 = vcmp.lt.s32.totalorder %v1606, 0
      %vm1725 = vcmp.lt.s32.totalorder %v1613, 0
      %vm1726 = vcmp.lt.s32.totalorder %v1620, 0
      %vm1727 = vcmp.lt.s32.totalorder %v1627, 0
      %vm1728 = vcmp.lt.s32.totalorder %v1634, 0
      %vm1729 = vcmp.lt.s32.totalorder %v1641, 0
      %vm1730 = vcmp.lt.s32.totalorder %v1648, 0
      %vm1731 = vcmp.lt.s32.totalorder %v1655, 0
      %vm1732 = vcmp.lt.s32.totalorder %v1662, 0
      %vm1733 = vcmp.lt.s32.totalorder %v1669, 0
      %vm1734 = vmand %vm1702, %vm1670
      %vm1735 = vmand %vm1703, %vm1671
      %vm1736 = vmand %vm1704, %vm1672
      %vm1737 = vmand %vm1705, %vm1673
      %vm1738 = vmand %vm1706, %vm1674
      %vm1739 = vmand %vm1707, %vm1675
      %vm1740 = vmand %vm1708, %vm1676
      %vm1741 = vmand %vm1709, %vm1677
      %vm1742 = vmand %vm1710, %vm1678
      %vm1743 = vmand %vm1711, %vm1679
      %vm1744 = vmand %vm1712, %vm1680
      %vm1745 = vmand %vm1713, %vm1681
      %vm1746 = vmand %vm1714, %vm1682
      %vm1747 = vmand %vm1715, %vm1683
      %vm1748 = vmand %vm1716, %vm1684
      %vm1749 = vmand %vm1717, %vm1685
      %vm1750 = vmand %vm1718, %vm1686
      %vm1751 = vmand %vm1719, %vm1687
      %vm1752 = vmand %vm1720, %vm1688
      %vm1753 = vmand %vm1721, %vm1689
      %vm1754 = vmand %vm1722, %vm1690
      %vm1755 = vmand %vm1723, %vm1691
      %vm1756 = vmand %vm1724, %vm1692
      %vm1757 = vmand %vm1725, %vm1693
      %vm1758 = vmand %vm1726, %vm1694
      %vm1759 = vmand %vm1727, %vm1695
      %vm1760 = vmand %vm1728, %vm1696
      %vm1761 = vmand %vm1729, %vm1697
      %vm1762 = vmand %vm1730, %vm1698
      %vm1763 = vmand %vm1731, %vm1699
      %vm1764 = vmand %vm1732, %vm1700
      %vm1765 = vmand %vm1733, %vm1701
      %v1766 = vadd.s32 %v1452, 16
      %v1767 = vadd.s32 %v1459, 16
      %v1768 = vadd.s32 %v1466, 16
      %v1769 = vadd.s32 %v1473, 16
      %v1770 = vadd.s32 %v1480, 16
      %v1771 = vadd.s32 %v1487, 16
      %v1772 = vadd.s32 %v1494, 16
      %v1773 = vadd.s32 %v1501, 16
      %v1774 = vadd.s32 %v1508, 16
      %v1775 = vadd.s32 %v1515, 16
      %v1776 = vadd.s32 %v1522, 16
      %v1777 = vadd.s32 %v1529, 16
      %v1778 = vadd.s32 %v1536, 16
      %v1779 = vadd.s32 %v1543, 16
      %v1780 = vadd.s32 %v1550, 16
      %v1781 = vadd.s32 %v1557, 16
      %v1782 = vadd.s32 %v1564, 16
      %v1783 = vadd.s32 %v1571, 16
      %v1784 = vadd.s32 %v1578, 16
      %v1785 = vadd.s32 %v1585, 16
      %v1786 = vadd.s32 %v1592, 16
      %v1787 = vadd.s32 %v1599, 16
      %v1788 = vadd.s32 %v1606, 16
      %v1789 = vadd.s32 %v1613, 16
      %v1790 = vadd.s32 %v1620, 16
      %v1791 = vadd.s32 %v1627, 16
      %v1792 = vadd.s32 %v1634, 16
      %v1793 = vadd.s32 %v1641, 16
      %v1794 = vadd.s32 %v1648, 16
      %v1795 = vadd.s32 %v1655, 16
      %v1796 = vadd.s32 %v1662, 16
      %v1797 = vadd.s32 %v1669, 16
      %v1798 = vsel %vm1734, %v1766, %v1452
      %v1799 = vsel %vm1735, %v1767, %v1459
      %v1800 = vsel %vm1736, %v1768, %v1466
      %v1801 = vsel %vm1737, %v1769, %v1473
      %v1802 = vsel %vm1738, %v1770, %v1480
      %v1803 = vsel %vm1739, %v1771, %v1487
      %v1804 = vsel %vm1740, %v1772, %v1494
      %v1805 = vsel %vm1741, %v1773, %v1501
      %v1806 = vsel %vm1742, %v1774, %v1508
      %v1807 = vsel %vm1743, %v1775, %v1515
      %v1808 = vsel %vm1744, %v1776, %v1522
      %v1809 = vsel %vm1745, %v1777, %v1529
      %v1810 = vsel %vm1746, %v1778, %v1536
      %v1811 = vsel %vm1747, %v1779, %v1543
      %v1812 = vsel %vm1748, %v1780, %v1550
      %v1813 = vsel %vm1749, %v1781, %v1557
      %v1814 = vsel %vm1750, %v1782, %v1564
      %v1815 = vsel %vm1751, %v1783, %v1571
      %v1816 = vsel %vm1752, %v1784, %v1578
      %v1817 = vsel %vm1753, %v1785, %v1585
      %v1818 = vsel %vm1754, %v1786, %v1592
      %v1819 = vsel %vm1755, %v1787, %v1599
      %v1820 = vsel %vm1756, %v1788, %v1606
      %v1821 = vsel %vm1757, %v1789, %v1613
      %v1822 = vsel %vm1758, %v1790, %v1620
      %v1823 = vsel %vm1759, %v1791, %v1627
      %v1824 = vsel %vm1760, %v1792, %v1634
      %v1825 = vsel %vm1761, %v1793, %v1641
      %v1826 = vsel %vm1762, %v1794, %v1648
      %v1827 = vsel %vm1763, %v1795, %v1655
      %v1828 = vsel %vm1764, %v1796, %v1662
      %v1829 = vsel %vm1765, %v1797, %v1669
      %vm1830 = vcmp.gt.s32.totalorder %v1798, 0
      %vm1831 = vcmp.gt.s32.totalorder %v1799, 0
      %vm1832 = vcmp.gt.s32.totalorder %v1800, 0
      %vm1833 = vcmp.gt.s32.totalorder %v1801, 0
      %vm1834 = vcmp.gt.s32.totalorder %v1802, 0
      %vm1835 = vcmp.gt.s32.totalorder %v1803, 0
      %vm1836 = vcmp.gt.s32.totalorder %v1804, 0
      %vm1837 = vcmp.gt.s32.totalorder %v1805, 0
      %vm1838 = vcmp.gt.s32.totalorder %v1806, 0
      %vm1839 = vcmp.gt.s32.totalorder %v1807, 0
      %vm1840 = vcmp.gt.s32.totalorder %v1808, 0
      %vm1841 = vcmp.gt.s32.totalorder %v1809, 0
      %vm1842 = vcmp.gt.s32.totalorder %v1810, 0
      %vm1843 = vcmp.gt.s32.totalorder %v1811, 0
      %vm1844 = vcmp.gt.s32.totalorder %v1812, 0
      %vm1845 = vcmp.gt.s32.totalorder %v1813, 0
      %vm1846 = vcmp.gt.s32.totalorder %v1814, 0
      %vm1847 = vcmp.gt.s32.totalorder %v1815, 0
      %vm1848 = vcmp.gt.s32.totalorder %v1816, 0
      %vm1849 = vcmp.gt.s32.totalorder %v1817, 0
      %vm1850 = vcmp.gt.s32.totalorder %v1818, 0
      %vm1851 = vcmp.gt.s32.totalorder %v1819, 0
      %vm1852 = vcmp.gt.s32.totalorder %v1820, 0
      %vm1853 = vcmp.gt.s32.totalorder %v1821, 0
      %vm1854 = vcmp.gt.s32.totalorder %v1822, 0
      %vm1855 = vcmp.gt.s32.totalorder %v1823, 0
      %vm1856 = vcmp.gt.s32.totalorder %v1824, 0
      %vm1857 = vcmp.gt.s32.totalorder %v1825, 0
      %vm1858 = vcmp.gt.s32.totalorder %v1826, 0
      %vm1859 = vcmp.gt.s32.totalorder %v1827, 0
      %vm1860 = vcmp.gt.s32.totalorder %v1828, 0
      %vm1861 = vcmp.gt.s32.totalorder %v1829, 0
      %vm1862 = vcmp.lt.s32.totalorder %v1798, 15
      %vm1863 = vcmp.lt.s32.totalorder %v1799, 15
      %vm1864 = vcmp.lt.s32.totalorder %v1800, 15
      %vm1865 = vcmp.lt.s32.totalorder %v1801, 15
      %vm1866 = vcmp.lt.s32.totalorder %v1802, 15
      %vm1867 = vcmp.lt.s32.totalorder %v1803, 15
      %vm1868 = vcmp.lt.s32.totalorder %v1804, 15
      %vm1869 = vcmp.lt.s32.totalorder %v1805, 15
      %vm1870 = vcmp.lt.s32.totalorder %v1806, 15
      %vm1871 = vcmp.lt.s32.totalorder %v1807, 15
      %vm1872 = vcmp.lt.s32.totalorder %v1808, 15
      %vm1873 = vcmp.lt.s32.totalorder %v1809, 15
      %vm1874 = vcmp.lt.s32.totalorder %v1810, 15
      %vm1875 = vcmp.lt.s32.totalorder %v1811, 15
      %vm1876 = vcmp.lt.s32.totalorder %v1812, 15
      %vm1877 = vcmp.lt.s32.totalorder %v1813, 15
      %vm1878 = vcmp.lt.s32.totalorder %v1814, 15
      %vm1879 = vcmp.lt.s32.totalorder %v1815, 15
      %vm1880 = vcmp.lt.s32.totalorder %v1816, 15
      %vm1881 = vcmp.lt.s32.totalorder %v1817, 15
      %vm1882 = vcmp.lt.s32.totalorder %v1818, 15
      %vm1883 = vcmp.lt.s32.totalorder %v1819, 15
      %vm1884 = vcmp.lt.s32.totalorder %v1820, 15
      %vm1885 = vcmp.lt.s32.totalorder %v1821, 15
      %vm1886 = vcmp.lt.s32.totalorder %v1822, 15
      %vm1887 = vcmp.lt.s32.totalorder %v1823, 15
      %vm1888 = vcmp.lt.s32.totalorder %v1824, 15
      %vm1889 = vcmp.lt.s32.totalorder %v1825, 15
      %vm1890 = vcmp.lt.s32.totalorder %v1826, 15
      %vm1891 = vcmp.lt.s32.totalorder %v1827, 15
      %vm1892 = vcmp.lt.s32.totalorder %v1828, 15
      %vm1893 = vcmp.lt.s32.totalorder %v1829, 15
      %v1894 = vld [vmem:[#allocation2 + $0x7] sm:$0xff]
      %v1895 = vld [vmem:[#allocation2 + $0xf] sm:$0xff]
      %v1896 = vld [vmem:[#allocation2 + $0x17] sm:$0xff]
      %v1897 = vld [vmem:[#allocation2 + $0x1f] sm:$0xff]
      %v1898 = vld [vmem:[#allocation2 + $0x27] sm:$0xff]
      %v1899 = vld [vmem:[#allocation2 + $0x2f] sm:$0xff]
      %v1900 = vld [vmem:[#allocation2 + $0x37] sm:$0xff]
      %v1901 = vld [vmem:[#allocation2 + $0x3f] sm:$0xff]
      %v1902 = vld [vmem:[#allocation2 + $0x47] sm:$0xff]
      %v1903 = vld [vmem:[#allocation2 + $0x4f] sm:$0xff]
      %v1904 = vld [vmem:[#allocation2 + $0x57] sm:$0xff]
      %v1905 = vld [vmem:[#allocation2 + $0x5f] sm:$0xff]
      %v1906 = vld [vmem:[#allocation2 + $0x67] sm:$0xff]
      %v1907 = vld [vmem:[#allocation2 + $0x6f] sm:$0xff]
      %v1908 = vld [vmem:[#allocation2 + $0x77] sm:$0xff]
      %v1909 = vld [vmem:[#allocation2 + $0x7f] sm:$0xff]
      %v1910 = vld [vmem:[#allocation2 + $0x87] sm:$0xff]
      %v1911 = vld [vmem:[#allocation2 + $0x8f] sm:$0xff]
      %v1912 = vld [vmem:[#allocation2 + $0x97] sm:$0xff]
      %v1913 = vld [vmem:[#allocation2 + $0x9f] sm:$0xff]
      %v1914 = vld [vmem:[#allocation2 + $0xa7] sm:$0xff]
      %v1915 = vld [vmem:[#allocation2 + $0xaf] sm:$0xff]
      %v1916 = vld [vmem:[#allocation2 + $0xb7] sm:$0xff]
      %v1917 = vld [vmem:[#allocation2 + $0xbf] sm:$0xff]
      %v1918 = vld [vmem:[#allocation2 + $0xc7] sm:$0xff]
      %v1919 = vld [vmem:[#allocation2 + $0xcf] sm:$0xff]
      %v1920 = vld [vmem:[#allocation2 + $0xd7] sm:$0xff]
      %v1921 = vld [vmem:[#allocation2 + $0xdf] sm:$0xff]
      %v1922 = vld [vmem:[#allocation2 + $0xe7] sm:$0xff]
      %v1923 = vld [vmem:[#allocation2 + $0xef] sm:$0xff]
      %v1924 = vld [vmem:[#allocation2 + $0xf7] sm:$0xff]
      %v1925 = vld [vmem:[#allocation2 + $0xff] sm:$0xff]
      %v1926 = vsel %vm1830, 1, 0
      %v1927 = vsel %vm1831, 1, 0
      %v1928 = vsel %vm1832, 1, 0
      %v1929 = vsel %vm1833, 1, 0
      %v1930 = vsel %vm1834, 1, 0
      %v1931 = vsel %vm1835, 1, 0
      %v1932 = vsel %vm1836, 1, 0
      %v1933 = vsel %vm1837, 1, 0
      %v1934 = vsel %vm1838, 1, 0
      %v1935 = vsel %vm1839, 1, 0
      %v1936 = vsel %vm1840, 1, 0
      %v1937 = vsel %vm1841, 1, 0
      %v1938 = vsel %vm1842, 1, 0
      %v1939 = vsel %vm1843, 1, 0
      %v1940 = vsel %vm1844, 1, 0
      %v1941 = vsel %vm1845, 1, 0
      %v1942 = vsel %vm1846, 1, 0
      %v1943 = vsel %vm1847, 1, 0
      %v1944 = vsel %vm1848, 1, 0
      %v1945 = vsel %vm1849, 1, 0
      %v1946 = vsel %vm1850, 1, 0
      %v1947 = vsel %vm1851, 1, 0
      %v1948 = vsel %vm1852, 1, 0
      %v1949 = vsel %vm1853, 1, 0
      %v1950 = vsel %vm1854, 1, 0
      %v1951 = vsel %vm1855, 1, 0
      %v1952 = vsel %vm1856, 1, 0
      %v1953 = vsel %vm1857, 1, 0
      %v1954 = vsel %vm1858, 1, 0
      %v1955 = vsel %vm1859, 1, 0
      %v1956 = vsel %vm1860, 1, 0
      %v1957 = vsel %vm1861, 1, 0
      %vm1958 = vcmp.eq.s32.totalorder %v1926, 1
      %vm1959 = vcmp.eq.s32.totalorder %v1927, 1
      %vm1960 = vcmp.eq.s32.totalorder %v1928, 1
      %vm1961 = vcmp.eq.s32.totalorder %v1929, 1
      %vm1962 = vcmp.eq.s32.totalorder %v1930, 1
      %vm1963 = vcmp.eq.s32.totalorder %v1931, 1
      %vm1964 = vcmp.eq.s32.totalorder %v1932, 1
      %vm1965 = vcmp.eq.s32.totalorder %v1933, 1
      %vm1966 = vcmp.eq.s32.totalorder %v1934, 1
      %vm1967 = vcmp.eq.s32.totalorder %v1935, 1
      %vm1968 = vcmp.eq.s32.totalorder %v1936, 1
      %vm1969 = vcmp.eq.s32.totalorder %v1937, 1
      %vm1970 = vcmp.eq.s32.totalorder %v1938, 1
      %vm1971 = vcmp.eq.s32.totalorder %v1939, 1
      %vm1972 = vcmp.eq.s32.totalorder %v1940, 1
      %vm1973 = vcmp.eq.s32.totalorder %v1941, 1
      %vm1974 = vcmp.eq.s32.totalorder %v1942, 1
      %vm1975 = vcmp.eq.s32.totalorder %v1943, 1
      %vm1976 = vcmp.eq.s32.totalorder %v1944, 1
      %vm1977 = vcmp.eq.s32.totalorder %v1945, 1
      %vm1978 = vcmp.eq.s32.totalorder %v1946, 1
      %vm1979 = vcmp.eq.s32.totalorder %v1947, 1
      %vm1980 = vcmp.eq.s32.totalorder %v1948, 1
      %vm1981 = vcmp.eq.s32.totalorder %v1949, 1
      %vm1982 = vcmp.eq.s32.totalorder %v1950, 1
      %vm1983 = vcmp.eq.s32.totalorder %v1951, 1
      %vm1984 = vcmp.eq.s32.totalorder %v1952, 1
      %vm1985 = vcmp.eq.s32.totalorder %v1953, 1
      %vm1986 = vcmp.eq.s32.totalorder %v1954, 1
      %vm1987 = vcmp.eq.s32.totalorder %v1955, 1
      %vm1988 = vcmp.eq.s32.totalorder %v1956, 1
      %vm1989 = vcmp.eq.s32.totalorder %v1957, 1
      %v1990 = vsel %vm1958, %v1894, 0.0
      %v1991 = vsel %vm1959, %v1895, 0.0
      %v1992 = vsel %vm1960, %v1896, 0.0
      %v1993 = vsel %vm1961, %v1897, 0.0
      %v1994 = vsel %vm1962, %v1898, 0.0
      %v1995 = vsel %vm1963, %v1899, 0.0
      %v1996 = vsel %vm1964, %v1900, 0.0
      %v1997 = vsel %vm1965, %v1901, 0.0
      %v1998 = vsel %vm1966, %v1902, 0.0
      %v1999 = vsel %vm1967, %v1903, 0.0
      %v2000 = vsel %vm1968, %v1904, 0.0
      %v2001 = vsel %vm1969, %v1905, 0.0
      %v2002 = vsel %vm1970, %v1906, 0.0
      %v2003 = vsel %vm1971, %v1907, 0.0
      %v2004 = vsel %vm1972, %v1908, 0.0
      %v2005 = vsel %vm1973, %v1909, 0.0
      %v2006 = vsel %vm1974, %v1910, 0.0
      %v2007 = vsel %vm1975, %v1911, 0.0
      %v2008 = vsel %vm1976, %v1912, 0.0
      %v2009 = vsel %vm1977, %v1913, 0.0
      %v2010 = vsel %vm1978, %v1914, 0.0
      %v2011 = vsel %vm1979, %v1915, 0.0
      %v2012 = vsel %vm1980, %v1916, 0.0
      %v2013 = vsel %vm1981, %v1917, 0.0
      %v2014 = vsel %vm1982, %v1918, 0.0
      %v2015 = vsel %vm1983, %v1919, 0.0
      %v2016 = vsel %vm1984, %v1920, 0.0
      %v2017 = vsel %vm1985, %v1921, 0.0
      %v2018 = vsel %vm1986, %v1922, 0.0
      %v2019 = vsel %vm1987, %v1923, 0.0
      %v2020 = vsel %vm1988, %v1924, 0.0
      %v2021 = vsel %vm1989, %v1925, 0.0
      %v2022 = vperm.slane %v1411, 0
      %v2023 = vmul.f32 %v1990, %v2022
      %v2024 = vmul.f32 %v1991, %v2022
      %v2025 = vmul.f32 %v1992, %v2022
      %v2026 = vmul.f32 %v1993, %v2022
      %v2027 = vmul.f32 %v1994, %v2022
      %v2028 = vmul.f32 %v1995, %v2022
      %v2029 = vmul.f32 %v1996, %v2022
      %v2030 = vmul.f32 %v1997, %v2022
      %v2031 = vmul.f32 %v1998, %v2022
      %v2032 = vmul.f32 %v1999, %v2022
      %v2033 = vmul.f32 %v2000, %v2022
      %v2034 = vmul.f32 %v2001, %v2022
      %v2035 = vmul.f32 %v2002, %v2022
      %v2036 = vmul.f32 %v2003, %v2022
      %v2037 = vmul.f32 %v2004, %v2022
      %v2038 = vmul.f32 %v2005, %v2022
      %v2039 = vmul.f32 %v2006, %v2022
      %v2040 = vmul.f32 %v2007, %v2022
      %v2041 = vmul.f32 %v2008, %v2022
      %v2042 = vmul.f32 %v2009, %v2022
      %v2043 = vmul.f32 %v2010, %v2022
      %v2044 = vmul.f32 %v2011, %v2022
      %v2045 = vmul.f32 %v2012, %v2022
      %v2046 = vmul.f32 %v2013, %v2022
      %v2047 = vmul.f32 %v2014, %v2022
      %v2048 = vmul.f32 %v2015, %v2022
      %v2049 = vmul.f32 %v2016, %v2022
      %v2050 = vmul.f32 %v2017, %v2022
      %v2051 = vmul.f32 %v2018, %v2022
      %v2052 = vmul.f32 %v2019, %v2022
      %v2053 = vmul.f32 %v2020, %v2022
      %v2054 = vmul.f32 %v2021, %v2022
      %v2055 = vadd.f32 %v2023, 0.0
      %v2056 = vadd.f32 %v2024, 0.0
      %v2057 = vadd.f32 %v2025, 0.0
      %v2058 = vadd.f32 %v2026, 0.0
      %v2059 = vadd.f32 %v2027, 0.0
      %v2060 = vadd.f32 %v2028, 0.0
      %v2061 = vadd.f32 %v2029, 0.0
      %v2062 = vadd.f32 %v2030, 0.0
      %v2063 = vadd.f32 %v2031, 0.0
      %v2064 = vadd.f32 %v2032, 0.0
      %v2065 = vadd.f32 %v2033, 0.0
      %v2066 = vadd.f32 %v2034, 0.0
      %v2067 = vadd.f32 %v2035, 0.0
      %v2068 = vadd.f32 %v2036, 0.0
      %v2069 = vadd.f32 %v2037, 0.0
      %v2070 = vadd.f32 %v2038, 0.0
      %v2071 = vadd.f32 %v2039, 0.0
      %v2072 = vadd.f32 %v2040, 0.0
      %v2073 = vadd.f32 %v2041, 0.0
      %v2074 = vadd.f32 %v2042, 0.0
      %v2075 = vadd.f32 %v2043, 0.0
      %v2076 = vadd.f32 %v2044, 0.0
      %v2077 = vadd.f32 %v2045, 0.0
      %v2078 = vadd.f32 %v2046, 0.0
      %v2079 = vadd.f32 %v2047, 0.0
      %v2080 = vadd.f32 %v2048, 0.0
      %v2081 = vadd.f32 %v2049, 0.0
      %v2082 = vadd.f32 %v2050, 0.0
      %v2083 = vadd.f32 %v2051, 0.0
      %v2084 = vadd.f32 %v2052, 0.0
      %v2085 = vadd.f32 %v2053, 0.0
      %v2086 = vadd.f32 %v2054, 0.0
      %v2087 = vld [vmem:[#allocation2 + $0x8] sm:$0xff]
      %v2088 = vld [vmem:[#allocation2 + $0x10] sm:$0xff]
      %v2089 = vld [vmem:[#allocation2 + $0x18] sm:$0xff]
      %v2090 = vld [vmem:[#allocation2 + $0x20] sm:$0xff]
      %v2091 = vld [vmem:[#allocation2 + $0x28] sm:$0xff]
      %v2092 = vld [vmem:[#allocation2 + $0x30] sm:$0xff]
      %v2093 = vld [vmem:[#allocation2 + $0x38] sm:$0xff]
      %v2094 = vld [vmem:[#allocation2 + $0x40] sm:$0xff]
      %v2095 = vld [vmem:[#allocation2 + $0x48] sm:$0xff]
      %v2096 = vld [vmem:[#allocation2 + $0x50] sm:$0xff]
      %v2097 = vld [vmem:[#allocation2 + $0x58] sm:$0xff]
      %v2098 = vld [vmem:[#allocation2 + $0x60] sm:$0xff]
      %v2099 = vld [vmem:[#allocation2 + $0x68] sm:$0xff]
      %v2100 = vld [vmem:[#allocation2 + $0x70] sm:$0xff]
      %v2101 = vld [vmem:[#allocation2 + $0x78] sm:$0xff]
      %v2102 = vld [vmem:[#allocation2 + $0x80] sm:$0xff]
      %v2103 = vld [vmem:[#allocation2 + $0x88] sm:$0xff]
      %v2104 = vld [vmem:[#allocation2 + $0x90] sm:$0xff]
      %v2105 = vld [vmem:[#allocation2 + $0x98] sm:$0xff]
      %v2106 = vld [vmem:[#allocation2 + $0xa0] sm:$0xff]
      %v2107 = vld [vmem:[#allocation2 + $0xa8] sm:$0xff]
      %v2108 = vld [vmem:[#allocation2 + $0xb0] sm:$0xff]
      %v2109 = vld [vmem:[#allocation2 + $0xb8] sm:$0xff]
      %v2110 = vld [vmem:[#allocation2 + $0xc0] sm:$0xff]
      %v2111 = vld [vmem:[#allocation2 + $0xc8] sm:$0xff]
      %v2112 = vld [vmem:[#allocation2 + $0xd0] sm:$0xff]
      %v2113 = vld [vmem:[#allocation2 + $0xd8] sm:$0xff]
      %v2114 = vld [vmem:[#allocation2 + $0xe0] sm:$0xff]
      %v2115 = vld [vmem:[#allocation2 + $0xe8] sm:$0xff]
      %v2116 = vld [vmem:[#allocation2 + $0xf0] sm:$0xff]
      %v2117 = vld [vmem:[#allocation2 + $0xf8] sm:$0xff]
      %v2118 = vld [vmem:[#allocation2 + $0x100] sm:$0xff]
      %v2119 = vperm.slane %v1411, 1
      %v2120 = vmul.f32 %v2087, %v2119
      %v2121 = vmul.f32 %v2088, %v2119
      %v2122 = vmul.f32 %v2089, %v2119
      %v2123 = vmul.f32 %v2090, %v2119
      %v2124 = vmul.f32 %v2091, %v2119
      %v2125 = vmul.f32 %v2092, %v2119
      %v2126 = vmul.f32 %v2093, %v2119
      %v2127 = vmul.f32 %v2094, %v2119
      %v2128 = vmul.f32 %v2095, %v2119
      %v2129 = vmul.f32 %v2096, %v2119
      %v2130 = vmul.f32 %v2097, %v2119
      %v2131 = vmul.f32 %v2098, %v2119
      %v2132 = vmul.f32 %v2099, %v2119
      %v2133 = vmul.f32 %v2100, %v2119
      %v2134 = vmul.f32 %v2101, %v2119
      %v2135 = vmul.f32 %v2102, %v2119
      %v2136 = vmul.f32 %v2103, %v2119
      %v2137 = vmul.f32 %v2104, %v2119
      %v2138 = vmul.f32 %v2105, %v2119
      %v2139 = vmul.f32 %v2106, %v2119
      %v2140 = vmul.f32 %v2107, %v2119
      %v2141 = vmul.f32 %v2108, %v2119
      %v2142 = vmul.f32 %v2109, %v2119
      %v2143 = vmul.f32 %v2110, %v2119
      %v2144 = vmul.f32 %v2111, %v2119
      %v2145 = vmul.f32 %v2112, %v2119
      %v2146 = vmul.f32 %v2113, %v2119
      %v2147 = vmul.f32 %v2114, %v2119
      %v2148 = vmul.f32 %v2115, %v2119
      %v2149 = vmul.f32 %v2116, %v2119
      %v2150 = vmul.f32 %v2117, %v2119
      %v2151 = vmul.f32 %v2118, %v2119
      %v2152 = vadd.f32 %v2055, %v2120
      %v2153 = vadd.f32 %v2056, %v2121
      %v2154 = vadd.f32 %v2057, %v2122
      %v2155 = vadd.f32 %v2058, %v2123
      %v2156 = vadd.f32 %v2059, %v2124
      %v2157 = vadd.f32 %v2060, %v2125
      %v2158 = vadd.f32 %v2061, %v2126
      %v2159 = vadd.f32 %v2062, %v2127
      %v2160 = vadd.f32 %v2063, %v2128
      %v2161 = vadd.f32 %v2064, %v2129
      %v2162 = vadd.f32 %v2065, %v2130
      %v2163 = vadd.f32 %v2066, %v2131
      %v2164 = vadd.f32 %v2067, %v2132
      %v2165 = vadd.f32 %v2068, %v2133
      %v2166 = vadd.f32 %v2069, %v2134
      %v2167 = vadd.f32 %v2070, %v2135
      %v2168 = vadd.f32 %v2071, %v2136
      %v2169 = vadd.f32 %v2072, %v2137
      %v2170 = vadd.f32 %v2073, %v2138
      %v2171 = vadd.f32 %v2074, %v2139
      %v2172 = vadd.f32 %v2075, %v2140
      %v2173 = vadd.f32 %v2076, %v2141
      %v2174 = vadd.f32 %v2077, %v2142
      %v2175 = vadd.f32 %v2078, %v2143
      %v2176 = vadd.f32 %v2079, %v2144
      %v2177 = vadd.f32 %v2080, %v2145
      %v2178 = vadd.f32 %v2081, %v2146
      %v2179 = vadd.f32 %v2082, %v2147
      %v2180 = vadd.f32 %v2083, %v2148
      %v2181 = vadd.f32 %v2084, %v2149
      %v2182 = vadd.f32 %v2085, %v2150
      %v2183 = vadd.f32 %v2086, %v2151
      %v2184 = vld [vmem:[#allocation2 + $0x9] sm:$0xff]
      %v2185 = vld [vmem:[#allocation2 + $0x11] sm:$0xff]
      %v2186 = vld [vmem:[#allocation2 + $0x19] sm:$0xff]
      %v2187 = vld [vmem:[#allocation2 + $0x21] sm:$0xff]
      %v2188 = vld [vmem:[#allocation2 + $0x29] sm:$0xff]
      %v2189 = vld [vmem:[#allocation2 + $0x31] sm:$0xff]
      %v2190 = vld [vmem:[#allocation2 + $0x39] sm:$0xff]
      %v2191 = vld [vmem:[#allocation2 + $0x41] sm:$0xff]
      %v2192 = vld [vmem:[#allocation2 + $0x49] sm:$0xff]
      %v2193 = vld [vmem:[#allocation2 + $0x51] sm:$0xff]
      %v2194 = vld [vmem:[#allocation2 + $0x59] sm:$0xff]
      %v2195 = vld [vmem:[#allocation2 + $0x61] sm:$0xff]
      %v2196 = vld [vmem:[#allocation2 + $0x69] sm:$0xff]
      %v2197 = vld [vmem:[#allocation2 + $0x71] sm:$0xff]
      %v2198 = vld [vmem:[#allocation2 + $0x79] sm:$0xff]
      %v2199 = vld [vmem:[#allocation2 + $0x81] sm:$0xff]
      %v2200 = vld [vmem:[#allocation2 + $0x89] sm:$0xff]
      %v2201 = vld [vmem:[#allocation2 + $0x91] sm:$0xff]
      %v2202 = vld [vmem:[#allocation2 + $0x99] sm:$0xff]
      %v2203 = vld [vmem:[#allocation2 + $0xa1] sm:$0xff]
      %v2204 = vld [vmem:[#allocation2 + $0xa9] sm:$0xff]
      %v2205 = vld [vmem:[#allocation2 + $0xb1] sm:$0xff]
      %v2206 = vld [vmem:[#allocation2 + $0xb9] sm:$0xff]
      %v2207 = vld [vmem:[#allocation2 + $0xc1] sm:$0xff]
      %v2208 = vld [vmem:[#allocation2 + $0xc9] sm:$0xff]
      %v2209 = vld [vmem:[#allocation2 + $0xd1] sm:$0xff]
      %v2210 = vld [vmem:[#allocation2 + $0xd9] sm:$0xff]
      %v2211 = vld [vmem:[#allocation2 + $0xe1] sm:$0xff]
      %v2212 = vld [vmem:[#allocation2 + $0xe9] sm:$0xff]
      %v2213 = vld [vmem:[#allocation2 + $0xf1] sm:$0xff]
      %v2214 = vld [vmem:[#allocation2 + $0xf9] sm:$0xff]
      %v2215 = vld [vmem:[#allocation2 + $0x101] sm:$0xff]
      %v2216 = vsel %vm1862, 1, 0
      %v2217 = vsel %vm1863, 1, 0
      %v2218 = vsel %vm1864, 1, 0
      %v2219 = vsel %vm1865, 1, 0
      %v2220 = vsel %vm1866, 1, 0
      %v2221 = vsel %vm1867, 1, 0
      %v2222 = vsel %vm1868, 1, 0
      %v2223 = vsel %vm1869, 1, 0
      %v2224 = vsel %vm1870, 1, 0
      %v2225 = vsel %vm1871, 1, 0
      %v2226 = vsel %vm1872, 1, 0
      %v2227 = vsel %vm1873, 1, 0
      %v2228 = vsel %vm1874, 1, 0
      %v2229 = vsel %vm1875, 1, 0
      %v2230 = vsel %vm1876, 1, 0
      %v2231 = vsel %vm1877, 1, 0
      %v2232 = vsel %vm1878, 1, 0
      %v2233 = vsel %vm1879, 1, 0
      %v2234 = vsel %vm1880, 1, 0
      %v2235 = vsel %vm1881, 1, 0
      %v2236 = vsel %vm1882, 1, 0
      %v2237 = vsel %vm1883, 1, 0
      %v2238 = vsel %vm1884, 1, 0
      %v2239 = vsel %vm1885, 1, 0
      %v2240 = vsel %vm1886, 1, 0
      %v2241 = vsel %vm1887, 1, 0
      %v2242 = vsel %vm1888, 1, 0
      %v2243 = vsel %vm1889, 1, 0
      %v2244 = vsel %vm1890, 1, 0
      %v2245 = vsel %vm1891, 1, 0
      %v2246 = vsel %vm1892, 1, 0
      %v2247 = vsel %vm1893, 1, 0
      %vm2248 = vcmp.eq.s32.totalorder %v2216, 1
      %vm2249 = vcmp.eq.s32.totalorder %v2217, 1
      %vm2250 = vcmp.eq.s32.totalorder %v2218, 1
      %vm2251 = vcmp.eq.s32.totalorder %v2219, 1
      %vm2252 = vcmp.eq.s32.totalorder %v2220, 1
      %vm2253 = vcmp.eq.s32.totalorder %v2221, 1
      %vm2254 = vcmp.eq.s32.totalorder %v2222, 1
      %vm2255 = vcmp.eq.s32.totalorder %v2223, 1
      %vm2256 = vcmp.eq.s32.totalorder %v2224, 1
      %vm2257 = vcmp.eq.s32.totalorder %v2225, 1
      %vm2258 = vcmp.eq.s32.totalorder %v2226, 1
      %vm2259 = vcmp.eq.s32.totalorder %v2227, 1
      %vm2260 = vcmp.eq.s32.totalorder %v2228, 1
      %vm2261 = vcmp.eq.s32.totalorder %v2229, 1
      %vm2262 = vcmp.eq.s32.totalorder %v2230, 1
      %vm2263 = vcmp.eq.s32.totalorder %v2231, 1
      %vm2264 = vcmp.eq.s32.totalorder %v2232, 1
      %vm2265 = vcmp.eq.s32.totalorder %v2233, 1
      %vm2266 = vcmp.eq.s32.totalorder %v2234, 1
      %vm2267 = vcmp.eq.s32.totalorder %v2235, 1
      %vm2268 = vcmp.eq.s32.totalorder %v2236, 1
      %vm2269 = vcmp.eq.s32.totalorder %v2237, 1
      %vm2270 = vcmp.eq.s32.totalorder %v2238, 1
      %vm2271 = vcmp.eq.s32.totalorder %v2239, 1
      %vm2272 = vcmp.eq.s32.totalorder %v2240, 1
      %vm2273 = vcmp.eq.s32.totalorder %v2241, 1
      %vm2274 = vcmp.eq.s32.totalorder %v2242, 1
      %vm2275 = vcmp.eq.s32.totalorder %v2243, 1
      %vm2276 = vcmp.eq.s32.totalorder %v2244, 1
      %vm2277 = vcmp.eq.s32.totalorder %v2245, 1
      %vm2278 = vcmp.eq.s32.totalorder %v2246, 1
      %vm2279 = vcmp.eq.s32.totalorder %v2247, 1
      %v2280 = vsel %vm2248, %v2184, 0.0
      %v2281 = vsel %vm2249, %v2185, 0.0
      %v2282 = vsel %vm2250, %v2186, 0.0
      %v2283 = vsel %vm2251, %v2187, 0.0
      %v2284 = vsel %vm2252, %v2188, 0.0
      %v2285 = vsel %vm2253, %v2189, 0.0
      %v2286 = vsel %vm2254, %v2190, 0.0
      %v2287 = vsel %vm2255, %v2191, 0.0
      %v2288 = vsel %vm2256, %v2192, 0.0
      %v2289 = vsel %vm2257, %v2193, 0.0
      %v2290 = vsel %vm2258, %v2194, 0.0
      %v2291 = vsel %vm2259, %v2195, 0.0
      %v2292 = vsel %vm2260, %v2196, 0.0
      %v2293 = vsel %vm2261, %v2197, 0.0
      %v2294 = vsel %vm2262, %v2198, 0.0
      %v2295 = vsel %vm2263, %v2199, 0.0
      %v2296 = vsel %vm2264, %v2200, 0.0
      %v2297 = vsel %vm2265, %v2201, 0.0
      %v2298 = vsel %vm2266, %v2202, 0.0
      %v2299 = vsel %vm2267, %v2203, 0.0
      %v2300 = vsel %vm2268, %v2204, 0.0
      %v2301 = vsel %vm2269, %v2205, 0.0
      %v2302 = vsel %vm2270, %v2206, 0.0
      %v2303 = vsel %vm2271, %v2207, 0.0
      %v2304 = vsel %vm2272, %v2208, 0.0
      %v2305 = vsel %vm2273, %v2209, 0.0
      %v2306 = vsel %vm2274, %v2210, 0.0
      %v2307 = vsel %vm2275, %v2211, 0.0
      %v2308 = vsel %vm2276, %v2212, 0.0
      %v2309 = vsel %vm2277, %v2213, 0.0
      %v2310 = vsel %vm2278, %v2214, 0.0
      %v2311 = vsel %vm2279, %v2215, 0.0
      %v2312 = vperm.slane %v1411, 2
      %v2313 = vmul.f32 %v2280, %v2312
      %v2314 = vmul.f32 %v2281, %v2312
      %v2315 = vmul.f32 %v2282, %v2312
      %v2316 = vmul.f32 %v2283, %v2312
      %v2317 = vmul.f32 %v2284, %v2312
      %v2318 = vmul.f32 %v2285, %v2312
      %v2319 = vmul.f32 %v2286, %v2312
      %v2320 = vmul.f32 %v2287, %v2312
      %v2321 = vmul.f32 %v2288, %v2312
      %v2322 = vmul.f32 %v2289, %v2312
      %v2323 = vmul.f32 %v2290, %v2312
      %v2324 = vmul.f32 %v2291, %v2312
      %v2325 = vmul.f32 %v2292, %v2312
      %v2326 = vmul.f32 %v2293, %v2312
      %v2327 = vmul.f32 %v2294, %v2312
      %v2328 = vmul.f32 %v2295, %v2312
      %v2329 = vmul.f32 %v2296, %v2312
      %v2330 = vmul.f32 %v2297, %v2312
      %v2331 = vmul.f32 %v2298, %v2312
      %v2332 = vmul.f32 %v2299, %v2312
      %v2333 = vmul.f32 %v2300, %v2312
      %v2334 = vmul.f32 %v2301, %v2312
      %v2335 = vmul.f32 %v2302, %v2312
      %v2336 = vmul.f32 %v2303, %v2312
      %v2337 = vmul.f32 %v2304, %v2312
      %v2338 = vmul.f32 %v2305, %v2312
      %v2339 = vmul.f32 %v2306, %v2312
      %v2340 = vmul.f32 %v2307, %v2312
      %v2341 = vmul.f32 %v2308, %v2312
      %v2342 = vmul.f32 %v2309, %v2312
      %v2343 = vmul.f32 %v2310, %v2312
      %v2344 = vmul.f32 %v2311, %v2312
      %v2345 = vadd.f32 %v2152, %v2313
      %v2346 = vadd.f32 %v2153, %v2314
      %v2347 = vadd.f32 %v2154, %v2315
      %v2348 = vadd.f32 %v2155, %v2316
      %v2349 = vadd.f32 %v2156, %v2317
      %v2350 = vadd.f32 %v2157, %v2318
      %v2351 = vadd.f32 %v2158, %v2319
      %v2352 = vadd.f32 %v2159, %v2320
      %v2353 = vadd.f32 %v2160, %v2321
      %v2354 = vadd.f32 %v2161, %v2322
      %v2355 = vadd.f32 %v2162, %v2323
      %v2356 = vadd.f32 %v2163, %v2324
      %v2357 = vadd.f32 %v2164, %v2325
      %v2358 = vadd.f32 %v2165, %v2326
      %v2359 = vadd.f32 %v2166, %v2327
      %v2360 = vadd.f32 %v2167, %v2328
      %v2361 = vadd.f32 %v2168, %v2329
      %v2362 = vadd.f32 %v2169, %v2330
      %v2363 = vadd.f32 %v2170, %v2331
      %v2364 = vadd.f32 %v2171, %v2332
      %v2365 = vadd.f32 %v2172, %v2333
      %v2366 = vadd.f32 %v2173, %v2334
      %v2367 = vadd.f32 %v2174, %v2335
      %v2368 = vadd.f32 %v2175, %v2336
      %v2369 = vadd.f32 %v2176, %v2337
      %v2370 = vadd.f32 %v2177, %v2338
      %v2371 = vadd.f32 %v2178, %v2339
      %v2372 = vadd.f32 %v2179, %v2340
      %v2373 = vadd.f32 %v2180, %v2341
      %v2374 = vadd.f32 %v2181, %v2342
      %v2375 = vadd.f32 %v2182, %v2343
      %v2376 = vadd.f32 %v2183, %v2344
      %v2377 = vld [vmem:[#allocation2 + $0x107] sm:$0xff]
      %v2378 = vld [vmem:[#allocation2 + $0x10f] sm:$0xff]
      %v2379 = vsel %vm1958, %v1896, 0.0
      %v2380 = vsel %vm1959, %v1897, 0.0
      %v2381 = vsel %vm1960, %v1898, 0.0
      %v2382 = vsel %vm1961, %v1899, 0.0
      %v2383 = vsel %vm1962, %v1900, 0.0
      %v2384 = vsel %vm1963, %v1901, 0.0
      %v2385 = vsel %vm1964, %v1902, 0.0
      %v2386 = vsel %vm1965, %v1903, 0.0
      %v2387 = vsel %vm1966, %v1904, 0.0
      %v2388 = vsel %vm1967, %v1905, 0.0
      %v2389 = vsel %vm1968, %v1906, 0.0
      %v2390 = vsel %vm1969, %v1907, 0.0
      %v2391 = vsel %vm1970, %v1908, 0.0
      %v2392 = vsel %vm1971, %v1909, 0.0
      %v2393 = vsel %vm1972, %v1910, 0.0
      %v2394 = vsel %vm1973, %v1911, 0.0
      %v2395 = vsel %vm1974, %v1912, 0.0
      %v2396 = vsel %vm1975, %v1913, 0.0
      %v2397 = vsel %vm1976, %v1914, 0.0
      %v2398 = vsel %vm1977, %v1915, 0.0
      %v2399 = vsel %vm1978, %v1916, 0.0
      %v2400 = vsel %vm1979, %v1917, 0.0
      %v2401 = vsel %vm1980, %v1918, 0.0
      %v2402 = vsel %vm1981, %v1919, 0.0
      %v2403 = vsel %vm1982, %v1920, 0.0
      %v2404 = vsel %vm1983, %v1921, 0.0
      %v2405 = vsel %vm1984, %v1922, 0.0
      %v2406 = vsel %vm1985, %v1923, 0.0
      %v2407 = vsel %vm1986, %v1924, 0.0
      %v2408 = vsel %vm1987, %v1925, 0.0
      %v2409 = vsel %vm1988, %v2377, 0.0
      %v2410 = vsel %vm1989, %v2378, 0.0
      %v2411 = vperm.slane %v1411, 3
      %v2412 = vmul.f32 %v2379, %v2411
      %v2413 = vmul.f32 %v2380, %v2411
      %v2414 = vmul.f32 %v2381, %v2411
      %v2415 = vmul.f32 %v2382, %v2411
      %v2416 = vmul.f32 %v2383, %v2411
      %v2417 = vmul.f32 %v2384, %v2411
      %v2418 = vmul.f32 %v2385, %v2411
      %v2419 = vmul.f32 %v2386, %v2411
      %v2420 = vmul.f32 %v2387, %v2411
      %v2421 = vmul.f32 %v2388, %v2411
      %v2422 = vmul.f32 %v2389, %v2411
      %v2423 = vmul.f32 %v2390, %v2411
      %v2424 = vmul.f32 %v2391, %v2411
      %v2425 = vmul.f32 %v2392, %v2411
      %v2426 = vmul.f32 %v2393, %v2411
      %v2427 = vmul.f32 %v2394, %v2411
      %v2428 = vmul.f32 %v2395, %v2411
      %v2429 = vmul.f32 %v2396, %v2411
      %v2430 = vmul.f32 %v2397, %v2411
      %v2431 = vmul.f32 %v2398, %v2411
      %v2432 = vmul.f32 %v2399, %v2411
      %v2433 = vmul.f32 %v2400, %v2411
      %v2434 = vmul.f32 %v2401, %v2411
      %v2435 = vmul.f32 %v2402, %v2411
      %v2436 = vmul.f32 %v2403, %v2411
      %v2437 = vmul.f32 %v2404, %v2411
      %v2438 = vmul.f32 %v2405, %v2411
      %v2439 = vmul.f32 %v2406, %v2411
      %v2440 = vmul.f32 %v2407, %v2411
      %v2441 = vmul.f32 %v2408, %v2411
      %v2442 = vmul.f32 %v2409, %v2411
      %v2443 = vmul.f32 %v2410, %v2411
      %v2444 = vadd.f32 %v2345, %v2412
      %v2445 = vadd.f32 %v2346, %v2413
      %v2446 = vadd.f32 %v2347, %v2414
      %v2447 = vadd.f32 %v2348, %v2415
      %v2448 = vadd.f32 %v2349, %v2416
      %v2449 = vadd.f32 %v2350, %v2417
      %v2450 = vadd.f32 %v2351, %v2418
      %v2451 = vadd.f32 %v2352, %v2419
      %v2452 = vadd.f32 %v2353, %v2420
      %v2453 = vadd.f32 %v2354, %v2421
      %v2454 = vadd.f32 %v2355, %v2422
      %v2455 = vadd.f32 %v2356, %v2423
      %v2456 = vadd.f32 %v2357, %v2424
      %v2457 = vadd.f32 %v2358, %v2425
      %v2458 = vadd.f32 %v2359, %v2426
      %v2459 = vadd.f32 %v2360, %v2427
      %v2460 = vadd.f32 %v2361, %v2428
      %v2461 = vadd.f32 %v2362, %v2429
      %v2462 = vadd.f32 %v2363, %v2430
      %v2463 = vadd.f32 %v2364, %v2431
      %v2464 = vadd.f32 %v2365, %v2432
      %v2465 = vadd.f32 %v2366, %v2433
      %v2466 = vadd.f32 %v2367, %v2434
      %v2467 = vadd.f32 %v2368, %v2435
      %v2468 = vadd.f32 %v2369, %v2436
      %v2469 = vadd.f32 %v2370, %v2437
      %v2470 = vadd.f32 %v2371, %v2438
      %v2471 = vadd.f32 %v2372, %v2439
      %v2472 = vadd.f32 %v2373, %v2440
      %v2473 = vadd.f32 %v2374, %v2441
      %v2474 = vadd.f32 %v2375, %v2442
      %v2475 = vadd.f32 %v2376, %v2443
      %v2476 = vld [vmem:[#allocation2 + $0x108] sm:$0xff]
      %v2477 = vld [vmem:[#allocation2 + $0x110] sm:$0xff]
      %v2478 = vperm.slane %v1411, 4
      %v2479 = vmul.f32 %v2089, %v2478
      %v2480 = vmul.f32 %v2090, %v2478
      %v2481 = vmul.f32 %v2091, %v2478
      %v2482 = vmul.f32 %v2092, %v2478
      %v2483 = vmul.f32 %v2093, %v2478
      %v2484 = vmul.f32 %v2094, %v2478
      %v2485 = vmul.f32 %v2095, %v2478
      %v2486 = vmul.f32 %v2096, %v2478
      %v2487 = vmul.f32 %v2097, %v2478
      %v2488 = vmul.f32 %v2098, %v2478
      %v2489 = vmul.f32 %v2099, %v2478
      %v2490 = vmul.f32 %v2100, %v2478
      %v2491 = vmul.f32 %v2101, %v2478
      %v2492 = vmul.f32 %v2102, %v2478
      %v2493 = vmul.f32 %v2103, %v2478
      %v2494 = vmul.f32 %v2104, %v2478
      %v2495 = vmul.f32 %v2105, %v2478
      %v2496 = vmul.f32 %v2106, %v2478
      %v2497 = vmul.f32 %v2107, %v2478
      %v2498 = vmul.f32 %v2108, %v2478
      %v2499 = vmul.f32 %v2109, %v2478
      %v2500 = vmul.f32 %v2110, %v2478
      %v2501 = vmul.f32 %v2111, %v2478
      %v2502 = vmul.f32 %v2112, %v2478
      %v2503 = vmul.f32 %v2113, %v2478
      %v2504 = vmul.f32 %v2114, %v2478
      %v2505 = vmul.f32 %v2115, %v2478
      %v2506 = vmul.f32 %v2116, %v2478
      %v2507 = vmul.f32 %v2117, %v2478
      %v2508 = vmul.f32 %v2118, %v2478
      %v2509 = vmul.f32 %v2476, %v2478
      %v2510 = vmul.f32 %v2477, %v2478
      %v2511 = vadd.f32 %v2444, %v2479
      %v2512 = vadd.f32 %v2445, %v2480
      %v2513 = vadd.f32 %v2446, %v2481
      %v2514 = vadd.f32 %v2447, %v2482
      %v2515 = vadd.f32 %v2448, %v2483
      %v2516 = vadd.f32 %v2449, %v2484
      %v2517 = vadd.f32 %v2450, %v2485
      %v2518 = vadd.f32 %v2451, %v2486
      %v2519 = vadd.f32 %v2452, %v2487
      %v2520 = vadd.f32 %v2453, %v2488
      %v2521 = vadd.f32 %v2454, %v2489
      %v2522 = vadd.f32 %v2455, %v2490
      %v2523 = vadd.f32 %v2456, %v2491
      %v2524 = vadd.f32 %v2457, %v2492
      %v2525 = vadd.f32 %v2458, %v2493
      %v2526 = vadd.f32 %v2459, %v2494
      %v2527 = vadd.f32 %v2460, %v2495
      %v2528 = vadd.f32 %v2461, %v2496
      %v2529 = vadd.f32 %v2462, %v2497
      %v2530 = vadd.f32 %v2463, %v2498
      %v2531 = vadd.f32 %v2464, %v2499
      %v2532 = vadd.f32 %v2465, %v2500
      %v2533 = vadd.f32 %v2466, %v2501
      %v2534 = vadd.f32 %v2467, %v2502
      %v2535 = vadd.f32 %v2468, %v2503
      %v2536 = vadd.f32 %v2469, %v2504
      %v2537 = vadd.f32 %v2470, %v2505
      %v2538 = vadd.f32 %v2471, %v2506
      %v2539 = vadd.f32 %v2472, %v2507
      %v2540 = vadd.f32 %v2473, %v2508
      %v2541 = vadd.f32 %v2474, %v2509
      %v2542 = vadd.f32 %v2475, %v2510
      %v2543 = vld [vmem:[#allocation2 + $0x109] sm:$0xff]
      %v2544 = vld [vmem:[#allocation2 + $0x111] sm:$0xff]
      %v2545 = vsel %vm2248, %v2186, 0.0
      %v2546 = vsel %vm2249, %v2187, 0.0
      %v2547 = vsel %vm2250, %v2188, 0.0
      %v2548 = vsel %vm2251, %v2189, 0.0
      %v2549 = vsel %vm2252, %v2190, 0.0
      %v2550 = vsel %vm2253, %v2191, 0.0
      %v2551 = vsel %vm2254, %v2192, 0.0
      %v2552 = vsel %vm2255, %v2193, 0.0
      %v2553 = vsel %vm2256, %v2194, 0.0
      %v2554 = vsel %vm2257, %v2195, 0.0
      %v2555 = vsel %vm2258, %v2196, 0.0
      %v2556 = vsel %vm2259, %v2197, 0.0
      %v2557 = vsel %vm2260, %v2198, 0.0
      %v2558 = vsel %vm2261, %v2199, 0.0
      %v2559 = vsel %vm2262, %v2200, 0.0
      %v2560 = vsel %vm2263, %v2201, 0.0
      %v2561 = vsel %vm2264, %v2202, 0.0
      %v2562 = vsel %vm2265, %v2203, 0.0
      %v2563 = vsel %vm2266, %v2204, 0.0
      %v2564 = vsel %vm2267, %v2205, 0.0
      %v2565 = vsel %vm2268, %v2206, 0.0
      %v2566 = vsel %vm2269, %v2207, 0.0
      %v2567 = vsel %vm2270, %v2208, 0.0
      %v2568 = vsel %vm2271, %v2209, 0.0
      %v2569 = vsel %vm2272, %v2210, 0.0
      %v2570 = vsel %vm2273, %v2211, 0.0
      %v2571 = vsel %vm2274, %v2212, 0.0
      %v2572 = vsel %vm2275, %v2213, 0.0
      %v2573 = vsel %vm2276, %v2214, 0.0
      %v2574 = vsel %vm2277, %v2215, 0.0
      %v2575 = vsel %vm2278, %v2543, 0.0
      %v2576 = vsel %vm2279, %v2544, 0.0
      %v2577 = vperm.slane %v1411, 5
      %v2578 = vmul.f32 %v2545, %v2577
      %v2579 = vmul.f32 %v2546, %v2577
      %v2580 = vmul.f32 %v2547, %v2577
      %v2581 = vmul.f32 %v2548, %v2577
      %v2582 = vmul.f32 %v2549, %v2577
      %v2583 = vmul.f32 %v2550, %v2577
      %v2584 = vmul.f32 %v2551, %v2577
      %v2585 = vmul.f32 %v2552, %v2577
      %v2586 = vmul.f32 %v2553, %v2577
      %v2587 = vmul.f32 %v2554, %v2577
      %v2588 = vmul.f32 %v2555, %v2577
      %v2589 = vmul.f32 %v2556, %v2577
      %v2590 = vmul.f32 %v2557, %v2577
      %v2591 = vmul.f32 %v2558, %v2577
      %v2592 = vmul.f32 %v2559, %v2577
      %v2593 = vmul.f32 %v2560, %v2577
      %v2594 = vmul.f32 %v2561, %v2577
      %v2595 = vmul.f32 %v2562, %v2577
      %v2596 = vmul.f32 %v2563, %v2577
      %v2597 = vmul.f32 %v2564, %v2577
      %v2598 = vmul.f32 %v2565, %v2577
      %v2599 = vmul.f32 %v2566, %v2577
      %v2600 = vmul.f32 %v2567, %v2577
      %v2601 = vmul.f32 %v2568, %v2577
      %v2602 = vmul.f32 %v2569, %v2577
      %v2603 = vmul.f32 %v2570, %v2577
      %v2604 = vmul.f32 %v2571, %v2577
      %v2605 = vmul.f32 %v2572, %v2577
      %v2606 = vmul.f32 %v2573, %v2577
      %v2607 = vmul.f32 %v2574, %v2577
      %v2608 = vmul.f32 %v2575, %v2577
      %v2609 = vmul.f32 %v2576, %v2577
      %v2610 = vadd.f32 %v2511, %v2578
      %v2611 = vadd.f32 %v2512, %v2579
      %v2612 = vadd.f32 %v2513, %v2580
      %v2613 = vadd.f32 %v2514, %v2581
      %v2614 = vadd.f32 %v2515, %v2582
      %v2615 = vadd.f32 %v2516, %v2583
      %v2616 = vadd.f32 %v2517, %v2584
      %v2617 = vadd.f32 %v2518, %v2585
      %v2618 = vadd.f32 %v2519, %v2586
      %v2619 = vadd.f32 %v2520, %v2587
      %v2620 = vadd.f32 %v2521, %v2588
      %v2621 = vadd.f32 %v2522, %v2589
      %v2622 = vadd.f32 %v2523, %v2590
      %v2623 = vadd.f32 %v2524, %v2591
      %v2624 = vadd.f32 %v2525, %v2592
      %v2625 = vadd.f32 %v2526, %v2593
      %v2626 = vadd.f32 %v2527, %v2594
      %v2627 = vadd.f32 %v2528, %v2595
      %v2628 = vadd.f32 %v2529, %v2596
      %v2629 = vadd.f32 %v2530, %v2597
      %v2630 = vadd.f32 %v2531, %v2598
      %v2631 = vadd.f32 %v2532, %v2599
      %v2632 = vadd.f32 %v2533, %v2600
      %v2633 = vadd.f32 %v2534, %v2601
      %v2634 = vadd.f32 %v2535, %v2602
      %v2635 = vadd.f32 %v2536, %v2603
      %v2636 = vadd.f32 %v2537, %v2604
      %v2637 = vadd.f32 %v2538, %v2605
      %v2638 = vadd.f32 %v2539, %v2606
      %v2639 = vadd.f32 %v2540, %v2607
      %v2640 = vadd.f32 %v2541, %v2608
      %v2641 = vadd.f32 %v2542, %v2609
      %v2642 = vld [vmem:[#allocation2 + $0x117] sm:$0xff]
      %v2643 = vld [vmem:[#allocation2 + $0x11f] sm:$0xff]
      %v2644 = vsel %vm1958, %v1898, 0.0
      %v2645 = vsel %vm1959, %v1899, 0.0
      %v2646 = vsel %vm1960, %v1900, 0.0
      %v2647 = vsel %vm1961, %v1901, 0.0
      %v2648 = vsel %vm1962, %v1902, 0.0
      %v2649 = vsel %vm1963, %v1903, 0.0
      %v2650 = vsel %vm1964, %v1904, 0.0
      %v2651 = vsel %vm1965, %v1905, 0.0
      %v2652 = vsel %vm1966, %v1906, 0.0
      %v2653 = vsel %vm1967, %v1907, 0.0
      %v2654 = vsel %vm1968, %v1908, 0.0
      %v2655 = vsel %vm1969, %v1909, 0.0
      %v2656 = vsel %vm1970, %v1910, 0.0
      %v2657 = vsel %vm1971, %v1911, 0.0
      %v2658 = vsel %vm1972, %v1912, 0.0
      %v2659 = vsel %vm1973, %v1913, 0.0
      %v2660 = vsel %vm1974, %v1914, 0.0
      %v2661 = vsel %vm1975, %v1915, 0.0
      %v2662 = vsel %vm1976, %v1916, 0.0
      %v2663 = vsel %vm1977, %v1917, 0.0
      %v2664 = vsel %vm1978, %v1918, 0.0
      %v2665 = vsel %vm1979, %v1919, 0.0
      %v2666 = vsel %vm1980, %v1920, 0.0
      %v2667 = vsel %vm1981, %v1921, 0.0
      %v2668 = vsel %vm1982, %v1922, 0.0
      %v2669 = vsel %vm1983, %v1923, 0.0
      %v2670 = vsel %vm1984, %v1924, 0.0
      %v2671 = vsel %vm1985, %v1925, 0.0
      %v2672 = vsel %vm1986, %v2377, 0.0
      %v2673 = vsel %vm1987, %v2378, 0.0
      %v2674 = vsel %vm1988, %v2642, 0.0
      %v2675 = vsel %vm1989, %v2643, 0.0
      %v2676 = vperm.slane %v1411, 6
      %v2677 = vmul.f32 %v2644, %v2676
      %v2678 = vmul.f32 %v2645, %v2676
      %v2679 = vmul.f32 %v2646, %v2676
      %v2680 = vmul.f32 %v2647, %v2676
      %v2681 = vmul.f32 %v2648, %v2676
      %v2682 = vmul.f32 %v2649, %v2676
      %v2683 = vmul.f32 %v2650, %v2676
      %v2684 = vmul.f32 %v2651, %v2676
      %v2685 = vmul.f32 %v2652, %v2676
      %v2686 = vmul.f32 %v2653, %v2676
      %v2687 = vmul.f32 %v2654, %v2676
      %v2688 = vmul.f32 %v2655, %v2676
      %v2689 = vmul.f32 %v2656, %v2676
      %v2690 = vmul.f32 %v2657, %v2676
      %v2691 = vmul.f32 %v2658, %v2676
      %v2692 = vmul.f32 %v2659, %v2676
      %v2693 = vmul.f32 %v2660, %v2676
      %v2694 = vmul.f32 %v2661, %v2676
      %v2695 = vmul.f32 %v2662, %v2676
      %v2696 = vmul.f32 %v2663, %v2676
      %v2697 = vmul.f32 %v2664, %v2676
      %v2698 = vmul.f32 %v2665, %v2676
      %v2699 = vmul.f32 %v2666, %v2676
      %v2700 = vmul.f32 %v2667, %v2676
      %v2701 = vmul.f32 %v2668, %v2676
      %v2702 = vmul.f32 %v2669, %v2676
      %v2703 = vmul.f32 %v2670, %v2676
      %v2704 = vmul.f32 %v2671, %v2676
      %v2705 = vmul.f32 %v2672, %v2676
      %v2706 = vmul.f32 %v2673, %v2676
      %v2707 = vmul.f32 %v2674, %v2676
      %v2708 = vmul.f32 %v2675, %v2676
      %v2709 = vadd.f32 %v2610, %v2677
      %v2710 = vadd.f32 %v2611, %v2678
      %v2711 = vadd.f32 %v2612, %v2679
      %v2712 = vadd.f32 %v2613, %v2680
      %v2713 = vadd.f32 %v2614, %v2681
      %v2714 = vadd.f32 %v2615, %v2682
      %v2715 = vadd.f32 %v2616, %v2683
      %v2716 = vadd.f32 %v2617, %v2684
      %v2717 = vadd.f32 %v2618, %v2685
      %v2718 = vadd.f32 %v2619, %v2686
      %v2719 = vadd.f32 %v2620, %v2687
      %v2720 = vadd.f32 %v2621, %v2688
      %v2721 = vadd.f32 %v2622, %v2689
      %v2722 = vadd.f32 %v2623, %v2690
      %v2723 = vadd.f32 %v2624, %v2691
      %v2724 = vadd.f32 %v2625, %v2692
      %v2725 = vadd.f32 %v2626, %v2693
      %v2726 = vadd.f32 %v2627, %v2694
      %v2727 = vadd.f32 %v2628, %v2695
      %v2728 = vadd.f32 %v2629, %v2696
      %v2729 = vadd.f32 %v2630, %v2697
      %v2730 = vadd.f32 %v2631, %v2698
      %v2731 = vadd.f32 %v2632, %v2699
      %v2732 = vadd.f32 %v2633, %v2700
      %v2733 = vadd.f32 %v2634, %v2701
      %v2734 = vadd.f32 %v2635, %v2702
      %v2735 = vadd.f32 %v2636, %v2703
      %v2736 = vadd.f32 %v2637, %v2704
      %v2737 = vadd.f32 %v2638, %v2705
      %v2738 = vadd.f32 %v2639, %v2706
      %v2739 = vadd.f32 %v2640, %v2707
      %v2740 = vadd.f32 %v2641, %v2708
      %v2741 = vld [vmem:[#allocation2 + $0x118] sm:$0xff]
      %v2742 = vld [vmem:[#allocation2 + $0x120] sm:$0xff]
      %v2743 = vperm.slane %v1411, 7
      %v2744 = vmul.f32 %v2091, %v2743
      %v2745 = vmul.f32 %v2092, %v2743
      %v2746 = vmul.f32 %v2093, %v2743
      %v2747 = vmul.f32 %v2094, %v2743
      %v2748 = vmul.f32 %v2095, %v2743
      %v2749 = vmul.f32 %v2096, %v2743
      %v2750 = vmul.f32 %v2097, %v2743
      %v2751 = vmul.f32 %v2098, %v2743
      %v2752 = vmul.f32 %v2099, %v2743
      %v2753 = vmul.f32 %v2100, %v2743
      %v2754 = vmul.f32 %v2101, %v2743
      %v2755 = vmul.f32 %v2102, %v2743
      %v2756 = vmul.f32 %v2103, %v2743
      %v2757 = vmul.f32 %v2104, %v2743
      %v2758 = vmul.f32 %v2105, %v2743
      %v2759 = vmul.f32 %v2106, %v2743
      %v2760 = vmul.f32 %v2107, %v2743
      %v2761 = vmul.f32 %v2108, %v2743
      %v2762 = vmul.f32 %v2109, %v2743
      %v2763 = vmul.f32 %v2110, %v2743
      %v2764 = vmul.f32 %v2111, %v2743
      %v2765 = vmul.f32 %v2112, %v2743
      %v2766 = vmul.f32 %v2113, %v2743
      %v2767 = vmul.f32 %v2114, %v2743
      %v2768 = vmul.f32 %v2115, %v2743
      %v2769 = vmul.f32 %v2116, %v2743
      %v2770 = vmul.f32 %v2117, %v2743
      %v2771 = vmul.f32 %v2118, %v2743
      %v2772 = vmul.f32 %v2476, %v2743
      %v2773 = vmul.f32 %v2477, %v2743
      %v2774 = vmul.f32 %v2741, %v2743
      %v2775 = vmul.f32 %v2742, %v2743
      %v2776 = vadd.f32 %v2709, %v2744
      %v2777 = vadd.f32 %v2710, %v2745
      %v2778 = vadd.f32 %v2711, %v2746
      %v2779 = vadd.f32 %v2712, %v2747
      %v2780 = vadd.f32 %v2713, %v2748
      %v2781 = vadd.f32 %v2714, %v2749
      %v2782 = vadd.f32 %v2715, %v2750
      %v2783 = vadd.f32 %v2716, %v2751
      %v2784 = vadd.f32 %v2717, %v2752
      %v2785 = vadd.f32 %v2718, %v2753
      %v2786 = vadd.f32 %v2719, %v2754
      %v2787 = vadd.f32 %v2720, %v2755
      %v2788 = vadd.f32 %v2721, %v2756
      %v2789 = vadd.f32 %v2722, %v2757
      %v2790 = vadd.f32 %v2723, %v2758
      %v2791 = vadd.f32 %v2724, %v2759
      %v2792 = vadd.f32 %v2725, %v2760
      %v2793 = vadd.f32 %v2726, %v2761
      %v2794 = vadd.f32 %v2727, %v2762
      %v2795 = vadd.f32 %v2728, %v2763
      %v2796 = vadd.f32 %v2729, %v2764
      %v2797 = vadd.f32 %v2730, %v2765
      %v2798 = vadd.f32 %v2731, %v2766
      %v2799 = vadd.f32 %v2732, %v2767
      %v2800 = vadd.f32 %v2733, %v2768
      %v2801 = vadd.f32 %v2734, %v2769
      %v2802 = vadd.f32 %v2735, %v2770
      %v2803 = vadd.f32 %v2736, %v2771
      %v2804 = vadd.f32 %v2737, %v2772
      %v2805 = vadd.f32 %v2738, %v2773
      %v2806 = vadd.f32 %v2739, %v2774
      %v2807 = vadd.f32 %v2740, %v2775
      %v2808 = vld [vmem:[#allocation2 + $0x119] sm:$0xff]
      %v2809 = vld [vmem:[#allocation2 + $0x121] sm:$0xff]
      %v2810 = vsel %vm2248, %v2188, 0.0
      %v2811 = vsel %vm2249, %v2189, 0.0
      %v2812 = vsel %vm2250, %v2190, 0.0
      %v2813 = vsel %vm2251, %v2191, 0.0
      %v2814 = vsel %vm2252, %v2192, 0.0
      %v2815 = vsel %vm2253, %v2193, 0.0
      %v2816 = vsel %vm2254, %v2194, 0.0
      %v2817 = vsel %vm2255, %v2195, 0.0
      %v2818 = vsel %vm2256, %v2196, 0.0
      %v2819 = vsel %vm2257, %v2197, 0.0
      %v2820 = vsel %vm2258, %v2198, 0.0
      %v2821 = vsel %vm2259, %v2199, 0.0
      %v2822 = vsel %vm2260, %v2200, 0.0
      %v2823 = vsel %vm2261, %v2201, 0.0
      %v2824 = vsel %vm2262, %v2202, 0.0
      %v2825 = vsel %vm2263, %v2203, 0.0
      %v2826 = vsel %vm2264, %v2204, 0.0
      %v2827 = vsel %vm2265, %v2205, 0.0
      %v2828 = vsel %vm2266, %v2206, 0.0
      %v2829 = vsel %vm2267, %v2207, 0.0
      %v2830 = vsel %vm2268, %v2208, 0.0
      %v2831 = vsel %vm2269, %v2209, 0.0
      %v2832 = vsel %vm2270, %v2210, 0.0
      %v2833 = vsel %vm2271, %v2211, 0.0
      %v2834 = vsel %vm2272, %v2212, 0.0
      %v2835 = vsel %vm2273, %v2213, 0.0
      %v2836 = vsel %vm2274, %v2214, 0.0
      %v2837 = vsel %vm2275, %v2215, 0.0
      %v2838 = vsel %vm2276, %v2543, 0.0
      %v2839 = vsel %vm2277, %v2544, 0.0
      %v2840 = vsel %vm2278, %v2808, 0.0
      %v2841 = vsel %vm2279, %v2809, 0.0
      %v2842 = vperm.slane %v1412, 0
      %v2843 = vmul.f32 %v2810, %v2842
      %v2844 = vmul.f32 %v2811, %v2842
      %v2845 = vmul.f32 %v2812, %v2842
      %v2846 = vmul.f32 %v2813, %v2842
      %v2847 = vmul.f32 %v2814, %v2842
      %v2848 = vmul.f32 %v2815, %v2842
      %v2849 = vmul.f32 %v2816, %v2842
      %v2850 = vmul.f32 %v2817, %v2842
      %v2851 = vmul.f32 %v2818, %v2842
      %v2852 = vmul.f32 %v2819, %v2842
      %v2853 = vmul.f32 %v2820, %v2842
      %v2854 = vmul.f32 %v2821, %v2842
      %v2855 = vmul.f32 %v2822, %v2842
      %v2856 = vmul.f32 %v2823, %v2842
      %v2857 = vmul.f32 %v2824, %v2842
      %v2858 = vmul.f32 %v2825, %v2842
      %v2859 = vmul.f32 %v2826, %v2842
      %v2860 = vmul.f32 %v2827, %v2842
      %v2861 = vmul.f32 %v2828, %v2842
      %v2862 = vmul.f32 %v2829, %v2842
      %v2863 = vmul.f32 %v2830, %v2842
      %v2864 = vmul.f32 %v2831, %v2842
      %v2865 = vmul.f32 %v2832, %v2842
      %v2866 = vmul.f32 %v2833, %v2842
      %v2867 = vmul.f32 %v2834, %v2842
      %v2868 = vmul.f32 %v2835, %v2842
      %v2869 = vmul.f32 %v2836, %v2842
      %v2870 = vmul.f32 %v2837, %v2842
      %v2871 = vmul.f32 %v2838, %v2842
      %v2872 = vmul.f32 %v2839, %v2842
      %v2873 = vmul.f32 %v2840, %v2842
      %v2874 = vmul.f32 %v2841, %v2842
      %v2875 = vadd.f32 %v2776, %v2843
      %v2876 = vadd.f32 %v2777, %v2844
      %v2877 = vadd.f32 %v2778, %v2845
      %v2878 = vadd.f32 %v2779, %v2846
      %v2879 = vadd.f32 %v2780, %v2847
      %v2880 = vadd.f32 %v2781, %v2848
      %v2881 = vadd.f32 %v2782, %v2849
      %v2882 = vadd.f32 %v2783, %v2850
      %v2883 = vadd.f32 %v2784, %v2851
      %v2884 = vadd.f32 %v2785, %v2852
      %v2885 = vadd.f32 %v2786, %v2853
      %v2886 = vadd.f32 %v2787, %v2854
      %v2887 = vadd.f32 %v2788, %v2855
      %v2888 = vadd.f32 %v2789, %v2856
      %v2889 = vadd.f32 %v2790, %v2857
      %v2890 = vadd.f32 %v2791, %v2858
      %v2891 = vadd.f32 %v2792, %v2859
      %v2892 = vadd.f32 %v2793, %v2860
      %v2893 = vadd.f32 %v2794, %v2861
      %v2894 = vadd.f32 %v2795, %v2862
      %v2895 = vadd.f32 %v2796, %v2863
      %v2896 = vadd.f32 %v2797, %v2864
      %v2897 = vadd.f32 %v2798, %v2865
      %v2898 = vadd.f32 %v2799, %v2866
      %v2899 = vadd.f32 %v2800, %v2867
      %v2900 = vadd.f32 %v2801, %v2868
      %v2901 = vadd.f32 %v2802, %v2869
      %v2902 = vadd.f32 %v2803, %v2870
      %v2903 = vadd.f32 %v2804, %v2871
      %v2904 = vadd.f32 %v2805, %v2872
      %v2905 = vadd.f32 %v2806, %v2873
      %v2906 = vadd.f32 %v2807, %v2874
      %v2907 = vld [vmem:[%s5] sm:$0x1]
      %v2909 = vperm.slane %v2907, 0
      %v2911 = vmul.f32 %v2875, %v2909
      %v2912 = vmul.f32 %v2876, %v2909
      %v2913 = vmul.f32 %v2877, %v2909
      %v2914 = vmul.f32 %v2878, %v2909
      %v2915 = vmul.f32 %v2879, %v2909
      %v2916 = vmul.f32 %v2880, %v2909
      %v2917 = vmul.f32 %v2881, %v2909
      %v2918 = vmul.f32 %v2882, %v2909
      %v2919 = vmul.f32 %v2883, %v2909
      %v2920 = vmul.f32 %v2884, %v2909
      %v2921 = vmul.f32 %v2885, %v2909
      %v2922 = vmul.f32 %v2886, %v2909
      %v2923 = vmul.f32 %v2887, %v2909
      %v2924 = vmul.f32 %v2888, %v2909
      %v2925 = vmul.f32 %v2889, %v2909
      %v2926 = vmul.f32 %v2890, %v2909
      %v2927 = vmul.f32 %v2891, %v2909
      %v2928 = vmul.f32 %v2892, %v2909
      %v2929 = vmul.f32 %v2893, %v2909
      %v2930 = vmul.f32 %v2894, %v2909
      %v2931 = vmul.f32 %v2895, %v2909
      %v2932 = vmul.f32 %v2896, %v2909
      %v2933 = vmul.f32 %v2897, %v2909
      %v2934 = vmul.f32 %v2898, %v2909
      %v2935 = vmul.f32 %v2899, %v2909
      %v2936 = vmul.f32 %v2900, %v2909
      %v2937 = vmul.f32 %v2901, %v2909
      %v2938 = vmul.f32 %v2902, %v2909
      %v2939 = vmul.f32 %v2903, %v2909
      %v2940 = vmul.f32 %v2904, %v2909
      %v2941 = vmul.f32 %v2905, %v2909
      %v2942 = vmul.f32 %v2906, %v2909
      %v2943 = vld [vmem:[%s6] sm:$0x1]
      %v2945 = vperm.slane %v2943, 0
      %v2947 = vadd.f32 %v2911, %v2945
      %v2948 = vadd.f32 %v2912, %v2945
      %v2949 = vadd.f32 %v2913, %v2945
      %v2950 = vadd.f32 %v2914, %v2945
      %v2951 = vadd.f32 %v2915, %v2945
      %v2952 = vadd.f32 %v2916, %v2945
      %v2953 = vadd.f32 %v2917, %v2945
      %v2954 = vadd.f32 %v2918, %v2945
      %v2955 = vadd.f32 %v2919, %v2945
      %v2956 = vadd.f32 %v2920, %v2945
      %v2957 = vadd.f32 %v2921, %v2945
      %v2958 = vadd.f32 %v2922, %v2945
      %v2959 = vadd.f32 %v2923, %v2945
      %v2960 = vadd.f32 %v2924, %v2945
      %v2961 = vadd.f32 %v2925, %v2945
      %v2962 = vadd.f32 %v2926, %v2945
      %v2963 = vadd.f32 %v2927, %v2945
      %v2964 = vadd.f32 %v2928, %v2945
      %v2965 = vadd.f32 %v2929, %v2945
      %v2966 = vadd.f32 %v2930, %v2945
      %v2967 = vadd.f32 %v2931, %v2945
      %v2968 = vadd.f32 %v2932, %v2945
      %v2969 = vadd.f32 %v2933, %v2945
      %v2970 = vadd.f32 %v2934, %v2945
      %v2971 = vadd.f32 %v2935, %v2945
      %v2972 = vadd.f32 %v2936, %v2945
      %v2973 = vadd.f32 %v2937, %v2945
      %v2974 = vadd.f32 %v2938, %v2945
      %v2975 = vadd.f32 %v2939, %v2945
      %v2976 = vadd.f32 %v2940, %v2945
      %v2977 = vadd.f32 %v2941, %v2945
      %v2978 = vadd.f32 %v2942, %v2945
      %v2979 = vmax.f32 %v2947, 0.0
      %v2980 = vmax.f32 %v2948, 0.0
      %v2981 = vmax.f32 %v2949, 0.0
      %v2982 = vmax.f32 %v2950, 0.0
      %v2983 = vmax.f32 %v2951, 0.0
      %v2984 = vmax.f32 %v2952, 0.0
      %v2985 = vmax.f32 %v2953, 0.0
      %v2986 = vmax.f32 %v2954, 0.0
      %v2987 = vmax.f32 %v2955, 0.0
      %v2988 = vmax.f32 %v2956, 0.0
      %v2989 = vmax.f32 %v2957, 0.0
      %v2990 = vmax.f32 %v2958, 0.0
      %v2991 = vmax.f32 %v2959, 0.0
      %v2992 = vmax.f32 %v2960, 0.0
      %v2993 = vmax.f32 %v2961, 0.0
      %v2994 = vmax.f32 %v2962, 0.0
      %v2995 = vmax.f32 %v2963, 0.0
      %v2996 = vmax.f32 %v2964, 0.0
      %v2997 = vmax.f32 %v2965, 0.0
      %v2998 = vmax.f32 %v2966, 0.0
      %v2999 = vmax.f32 %v2967, 0.0
      %v3000 = vmax.f32 %v2968, 0.0
      %v3001 = vmax.f32 %v2969, 0.0
      %v3002 = vmax.f32 %v2970, 0.0
      %v3003 = vmax.f32 %v2971, 0.0
      %v3004 = vmax.f32 %v2972, 0.0
      %v3005 = vmax.f32 %v2973, 0.0
      %v3006 = vmax.f32 %v2974, 0.0
      %v3007 = vmax.f32 %v2975, 0.0
      %v3008 = vmax.f32 %v2976, 0.0
      %v3009 = vmax.f32 %v2977, 0.0
      %v3010 = vmax.f32 %v2978, 0.0
      %v3011 = vmin.f32 %v2979, 6.0
      %v3012 = vmin.f32 %v2980, 6.0
      %v3013 = vmin.f32 %v2981, 6.0
      %v3014 = vmin.f32 %v2982, 6.0
      %v3015 = vmin.f32 %v2983, 6.0
      %v3016 = vmin.f32 %v2984, 6.0
      %v3017 = vmin.f32 %v2985, 6.0
      %v3018 = vmin.f32 %v2986, 6.0
      %v3019 = vmin.f32 %v2987, 6.0
      %v3020 = vmin.f32 %v2988, 6.0
      %v3021 = vmin.f32 %v2989, 6.0
      %v3022 = vmin.f32 %v2990, 6.0
      %v3023 = vmin.f32 %v2991, 6.0
      %v3024 = vmin.f32 %v2992, 6.0
      %v3025 = vmin.f32 %v2993, 6.0
      %v3026 = vmin.f32 %v2994, 6.0
      %v3027 = vmin.f32 %v2995, 6.0
      %v3028 = vmin.f32 %v2996, 6.0
      %v3029 = vmin.f32 %v2997, 6.0
      %v3030 = vmin.f32 %v2998, 6.0
      %v3031 = vmin.f32 %v2999, 6.0
      %v3032 = vmin.f32 %v3000, 6.0
      %v3033 = vmin.f32 %v3001, 6.0
      %v3034 = vmin.f32 %v3002, 6.0
      %v3035 = vmin.f32 %v3003, 6.0
      %v3036 = vmin.f32 %v3004, 6.0
      %v3037 = vmin.f32 %v3005, 6.0
      %v3038 = vmin.f32 %v3006, 6.0
      %v3039 = vmin.f32 %v3007, 6.0
      %v3040 = vmin.f32 %v3008, 6.0
      %v3041 = vmin.f32 %v3009, 6.0
      %v3042 = vmin.f32 %v3010, 6.0
      %v3043 = vld [vmem:[%s7] sm:$0xff]
      %v3044 = vld [vmem:[%s7 + $0x8] sm:$0xff]
      %v3045 = vld [vmem:[%s7 + $0x10] sm:$0xff]
      %v3047 = vsel %vm1340, %v3011, 0
      %v3050 = vsel %vm1340, %v3012, 0
      %v3053 = vsel %vm1340, %v3013, 0
      %v3056 = vsel %vm1340, %v3014, 0
      %v3059 = vsel %vm1340, %v3015, 0
      %v3062 = vsel %vm1340, %v3016, 0
      %v3065 = vsel %vm1340, %v3017, 0
      %v3068 = vsel %vm1340, %v3018, 0
      %v3071 = vsel %vm1340, %v3019, 0
      %v3074 = vsel %vm1340, %v3020, 0
      %v3077 = vsel %vm1340, %v3021, 0
      %v3080 = vsel %vm1340, %v3022, 0
      %v3083 = vsel %vm1340, %v3023, 0
      %v3086 = vsel %vm1340, %v3024, 0
      %v3089 = vsel %vm1340, %v3025, 0
      %v3092 = vsel %vm1340, %v3026, 0
      %v3095 = vsel %vm1340, %v3027, 0
      %v3098 = vsel %vm1340, %v3028, 0
      %v3101 = vsel %vm1340, %v3029, 0
      %v3104 = vsel %vm1340, %v3030, 0
      %v3107 = vsel %vm1340, %v3031, 0
      %v3110 = vsel %vm1340, %v3032, 0
      %v3113 = vsel %vm1340, %v3033, 0
      %v3116 = vsel %vm1340, %v3034, 0
      %v3119 = vsel %vm1340, %v3035, 0
      %v3122 = vsel %vm1340, %v3036, 0
      %v3125 = vsel %vm1340, %v3037, 0
      %v3128 = vsel %vm1340, %v3038, 0
      %v3131 = vsel %vm1340, %v3039, 0
      %v3134 = vsel %vm1340, %v3040, 0
      %v3137 = vsel %vm1340, %v3041, 0
      %v3140 = vsel %vm1340, %v3042, 0
      %3142 = vmatpush.msra.mxu0 0.0
      %3143 = vmatpush.msra.mxu0 0.0
      %3144 = vmatpush.msra.mxu0 0.0
      %3145 = vmatpush.msra.mxu0 0.0
      %3146 = vmatpush.msra.mxu0 0.0
      %3147 = vmatpush.msra.mxu0 0.0
      %3148 = vmatpush.msra.mxu0 0.0
      %3149 = vmatpush.msra.mxu0 0.0
      %3150 = vmatpush.msra.mxu0 0.0
      %3151 = vmatpush.msra.mxu0 0.0
      %3152 = vmatpush.msra.mxu0 0.0
      %3153 = vmatpush.msra.mxu0 0.0
      %3154 = vmatpush.msra.mxu0 0.0
      %3155 = vmatpush.msra.mxu0 %v3045
      %3156 = vmatpush.msra.mxu0 %v3044
      %3157 = vmatpush.msra.mxu0 %v3043
      %3158 = vmatmul.f32.gmra.mxu0 %v3047
      %v3159 = vpop.f32.mrf.mxu0
      %v3160 = vadd.f32 0.0, %v3159
      %3161 = vmatmul.f32.gmra.mxu0 %v3050
      %v3162 = vpop.f32.mrf.mxu0
      %v3163 = vadd.f32 0.0, %v3162
      %3164 = vmatmul.f32.gmra.mxu0 %v3053
      %v3165 = vpop.f32.mrf.mxu0
      %v3166 = vadd.f32 0.0, %v3165
      %3167 = vmatmul.f32.gmra.mxu0 %v3056
      %v3168 = vpop.f32.mrf.mxu0
      %v3169 = vadd.f32 0.0, %v3168
      %3170 = vmatmul.f32.gmra.mxu0 %v3059
      %v3171 = vpop.f32.mrf.mxu0
      %v3172 = vadd.f32 0.0, %v3171
      %3173 = vmatmul.f32.gmra.mxu0 %v3062
      %v3174 = vpop.f32.mrf.mxu0
      %v3175 = vadd.f32 0.0, %v3174
      %3176 = vmatmul.f32.gmra.mxu0 %v3065
      %v3177 = vpop.f32.mrf.mxu0
      %v3178 = vadd.f32 0.0, %v3177
      %3179 = vmatmul.f32.gmra.mxu0 %v3068
      %v3180 = vpop.f32.mrf.mxu0
      %v3181 = vadd.f32 0.0, %v3180
      %3182 = vmatmul.f32.gmra.mxu0 %v3071
      %v3183 = vpop.f32.mrf.mxu0
      %v3184 = vadd.f32 0.0, %v3183
      %3185 = vmatmul.f32.gmra.mxu0 %v3074
      %v3186 = vpop.f32.mrf.mxu0
      %v3187 = vadd.f32 0.0, %v3186
      %3188 = vmatmul.f32.gmra.mxu0 %v3077
      %v3189 = vpop.f32.mrf.mxu0
      %v3190 = vadd.f32 0.0, %v3189
      %3191 = vmatmul.f32.gmra.mxu0 %v3080
      %v3192 = vpop.f32.mrf.mxu0
      %v3193 = vadd.f32 0.0, %v3192
      %3194 = vmatmul.f32.gmra.mxu0 %v3083
      %v3195 = vpop.f32.mrf.mxu0
      %v3196 = vadd.f32 0.0, %v3195
      %3197 = vmatmul.f32.gmra.mxu0 %v3086
      %v3198 = vpop.f32.mrf.mxu0
      %v3199 = vadd.f32 0.0, %v3198
      %3200 = vmatmul.f32.gmra.mxu0 %v3089
      %v3201 = vpop.f32.mrf.mxu0
      %v3202 = vadd.f32 0.0, %v3201
      %3203 = vmatmul.f32.gmra.mxu0 %v3092
      %v3204 = vpop.f32.mrf.mxu0
      %v3205 = vadd.f32 0.0, %v3204
      %3206 = vmatmul.f32.gmra.mxu0 %v3095
      %v3207 = vpop.f32.mrf.mxu0
      %v3208 = vadd.f32 0.0, %v3207
      %3209 = vmatmul.f32.gmra.mxu0 %v3098
      %v3210 = vpop.f32.mrf.mxu0
      %v3211 = vadd.f32 0.0, %v3210
      %3212 = vmatmul.f32.gmra.mxu0 %v3101
      %v3213 = vpop.f32.mrf.mxu0
      %v3214 = vadd.f32 0.0, %v3213
      %3215 = vmatmul.f32.gmra.mxu0 %v3104
      %v3216 = vpop.f32.mrf.mxu0
      %v3217 = vadd.f32 0.0, %v3216
      %3218 = vmatmul.f32.gmra.mxu0 %v3107
      %v3219 = vpop.f32.mrf.mxu0
      %v3220 = vadd.f32 0.0, %v3219
      %3221 = vmatmul.f32.gmra.mxu0 %v3110
      %v3222 = vpop.f32.mrf.mxu0
      %v3223 = vadd.f32 0.0, %v3222
      %3224 = vmatmul.f32.gmra.mxu0 %v3113
      %v3225 = vpop.f32.mrf.mxu0
      %v3226 = vadd.f32 0.0, %v3225
      %3227 = vmatmul.f32.gmra.mxu0 %v3116
      %v3228 = vpop.f32.mrf.mxu0
      %v3229 = vadd.f32 0.0, %v3228
      %3230 = vmatmul.f32.gmra.mxu0 %v3119
      %v3231 = vpop.f32.mrf.mxu0
      %v3232 = vadd.f32 0.0, %v3231
      %3233 = vmatmul.f32.gmra.mxu0 %v3122
      %v3234 = vpop.f32.mrf.mxu0
      %v3235 = vadd.f32 0.0, %v3234
      %3236 = vmatmul.f32.gmra.mxu0 %v3125
      %v3237 = vpop.f32.mrf.mxu0
      %v3238 = vadd.f32 0.0, %v3237
      %3239 = vmatmul.f32.gmra.mxu0 %v3128
      %v3240 = vpop.f32.mrf.mxu0
      %v3241 = vadd.f32 0.0, %v3240
      %3242 = vmatmul.f32.gmra.mxu0 %v3131
      %v3243 = vpop.f32.mrf.mxu0
      %v3244 = vadd.f32 0.0, %v3243
      %3245 = vmatmul.f32.gmra.mxu0 %v3134
      %v3246 = vpop.f32.mrf.mxu0
      %v3247 = vadd.f32 0.0, %v3246
      %3248 = vmatmul.f32.gmra.mxu0 %v3137
      %v3249 = vpop.f32.mrf.mxu0
      %v3250 = vadd.f32 0.0, %v3249
      %3251 = vmatmul.f32.gmra.mxu0 %v3140
      %v3252 = vpop.f32.mrf.mxu0
      %v3253 = vadd.f32 0.0, %v3252
      %3254 = vdwg.mxu0
      %v3255 = vld [vmem:[%s8] sm:$0x1]
      %v3257 = vperm.slane %v3255, 0
      %v3259 = vmul.f32 %v3160, %v3257
      %v3260 = vmul.f32 %v3163, %v3257
      %v3261 = vmul.f32 %v3166, %v3257
      %v3262 = vmul.f32 %v3169, %v3257
      %v3263 = vmul.f32 %v3172, %v3257
      %v3264 = vmul.f32 %v3175, %v3257
      %v3265 = vmul.f32 %v3178, %v3257
      %v3266 = vmul.f32 %v3181, %v3257
      %v3267 = vmul.f32 %v3184, %v3257
      %v3268 = vmul.f32 %v3187, %v3257
      %v3269 = vmul.f32 %v3190, %v3257
      %v3270 = vmul.f32 %v3193, %v3257
      %v3271 = vmul.f32 %v3196, %v3257
      %v3272 = vmul.f32 %v3199, %v3257
      %v3273 = vmul.f32 %v3202, %v3257
      %v3274 = vmul.f32 %v3205, %v3257
      %v3275 = vmul.f32 %v3208, %v3257
      %v3276 = vmul.f32 %v3211, %v3257
      %v3277 = vmul.f32 %v3214, %v3257
      %v3278 = vmul.f32 %v3217, %v3257
      %v3279 = vmul.f32 %v3220, %v3257
      %v3280 = vmul.f32 %v3223, %v3257
      %v3281 = vmul.f32 %v3226, %v3257
      %v3282 = vmul.f32 %v3229, %v3257
      %v3283 = vmul.f32 %v3232, %v3257
      %v3284 = vmul.f32 %v3235, %v3257
      %v3285 = vmul.f32 %v3238, %v3257
      %v3286 = vmul.f32 %v3241, %v3257
      %v3287 = vmul.f32 %v3244, %v3257
      %v3288 = vmul.f32 %v3247, %v3257
      %v3289 = vmul.f32 %v3250, %v3257
      %v3290 = vmul.f32 %v3253, %v3257
      %v3291 = vld [vmem:[%s9] sm:$0x1]
      %v3293 = vperm.slane %v3291, 0
      %v3295 = vadd.f32 %v3259, %v3293
      %v3296 = vadd.f32 %v3260, %v3293
      %v3297 = vadd.f32 %v3261, %v3293
      %v3298 = vadd.f32 %v3262, %v3293
      %v3299 = vadd.f32 %v3263, %v3293
      %v3300 = vadd.f32 %v3264, %v3293
      %v3301 = vadd.f32 %v3265, %v3293
      %v3302 = vadd.f32 %v3266, %v3293
      %v3303 = vadd.f32 %v3267, %v3293
      %v3304 = vadd.f32 %v3268, %v3293
      %v3305 = vadd.f32 %v3269, %v3293
      %v3306 = vadd.f32 %v3270, %v3293
      %v3307 = vadd.f32 %v3271, %v3293
      %v3308 = vadd.f32 %v3272, %v3293
      %v3309 = vadd.f32 %v3273, %v3293
      %v3310 = vadd.f32 %v3274, %v3293
      %v3311 = vadd.f32 %v3275, %v3293
      %v3312 = vadd.f32 %v3276, %v3293
      %v3313 = vadd.f32 %v3277, %v3293
      %v3314 = vadd.f32 %v3278, %v3293
      %v3315 = vadd.f32 %v3279, %v3293
      %v3316 = vadd.f32 %v3280, %v3293
      %v3317 = vadd.f32 %v3281, %v3293
      %v3318 = vadd.f32 %v3282, %v3293
      %v3319 = vadd.f32 %v3283, %v3293
      %v3320 = vadd.f32 %v3284, %v3293
      %v3321 = vadd.f32 %v3285, %v3293
      %v3322 = vadd.f32 %v3286, %v3293
      %v3323 = vadd.f32 %v3287, %v3293
      %v3324 = vadd.f32 %v3288, %v3293
      %v3325 = vadd.f32 %v3289, %v3293
      %v3326 = vadd.f32 %v3290, %v3293
      %3327 = vxpose.xlu0.b32.start [1/16] %v3295, 128
      %3328 = vxpose.xlu0.b32.cont [2/16] %v3296, 128
      %3329 = vxpose.xlu0.b32.cont [3/16] %v3297, 128
      %3330 = vxpose.xlu0.b32.cont [4/16] %v3298, 128
      %3331 = vxpose.xlu0.b32.cont [5/16] %v3299, 128
      %3332 = vxpose.xlu0.b32.cont [6/16] %v3300, 128
      %3333 = vxpose.xlu0.b32.cont [7/16] %v3301, 128
      %3334 = vxpose.xlu0.b32.cont [8/16] %v3302, 128
      %3335 = vxpose.xlu0.b32.cont [9/16] %v3303, 128
      %3336 = vxpose.xlu0.b32.cont [10/16] %v3304, 128
      %3337 = vxpose.xlu0.b32.cont [11/16] %v3305, 128
      %3338 = vxpose.xlu0.b32.cont [12/16] %v3306, 128
      %3339 = vxpose.xlu0.b32.cont [13/16] %v3307, 128
      %3340 = vxpose.xlu0.b32.cont [14/16] %v3308, 128
      %3341 = vxpose.xlu0.b32.cont [15/16] %v3309, 128
      %3342 = vxpose.xlu0.b32.end [16/16] %v3310, 128
      %v3343 = vpop.trf.xlu0
      %v3344 = vpop.trf.xlu0
      %v3345 = vpop.trf.xlu0
      %v3346 = vpop.trf.xlu0
      %v3347 = vpop.trf.xlu0
      %v3348 = vpop.trf.xlu0
      %v3349 = vpop.trf.xlu0
      %v3350 = vpop.trf.xlu0
      %v3351 = vpop.trf.xlu0
      %v3352 = vpop.trf.xlu0
      %v3353 = vpop.trf.xlu0
      %v3354 = vpop.trf.xlu0
      %v3355 = vpop.trf.xlu0
      %v3356 = vpop.trf.xlu0
      %v3357 = vpop.trf.xlu0
      %v3358 = vpop.trf.xlu0
      %3359 = vxpose.xlu0.b32.start [1/16] %v3311, 128
      %3360 = vxpose.xlu0.b32.cont [2/16] %v3312, 128
      %3361 = vxpose.xlu0.b32.cont [3/16] %v3313, 128
      %3362 = vxpose.xlu0.b32.cont [4/16] %v3314, 128
      %3363 = vxpose.xlu0.b32.cont [5/16] %v3315, 128
      %3364 = vxpose.xlu0.b32.cont [6/16] %v3316, 128
      %3365 = vxpose.xlu0.b32.cont [7/16] %v3317, 128
      %3366 = vxpose.xlu0.b32.cont [8/16] %v3318, 128
      %3367 = vxpose.xlu0.b32.cont [9/16] %v3319, 128
      %3368 = vxpose.xlu0.b32.cont [10/16] %v3320, 128
      %3369 = vxpose.xlu0.b32.cont [11/16] %v3321, 128
      %3370 = vxpose.xlu0.b32.cont [12/16] %v3322, 128
      %3371 = vxpose.xlu0.b32.cont [13/16] %v3323, 128
      %3372 = vxpose.xlu0.b32.cont [14/16] %v3324, 128
      %3373 = vxpose.xlu0.b32.cont [15/16] %v3325, 128
      %3374 = vxpose.xlu0.b32.end [16/16] %v3326, 128
      %v3375 = vpop.trf.xlu0
      %v3376 = vpop.trf.xlu0
      %v3377 = vpop.trf.xlu0
      %v3378 = vpop.trf.xlu0
      %v3379 = vpop.trf.xlu0
      %v3380 = vpop.trf.xlu0
      %v3381 = vpop.trf.xlu0
      %v3382 = vpop.trf.xlu0
      %v3383 = vpop.trf.xlu0
      %v3384 = vpop.trf.xlu0
      %v3385 = vpop.trf.xlu0
      %v3386 = vpop.trf.xlu0
      %v3387 = vpop.trf.xlu0
      %v3388 = vpop.trf.xlu0
      %v3389 = vpop.trf.xlu0
      %v3390 = vpop.trf.xlu0
      %3391 = vst [vmem:[#allocation1] ss:$2 sm:$0xff] %v360
      %v3392 = vld.sshfl [vmem:[#allocation1] sm:$0xff pattern:$0x75316420]
      %v3393 = vld.sshfl [vmem:[#allocation1 + $0x8] sm:$0xff pattern:$0x75316420]
      %v3396 = vadd.f32 %v3343, %v3392
      %v3397 = vadd.f32 %v3375, %v3393
      %v3400 = vrot.slane %v3397, 4
      %vm3401 = vcmask 1043456
      %v3402 = vsel %vm3401, %v3396, %v3400
      %3404 = vst [vmem:[%s359] sm:$0xff] %v3402
      %p3405 = scmp.lt.s32.totalorder %s21, 1
      %s3406 = scalar_select %p3405, %s21, 1
      %s3407 = smul.addr %s3406, 2
      %s3408 = smul.addr %s3407, 4
      %s3409 = scalar_lea.vmem %s10, %s3408
      // Predicated region
      $region61: #{base_block_forward.1} parent=59 // pred_check
        %p3410 = pneg %p254
      $region62: #{base_block_forward.1} parent=59 // pred_check_branch
        %3412 = sbr.rel (%p3410) target = $region64
      $region63: #{base_block_forward.1} parent=59 // pred_region
        _
      $region64: #{base_block_forward.1} parent=59 // pred_fallthru
        _
    $region60: #{base_block_forward.1} parent=5 // pred_fallthru
      _
    %p3413 = scmp.le.s32.totalorder 2, %s16
    // Predicated region
    $region65: #{base_block_forward.1} parent=5 // pred_check
      %p3414 = pneg %p3413
    $region66: #{base_block_forward.1} parent=5 // pred_check_branch
      %3416 = sbr.rel (%p3414) target = $region68
    $region67: #{base_block_forward.1} parent=5 // pred_region
      %s3417 = ssub.s32 %s16, 2
      // Predicated region
      $region69: #{base_block_forward.1} parent=67 // pred_check
        %p3418 = pneg %p260
      $region70: #{base_block_forward.1} parent=67 // pred_check_branch
        %3420 = sbr.rel (%p3418) target = $region72
      $region71: #{base_block_forward.1} parent=67 // pred_region
        %p3421 = scmp.lt.s32.totalorder %s22, 1
        %s3422 = scalar_select %p3421, %s22, 1
        %s3423 = smul.addr %s3422, 2
        %s3424 = smul.addr %s3423, 4
        %s3425 = scalar_lea.vmem %s10, %s3424
      $region72: #{base_block_forward.1} parent=67 // pred_fallthru
        _
    $region68: #{base_block_forward.1} parent=5 // pred_fallthru
      _
  $region6: #{base_block_forward.1} parent=0 // loop_footer
    %s20 = sadd.s32 1, %s16
  $region7: #{base_block_forward.1} parent=0 // loop_footer_branch
    %15 = sbr.rel target = $region3
  $region8: #{base_block_forward.1} parent=0 // loop_exit
    _

</llo_original>
